<compile_context>
chip_gen: v6e
topology: v6e:2x2x1
jax: 0.10.0
libtpu: 0.0.40
codegen_flags: <defaults>
</compile_context>

<pallas_src>
import math
import numpy as np
import jax
import jax.numpy as jnp
from jax.experimental import pallas as pl
from jax.experimental.pallas import tpu as pltpu

# ----------------------------- configuration -------------------------------
HIDDEN_DIM = 32     # config.model.hidden_dim
NUM_PROP   = 3      # config.model.num_prop
NUM_NODE   = 8      # config.dataset.num_node
BATCH      = 2      # batch size
V          = BATCH * NUM_NODE   # total nodes
E          = 32                 # total edges
EPS        = float(np.finfo(np.float32).eps)


# ------------------------------- Pallas kernel ------------------------------
def gnn_kernel(edges_ref, eout_ref, ff_ref, bg_ref,
               wm1_ref, wm23_ref, wgru_ref, bgru_ref, wo1_ref, wo23_ref,
               y_ref):
    H = HIDDEN_DIM

    def dot(a, b):
        return jnp.dot(a, b, preferred_element_type=jnp.float32)

    # ---- load / build everything once (hoisted out of the unrolled loop) ----
    edges = edges_ref[...]                      # (E, 2) int32  [edge_in, edge_out]
    En = edges.shape[0]
    bgv = bg_ref[...]                           # (V, 2) f32   [b, gmask]
    Vn = bgv.shape[0]
    b_col = bgv[:, 0:1]                         # (V, 1)
    gmask = bgv[:, 1:2]                         # (V, 1), must be exactly {0,1}

    # one-hot gather / scatter operands built in-kernel (no (E,V) DMAs)
    col_ids = jax.lax.broadcasted_iota(jnp.int32, (En, Vn), 1)
    gin  = (col_ids == edges[:, 0:1]).astype(jnp.float32)   # (E, V) gather src
    gout = (col_ids == edges[:, 1:2]).astype(jnp.float32)   # (E, V) gather dst
    row_ids = jax.lax.broadcasted_iota(jnp.int32, (Vn, En), 0)
    scat = (row_ids == eout_ref[...]).astype(jnp.float32)   # (V, E) == gout^T

    ff = ff_ref[...]                            # (E, 8)  [b_in,-b_in,J,-J,-b_out,b_out,-J,J]

    wm1 = wm1_ref[...]                          # (2H+8, 64) rows [W_s_in; W_s_out; W_ff]
    w1_sin, w1_sout, w1_ff = wm1[0:H], wm1[H:2 * H], wm1[2 * H:2 * H + 8]
    wm23 = wm23_ref[...]                        # (64, 64+H)  [msg_W2 | msg_W3]
    w2, w3 = wm23[:, 0:64], wm23[:, 64:64 + H]
    wgru = wgru_ref[...]                        # (2H, 8H) fused dual-GRU weights
    wg_x, wg_h = wgru[0:H], wgru[H:2 * H]
    bgru = jnp.broadcast_to(bgru_ref[...], (Vn, 8 * H))      # bias broadcast once
    wo1 = wo1_ref[...]                          # (H+1, 64)  rows [W_state; Wb - Wnb]
    wo_s, wo_bd = wo1[0:H], wo1[H:H + 1]
    wo23 = wo23_ref[...]                        # (64, 66)   [out_W2 | out_W3]
    wo2, wo3 = wo23[:, 0:64], wo23[:, 64:66]

    gmask_b = jnp.broadcast_to(gmask, (Vn, H))
    inv_gmask_b = 1.0 - gmask_b

    # loop-invariant ff contribution to the first msg-MLP layer (hoisted)
    ff_h1 = dot(ff, w1_ff)                      # (E, 64)

    def msg_and_aggregate(h1_pre):
        h1 = jnp.maximum(h1_pre, 0.0)
        h2 = jnp.maximum(dot(h1, w2), 0.0)
        msg = dot(h2, w3)                       # (E, H)
        return dot(scat, msg)                   # scatter-add onto targets -> (V, H)

    def dual_gru(G, state):
        # fused pair of PyTorch GRUCells; gate columns:
        # [r1 | z1 | r2 | z2 | gi_n1 | gi_n2 | gh_n1 | gh_n2]
        r1 = jax.nn.sigmoid(G[:, 0:H])
        z1 = jax.nn.sigmoid(G[:, H:2 * H])
        r2 = jax.nn.sigmoid(G[:, 2 * H:3 * H])
        z2 = jax.nn.sigmoid(G[:, 3 * H:4 * H])
        n1 = jnp.tanh(G[:, 4 * H:5 * H] + r1 * G[:, 6 * H:7 * H])
        n2 = jnp.tanh(G[:, 5 * H:6 * H] + r2 * G[:, 7 * H:8 * H])
        if state is None:                       # first step: hidden state == 0
            g1 = (1.0 - z1) * n1
            g2 = (1.0 - z2) * n2
        else:
            g1 = (1.0 - z1) * n1 + z1 * state
            g2 = (1.0 - z2) * n2 + z2 * state
        return gmask_b * g1 + inv_gmask_b * g2  # per-node GRU selection

    # ---- propagation step 0 (state == 0): skip state-dependent matmuls ----
    msg_agg = msg_and_aggregate(ff_h1)
    state = dual_gru(dot(msg_agg, wg_x) + bgru, None)

    # ---- remaining propagation steps ----
    for _ in range(NUM_PROP - 1):
        s_in = dot(gin, state)                  # state_prev[edge_in]
        s_out = dot(gout, state)                # state_prev[edge_out]
        msg_agg = msg_and_aggregate(
            ff_h1 + dot(s_in, w1_sin) + dot(s_out, w1_sout))
        G = dot(msg_agg, wg_x) + dot(state, wg_h) + bgru
        state = dual_gru(G, state)

    # ---- output head: cat([state, b, -b]) -> MLP -> log_softmax(dim=1) ----
    o = jnp.maximum(dot(state, wo_s) + b_col * wo_bd, 0.0)
    o = jnp.maximum(dot(o, wo2), 0.0)
    logits = dot(o, wo3)                        # (V, 2)
    m = jnp.max(logits, axis=1, keepdims=True)
    lse = jnp.log(jnp.sum(jnp.exp(logits - m), axis=1, keepdims=True)) + m
    y_ref[...] = logits - lse


# --------------------------------- wrapper ----------------------------------
def _pack_gru(wih1, whh1, bih1, bhh1, wih2, whh2, bih2, bhh2):
    """Pack the two GRUCells into one (2H, 8H) weight and one (1, 8H) bias."""
    H = HIDDEN_DIM
    z = jnp.zeros((H, H), jnp.float32)
    top = jnp.concatenate(
        [wih1[:, 0:H], wih1[:, H:2 * H], wih2[:, 0:H], wih2[:, H:2 * H],
         wih1[:, 2 * H:3 * H], wih2[:, 2 * H:3 * H], z, z], axis=1)
    bot = jnp.concatenate(
        [whh1[:, 0:H], whh1[:, H:2 * H], whh2[:, 0:H], whh2[:, H:2 * H],
         z, z, whh1[:, 2 * H:3 * H], whh2[:, 2 * H:3 * H]], axis=1)
    w = jnp.concatenate([top, bot], axis=0)                       # (2H, 8H)
    bias = jnp.concatenate(
        [bih1[:, 0:H] + bhh1[:, 0:H], bih1[:, H:2 * H] + bhh1[:, H:2 * H],
         bih2[:, 0:H] + bhh2[:, 0:H], bih2[:, H:2 * H] + bhh2[:, H:2 * H],
         bih1[:, 2 * H:3 * H], bih2[:, 2 * H:3 * H],
         bhh1[:, 2 * H:3 * H], bhh2[:, 2 * H:3 * H]], axis=1)     # (1, 8H)
    return w, bias


def torch_gnn_forward(params, J_msg, b, msg_node, gmask, target=None):
    """Pallas forward of TorchGNN (aggregate_type='add', loss='MSE')."""
    H = HIDDEN_DIM
    edge_in = msg_node[:, 0]
    edge_out = msg_node[:, 1]

    # glue: edge indices (one-hots are built in-kernel) and edge-constant features
    edges = msg_node.astype(jnp.int32)                                # (E, 2)
    eout_row = edge_out.astype(jnp.int32).reshape(1, -1)              # (1, E)
    b_in, b_out = b[edge_in], b[edge_out]
    ff = jnp.concatenate([b_in, -b_in, J_msg, -J_msg,
                          -b_out, b_out, -J_msg, J_msg], axis=1)      # (E, 8)
    bg = jnp.concatenate([b, gmask], axis=1)                          # (V, 2)

    # weight slabs
    W1 = params["msg_W1"]   # rows: [s_in(H); ff_in(4); s_out(H); ff_out(4)]
    w_msg1 = jnp.concatenate(
        [W1[0:H], W1[H + 4:2 * H + 4], W1[H:H + 4], W1[2 * H + 4:2 * H + 8]],
        axis=0)                                                       # (2H+8, 64)
    w_msg23 = jnp.concatenate([params["msg_W2"], params["msg_W3"]], axis=1)  # (64, 96)
    w_gru, b_gru = _pack_gru(
        params["gru1_wih"], params["gru1_whh"], params["gru1_bih"], params["gru1_bhh"],
        params["gru2_wih"], params["gru2_whh"], params["gru2_bih"], params["gru2_bhh"])
    Wo1 = params["out_W1"]
    # b@Wb + (-b)@Wnb folded into one row: b @ (Wb - Wnb)
    w_out1 = jnp.concatenate([Wo1[0:H], Wo1[H:H + 1] - Wo1[H + 1:H + 2]], axis=0)  # (H+1, 64)
    w_out23 = jnp.concatenate([params["out_W2"], params["out_W3"]], axis=1)        # (64, 66)

    args = (edges, eout_row, ff, bg,
            w_msg1, w_msg23, w_gru, b_gru, w_out1, w_out23)

    vmem = pl.BlockSpec(memory_space=pltpu.MemorySpace.VMEM)
    y = pl.pallas_call(
        gnn_kernel,
        out_shape=jax.ShapeDtypeStruct((V, 2), jnp.float32),
        in_specs=[vmem] * len(args),
        out_specs=vmem,
    )(*args)

    loss = None
    loss_per_batch = None
    if target is not None:
        # config.model.loss == 'MSE', SSL=False  ->  MSE(y, log(target))
        logt = jnp.log(jnp.maximum(target, EPS))   # guard log(0)
        loss = jnp.mean((y - logt) ** 2)
        y_ = y.reshape(-1, NUM_NODE, 2)
        t_ = logt.reshape(-1, NUM_NODE, 2)
        loss_per_batch = [jnp.mean((y_[i] - t_[i]) ** 2) for i in range(y_.shape[0])]
    return y, loss, loss_per_batch


# --------------------------- pure-JAX reference ------------------------------
def reference_forward(params, J_msg, b, msg_node, gmask):
    H = HIDDEN_DIM
    edge_in, edge_out = msg_node[:, 0], msg_node[:, 1]
    b_in, b_out = b[edge_in], b[edge_out]
    ff_in  = jnp.concatenate([b_in, -b_in, J_msg, -J_msg], axis=1)
    ff_out = jnp.concatenate([-b_out, b_out, -J_msg, J_msg], axis=1)
    P = jax.lax.Precision.HIGHEST

    def gru(x, h, wih, whh, bih, bhh):
        gi = jnp.dot(x, wih, precision=P) + bih
        gh = jnp.dot(h, whh, precision=P) + bhh
        r = jax.nn.sigmoid(gi[:, 0:H] + gh[:, 0:H])
        z = jax.nn.sigmoid(gi[:, H:2 * H] + gh[:, H:2 * H])
        n = jnp.tanh(gi[:, 2 * H:3 * H] + r * gh[:, 2 * H:3 * H])
        return (1.0 - z) * n + z * h

    state = jnp.zeros((V, H), jnp.float32)
    for _ in range(NUM_PROP):
        inp = jnp.concatenate([state[edge_in], ff_in, state[edge_out], ff_out], axis=1)
        h = jax.nn.relu(jnp.dot(inp, params["msg_W1"], precision=P))
        h = jax.nn.relu(jnp.dot(h, params["msg_W2"], precision=P))
        msg = jnp.dot(h, params["msg_W3"], precision=P)
        msg_agg = jnp.zeros((V, H), jnp.float32).at[edge_out].add(msg)
        g1 = gru(msg_agg, state, params["gru1_wih"], params["gru1_whh"],
                 params["gru1_bih"], params["gru1_bhh"])
        g2 = gru(msg_agg, state, params["gru2_wih"], params["gru2_whh"],
                 params["gru2_bih"], params["gru2_bhh"])
        state = jnp.where(gmask > 0.5, g1, g2)

    yin = jnp.concatenate([state, b, -b], axis=1)
    h = jax.nn.relu(jnp.dot(yin, params["out_W1"], precision=P))
    h = jax.nn.relu(jnp.dot(h, params["out_W2"], precision=P))
    logits = jnp.dot(h, params["out_W3"], precision=P)
    return jax.nn.log_softmax(logits, axis=1)


# ------------------------------ param init ----------------------------------
def xavier(key, fan_in, fan_out):
    bound = math.sqrt(6.0 / (fan_in + fan_out))
    return jax.random.uniform(key, (fan_in, fan_out), jnp.float32, -bound, bound)


def gru_init(key, H):
    k = 1.0 / math.sqrt(H)
    k1, k2, k3, k4 = jax.random.split(key, 4)
    return dict(
        wih=jax.random.uniform(k1, (H, 3 * H), jnp.float32, -k, k),
        whh=jax.random.uniform(k2, (H, 3 * H), jnp.float32, -k, k),
        bih=jax.random.uniform(k3, (1, 3 * H), jnp.float32, -k, k),
        bhh=jax.random.uniform(k4, (1, 3 * H), jnp.float32, -k, k),
    )


def make_params(key):
    H = HIDDEN_DIM
    keys = jax.random.split(key, 8)
    g1 = gru_init(keys[6], H)
    g2 = gru_init(keys[7], H)
    return {
        # msg_func: Linear(2H+8,64)-ReLU-Linear(64,64)-ReLU-Linear(64,H), zero bias
        "msg_W1": xavier(keys[0], 2 * H + 8, 64),
        "msg_W2": xavier(keys[1], 64, 64),
        "msg_W3": xavier(keys[2], 64, H),
        # output_func: Linear(H+2,64)-ReLU-Linear(64,64)-ReLU-Linear(64,2), zero bias
        "out_W1": xavier(keys[3], H + 2, 64),
        "out_W2": xavier(keys[4], 64, 64),
        "out_W3": xavier(keys[5], 64, 2),
        "gru1_wih": g1["wih"], "gru1_whh": g1["whh"],
        "gru1_bih": g1["bih"], "gru1_bhh": g1["bhh"],
        "gru2_wih": g2["wih"], "gru2_whh": g2["whh"],
        "gru2_bih": g2["bih"], "gru2_bhh": g2["bhh"],
    }


# ----------------------------------- main ------------------------------------
if __name__ == "__main__":
    key = jax.random.PRNGKey(0)
    kp, ke, kj, kb, kt = jax.random.split(key, 5)

    params = make_params(kp)

    # random directed edges over V nodes
    msg_node = jax.random.randint(ke, (E, 2), 0, V, dtype=jnp.int32)
    J_msg = jax.random.normal(kj, (E, 1), jnp.float32)
    b = jax.random.normal(kb, (V, 1), jnp.float32)
    target = jax.nn.softmax(jax.random.normal(kt, (V, 2), jnp.float32), axis=1)

    # node_idx groups: even node indices -> update_func1, odd -> update_func2
    # (exact {0,1} mask; gmask == 1 everywhere reduces to the single-GRUCell GeoLayer)
    gmask = (jnp.arange(V) % 2 == 0).astype(jnp.float32).reshape(V, 1)

    y, loss, loss_pb = torch_gnn_forward(params, J_msg, b, msg_node, gmask, target)
    y = jax.block_until_ready(y)
    loss = jax.block_until_ready(loss)

    y_ref = reference_forward(params, J_msg, b, msg_node, gmask)
    np.testing.assert_allclose(np.asarray(y), np.asarray(y_ref), rtol=1e-2, atol=1e-2)

    print("KERNEL_OK")
</pallas_src>

<mosaic_0001>
module attributes {stable_mosaic.version = 11 : i64} {
  func.func @gnn_kernel(%arg0: memref<32x2xi32, #tpu.memory_space<vmem>>, %arg1: memref<1x32xi32, #tpu.memory_space<vmem>>, %arg2: memref<32x8xf32, #tpu.memory_space<vmem>>, %arg3: memref<16x2xf32, #tpu.memory_space<vmem>>, %arg4: memref<72x64xf32, #tpu.memory_space<vmem>>, %arg5: memref<64x96xf32, #tpu.memory_space<vmem>>, %arg6: memref<64x256xf32, #tpu.memory_space<vmem>>, %arg7: memref<1x256xf32, #tpu.memory_space<vmem>>, %arg8: memref<33x64xf32, #tpu.memory_space<vmem>>, %arg9: memref<64x66xf32, #tpu.memory_space<vmem>>, %arg10: memref<16x2xf32, #tpu.memory_space<vmem>>) attributes {dimension_semantics = [], scalar_prefetch = 0 : i64, scratch_operands = 0 : i64, tpu.core_type = #tpu.core_type<tc>} {
    %c0 = arith.constant 0 : index
    %c0_0 = arith.constant 0 : index
    %0 = vector.load %arg0[%c0, %c0_0] : memref<32x2xi32, #tpu.memory_space<vmem>>, vector<32x2xi32>
    %c0_1 = arith.constant 0 : index
    %c0_2 = arith.constant 0 : index
    %1 = vector.load %arg3[%c0_1, %c0_2] : memref<16x2xf32, #tpu.memory_space<vmem>>, vector<16x2xf32>
    %2 = vector.extract_strided_slice %1 {offsets = [0, 0], sizes = [16, 1], strides = [1, 1]} : vector<16x2xf32> to vector<16x1xf32>
    %3 = vector.extract_strided_slice %1 {offsets = [0, 1], sizes = [16, 1], strides = [1, 1]} : vector<16x2xf32> to vector<16x1xf32>
    %4 = tpu.iota {dimensions = array<i32: 1>} : vector<32x16xi32>
    %5 = vector.extract_strided_slice %0 {offsets = [0, 0], sizes = [32, 1], strides = [1, 1]} : vector<32x2xi32> to vector<32x1xi32>
    %6 = vector.broadcast %5 : vector<32x1xi32> to vector<32x16xi32>
    %7 = arith.cmpi eq, %4, %6 : vector<32x16xi32>
    %8 = arith.extui %7 : vector<32x16xi1> to vector<32x16xi32>
    %9 = arith.sitofp %8 : vector<32x16xi32> to vector<32x16xf32>
    %10 = vector.extract_strided_slice %0 {offsets = [0, 1], sizes = [32, 1], strides = [1, 1]} : vector<32x2xi32> to vector<32x1xi32>
    %11 = vector.broadcast %10 : vector<32x1xi32> to vector<32x16xi32>
    %12 = arith.cmpi eq, %4, %11 : vector<32x16xi32>
    %13 = arith.extui %12 : vector<32x16xi1> to vector<32x16xi32>
    %14 = arith.sitofp %13 : vector<32x16xi32> to vector<32x16xf32>
    %15 = tpu.iota {dimensions = array<i32: 0>} : vector<16x32xi32>
    %c0_3 = arith.constant 0 : index
    %c0_4 = arith.constant 0 : index
    %16 = vector.load %arg1[%c0_3, %c0_4] : memref<1x32xi32, #tpu.memory_space<vmem>>, vector<1x32xi32>
    %17 = vector.broadcast %16 : vector<1x32xi32> to vector<16x32xi32>
    %18 = arith.cmpi eq, %15, %17 : vector<16x32xi32>
    %19 = arith.extui %18 : vector<16x32xi1> to vector<16x32xi32>
    %20 = arith.sitofp %19 : vector<16x32xi32> to vector<16x32xf32>
    %c0_5 = arith.constant 0 : index
    %c0_6 = arith.constant 0 : index
    %21 = vector.load %arg2[%c0_5, %c0_6] : memref<32x8xf32, #tpu.memory_space<vmem>>, vector<32x8xf32>
    %c0_7 = arith.constant 0 : index
    %c0_8 = arith.constant 0 : index
    %22 = vector.load %arg4[%c0_7, %c0_8] : memref<72x64xf32, #tpu.memory_space<vmem>>, vector<72x64xf32>
    %23 = vector.extract_strided_slice %22 {offsets = [0, 0], sizes = [32, 64], strides = [1, 1]} : vector<72x64xf32> to vector<32x64xf32>
    %24 = vector.extract_strided_slice %22 {offsets = [32, 0], sizes = [32, 64], strides = [1, 1]} : vector<72x64xf32> to vector<32x64xf32>
    %25 = vector.extract_strided_slice %22 {offsets = [64, 0], sizes = [8, 64], strides = [1, 1]} : vector<72x64xf32> to vector<8x64xf32>
    %c0_9 = arith.constant 0 : index
    %c0_10 = arith.constant 0 : index
    %26 = vector.load %arg5[%c0_9, %c0_10] : memref<64x96xf32, #tpu.memory_space<vmem>>, vector<64x96xf32>
    %27 = vector.extract_strided_slice %26 {offsets = [0, 0], sizes = [64, 64], strides = [1, 1]} : vector<64x96xf32> to vector<64x64xf32>
    %28 = vector.extract_strided_slice %26 {offsets = [0, 64], sizes = [64, 32], strides = [1, 1]} : vector<64x96xf32> to vector<64x32xf32>
    %c0_11 = arith.constant 0 : index
    %c0_12 = arith.constant 0 : index
    %29 = vector.load %arg6[%c0_11, %c0_12] : memref<64x256xf32, #tpu.memory_space<vmem>>, vector<64x256xf32>
    %30 = vector.extract_strided_slice %29 {offsets = [0, 0], sizes = [32, 256], strides = [1, 1]} : vector<64x256xf32> to vector<32x256xf32>
    %31 = vector.extract_strided_slice %29 {offsets = [32, 0], sizes = [32, 256], strides = [1, 1]} : vector<64x256xf32> to vector<32x256xf32>
    %c0_13 = arith.constant 0 : index
    %c0_14 = arith.constant 0 : index
    %32 = vector.load %arg7[%c0_13, %c0_14] : memref<1x256xf32, #tpu.memory_space<vmem>>, vector<1x256xf32>
    %33 = vector.shape_cast %32 : vector<1x256xf32> to vector<1x256xf32>
    %34 = vector.broadcast %33 : vector<1x256xf32> to vector<16x256xf32>
    %c0_15 = arith.constant 0 : index
    %c0_16 = arith.constant 0 : index
    %35 = vector.load %arg8[%c0_15, %c0_16] : memref<33x64xf32, #tpu.memory_space<vmem>>, vector<33x64xf32>
    %36 = vector.extract_strided_slice %35 {offsets = [0, 0], sizes = [32, 64], strides = [1, 1]} : vector<33x64xf32> to vector<32x64xf32>
    %37 = vector.extract_strided_slice %35 {offsets = [32, 0], sizes = [1, 64], strides = [1, 1]} : vector<33x64xf32> to vector<1x64xf32>
    %c0_17 = arith.constant 0 : index
    %c0_18 = arith.constant 0 : index
    %38 = vector.load %arg9[%c0_17, %c0_18] : memref<64x66xf32, #tpu.memory_space<vmem>>, vector<64x66xf32>
    %39 = vector.extract_strided_slice %38 {offsets = [0, 0], sizes = [64, 64], strides = [1, 1]} : vector<64x66xf32> to vector<64x64xf32>
    %40 = vector.extract_strided_slice %38 {offsets = [0, 64], sizes = [64, 2], strides = [1, 1]} : vector<64x66xf32> to vector<64x2xf32>
    %41 = vector.shape_cast %3 : vector<16x1xf32> to vector<16x1xf32>
    %42 = vector.broadcast %41 : vector<16x1xf32> to vector<16x32xf32>
    %cst = arith.constant 1.000000e+00 : f32
    %43 = vector.broadcast %cst : f32 to vector<16x32xf32>
    %44 = arith.subf %43, %42 : vector<16x32xf32>
    %cst_19 = arith.constant dense<0.000000e+00> : vector<32x64xf32>
    %45 = tpu.matmul %21, %25, %cst_19 {dimension_numbers = #tpu.dot_dimension_numbers<[1], [0], [0], [1], [0, 0, 1, 1], [], []>} : vector<32x8xf32>, vector<8x64xf32>, vector<32x64xf32> -> vector<32x64xf32>
    %cst_20 = arith.constant 0.000000e+00 : f32
    %46 = vector.broadcast %cst_20 : f32 to vector<32x64xf32>
    %47 = arith.maximumf %45, %46 : vector<32x64xf32>
    %cst_21 = arith.constant dense<0.000000e+00> : vector<32x64xf32>
    %48 = tpu.matmul %47, %27, %cst_21 {dimension_numbers = #tpu.dot_dimension_numbers<[1], [0], [0], [1], [0, 0, 1, 1], [], []>} : vector<32x64xf32>, vector<64x64xf32>, vector<32x64xf32> -> vector<32x64xf32>
    %cst_22 = arith.constant 0.000000e+00 : f32
    %49 = vector.broadcast %cst_22 : f32 to vector<32x64xf32>
    %50 = arith.maximumf %48, %49 : vector<32x64xf32>
    %cst_23 = arith.constant dense<0.000000e+00> : vector<32x32xf32>
    %51 = tpu.matmul %50, %28, %cst_23 {dimension_numbers = #tpu.dot_dimension_numbers<[1], [0], [0], [1], [0, 0, 1, 1], [], []>} : vector<32x64xf32>, vector<64x32xf32>, vector<32x32xf32> -> vector<32x32xf32>
    %cst_24 = arith.constant dense<0.000000e+00> : vector<16x32xf32>
    %52 = tpu.matmul %20, %51, %cst_24 {dimension_numbers = #tpu.dot_dimension_numbers<[1], [0], [0], [1], [0, 0, 1, 1], [], []>} : vector<16x32xf32>, vector<32x32xf32>, vector<16x32xf32> -> vector<16x32xf32>
    %cst_25 = arith.constant dense<0.000000e+00> : vector<16x256xf32>
    %53 = tpu.matmul %52, %30, %cst_25 {dimension_numbers = #tpu.dot_dimension_numbers<[1], [0], [0], [1], [0, 0, 1, 1], [], []>} : vector<16x32xf32>, vector<32x256xf32>, vector<16x256xf32> -> vector<16x256xf32>
    %54 = arith.addf %53, %34 : vector<16x256xf32>
    %55 = vector.extract_strided_slice %54 {offsets = [0, 0], sizes = [16, 32], strides = [1, 1]} : vector<16x256xf32> to vector<16x32xf32>
    %56 = arith.negf %55 : vector<16x32xf32>
    %57 = math.exp %56 : vector<16x32xf32>
    %cst_26 = arith.constant 1.000000e+00 : f32
    %58 = vector.broadcast %cst_26 : f32 to vector<16x32xf32>
    %59 = arith.addf %58, %57 : vector<16x32xf32>
    %60 = arith.divf %58, %59 : vector<16x32xf32>
    %61 = vector.extract_strided_slice %54 {offsets = [0, 32], sizes = [16, 32], strides = [1, 1]} : vector<16x256xf32> to vector<16x32xf32>
    %62 = arith.negf %61 : vector<16x32xf32>
    %63 = math.exp %62 : vector<16x32xf32>
    %cst_27 = arith.constant 1.000000e+00 : f32
    %64 = vector.broadcast %cst_27 : f32 to vector<16x32xf32>
    %65 = arith.addf %64, %63 : vector<16x32xf32>
    %66 = arith.divf %64, %65 : vector<16x32xf32>
    %67 = vector.extract_strided_slice %54 {offsets = [0, 64], sizes = [16, 32], strides = [1, 1]} : vector<16x256xf32> to vector<16x32xf32>
    %68 = arith.negf %67 : vector<16x32xf32>
    %69 = math.exp %68 : vector<16x32xf32>
    %cst_28 = arith.constant 1.000000e+00 : f32
    %70 = vector.broadcast %cst_28 : f32 to vector<16x32xf32>
    %71 = arith.addf %70, %69 : vector<16x32xf32>
    %72 = arith.divf %70, %71 : vector<16x32xf32>
    %73 = vector.extract_strided_slice %54 {offsets = [0, 96], sizes = [16, 32], strides = [1, 1]} : vector<16x256xf32> to vector<16x32xf32>
    %74 = arith.negf %73 : vector<16x32xf32>
    %75 = math.exp %74 : vector<16x32xf32>
    %cst_29 = arith.constant 1.000000e+00 : f32
    %76 = vector.broadcast %cst_29 : f32 to vector<16x32xf32>
    %77 = arith.addf %76, %75 : vector<16x32xf32>
    %78 = arith.divf %76, %77 : vector<16x32xf32>
    %79 = vector.extract_strided_slice %54 {offsets = [0, 128], sizes = [16, 32], strides = [1, 1]} : vector<16x256xf32> to vector<16x32xf32>
    %80 = vector.extract_strided_slice %54 {offsets = [0, 192], sizes = [16, 32], strides = [1, 1]} : vector<16x256xf32> to vector<16x32xf32>
    %81 = arith.mulf %60, %80 : vector<16x32xf32>
    %82 = arith.addf %79, %81 : vector<16x32xf32>
    %83 = math.tanh %82 : vector<16x32xf32>
    %84 = vector.extract_strided_slice %54 {offsets = [0, 160], sizes = [16, 32], strides = [1, 1]} : vector<16x256xf32> to vector<16x32xf32>
    %85 = vector.extract_strided_slice %54 {offsets = [0, 224], sizes = [16, 32], strides = [1, 1]} : vector<16x256xf32> to vector<16x32xf32>
    %86 = arith.mulf %72, %85 : vector<16x32xf32>
    %87 = arith.addf %84, %86 : vector<16x32xf32>
    %88 = math.tanh %87 : vector<16x32xf32>
    %cst_30 = arith.constant 1.000000e+00 : f32
    %89 = vector.broadcast %cst_30 : f32 to vector<16x32xf32>
    %90 = arith.subf %89, %66 : vector<16x32xf32>
    %91 = arith.mulf %90, %83 : vector<16x32xf32>
    %cst_31 = arith.constant 1.000000e+00 : f32
    %92 = vector.broadcast %cst_31 : f32 to vector<16x32xf32>
    %93 = arith.subf %92, %78 : vector<16x32xf32>
    %94 = arith.mulf %93, %88 : vector<16x32xf32>
    %95 = arith.mulf %42, %91 : vector<16x32xf32>
    %96 = arith.mulf %44, %94 : vector<16x32xf32>
    %97 = arith.addf %95, %96 : vector<16x32xf32>
    %cst_32 = arith.constant dense<0.000000e+00> : vector<32x32xf32>
    %98 = tpu.matmul %9, %97, %cst_32 {dimension_numbers = #tpu.dot_dimension_numbers<[1], [0], [0], [1], [0, 0, 1, 1], [], []>} : vector<32x16xf32>, vector<16x32xf32>, vector<32x32xf32> -> vector<32x32xf32>
    %cst_33 = arith.constant dense<0.000000e+00> : vector<32x32xf32>
    %99 = tpu.matmul %14, %97, %cst_33 {dimension_numbers = #tpu.dot_dimension_numbers<[1], [0], [0], [1], [0, 0, 1, 1], [], []>} : vector<32x16xf32>, vector<16x32xf32>, vector<32x32xf32> -> vector<32x32xf32>
    %cst_34 = arith.constant dense<0.000000e+00> : vector<32x64xf32>
    %100 = tpu.matmul %98, %23, %cst_34 {dimension_numbers = #tpu.dot_dimension_numbers<[1], [0], [0], [1], [0, 0, 1, 1], [], []>} : vector<32x32xf32>, vector<32x64xf32>, vector<32x64xf32> -> vector<32x64xf32>
    %101 = arith.addf %45, %100 : vector<32x64xf32>
    %cst_35 = arith.constant dense<0.000000e+00> : vector<32x64xf32>
    %102 = tpu.matmul %99, %24, %cst_35 {dimension_numbers = #tpu.dot_dimension_numbers<[1], [0], [0], [1], [0, 0, 1, 1], [], []>} : vector<32x32xf32>, vector<32x64xf32>, vector<32x64xf32> -> vector<32x64xf32>
    %103 = arith.addf %101, %102 : vector<32x64xf32>
    %cst_36 = arith.constant 0.000000e+00 : f32
    %104 = vector.broadcast %cst_36 : f32 to vector<32x64xf32>
    %105 = arith.maximumf %103, %104 : vector<32x64xf32>
    %cst_37 = arith.constant dense<0.000000e+00> : vector<32x64xf32>
    %106 = tpu.matmul %105, %27, %cst_37 {dimension_numbers = #tpu.dot_dimension_numbers<[1], [0], [0], [1], [0, 0, 1, 1], [], []>} : vector<32x64xf32>, vector<64x64xf32>, vector<32x64xf32> -> vector<32x64xf32>
    %cst_38 = arith.constant 0.000000e+00 : f32
    %107 = vector.broadcast %cst_38 : f32 to vector<32x64xf32>
    %108 = arith.maximumf %106, %107 : vector<32x64xf32>
    %cst_39 = arith.constant dense<0.000000e+00> : vector<32x32xf32>
    %109 = tpu.matmul %108, %28, %cst_39 {dimension_numbers = #tpu.dot_dimension_numbers<[1], [0], [0], [1], [0, 0, 1, 1], [], []>} : vector<32x64xf32>, vector<64x32xf32>, vector<32x32xf32> -> vector<32x32xf32>
    %cst_40 = arith.constant dense<0.000000e+00> : vector<16x32xf32>
    %110 = tpu.matmul %20, %109, %cst_40 {dimension_numbers = #tpu.dot_dimension_numbers<[1], [0], [0], [1], [0, 0, 1, 1], [], []>} : vector<16x32xf32>, vector<32x32xf32>, vector<16x32xf32> -> vector<16x32xf32>
    %cst_41 = arith.constant dense<0.000000e+00> : vector<16x256xf32>
    %111 = tpu.matmul %110, %30, %cst_41 {dimension_numbers = #tpu.dot_dimension_numbers<[1], [0], [0], [1], [0, 0, 1, 1], [], []>} : vector<16x32xf32>, vector<32x256xf32>, vector<16x256xf32> -> vector<16x256xf32>
    %cst_42 = arith.constant dense<0.000000e+00> : vector<16x256xf32>
    %112 = tpu.matmul %97, %31, %cst_42 {dimension_numbers = #tpu.dot_dimension_numbers<[1], [0], [0], [1], [0, 0, 1, 1], [], []>} : vector<16x32xf32>, vector<32x256xf32>, vector<16x256xf32> -> vector<16x256xf32>
    %113 = arith.addf %111, %112 : vector<16x256xf32>
    %114 = arith.addf %113, %34 : vector<16x256xf32>
    %115 = vector.extract_strided_slice %114 {offsets = [0, 0], sizes = [16, 32], strides = [1, 1]} : vector<16x256xf32> to vector<16x32xf32>
    %116 = arith.negf %115 : vector<16x32xf32>
    %117 = math.exp %116 : vector<16x32xf32>
    %cst_43 = arith.constant 1.000000e+00 : f32
    %118 = vector.broadcast %cst_43 : f32 to vector<16x32xf32>
    %119 = arith.addf %118, %117 : vector<16x32xf32>
    %120 = arith.divf %118, %119 : vector<16x32xf32>
    %121 = vector.extract_strided_slice %114 {offsets = [0, 32], sizes = [16, 32], strides = [1, 1]} : vector<16x256xf32> to vector<16x32xf32>
    %122 = arith.negf %121 : vector<16x32xf32>
    %123 = math.exp %122 : vector<16x32xf32>
    %cst_44 = arith.constant 1.000000e+00 : f32
    %124 = vector.broadcast %cst_44 : f32 to vector<16x32xf32>
    %125 = arith.addf %124, %123 : vector<16x32xf32>
    %126 = arith.divf %124, %125 : vector<16x32xf32>
    %127 = vector.extract_strided_slice %114 {offsets = [0, 64], sizes = [16, 32], strides = [1, 1]} : vector<16x256xf32> to vector<16x32xf32>
    %128 = arith.negf %127 : vector<16x32xf32>
    %129 = math.exp %128 : vector<16x32xf32>
    %cst_45 = arith.constant 1.000000e+00 : f32
    %130 = vector.broadcast %cst_45 : f32 to vector<16x32xf32>
    %131 = arith.addf %130, %129 : vector<16x32xf32>
    %132 = arith.divf %130, %131 : vector<16x32xf32>
    %133 = vector.extract_strided_slice %114 {offsets = [0, 96], sizes = [16, 32], strides = [1, 1]} : vector<16x256xf32> to vector<16x32xf32>
    %134 = arith.negf %133 : vector<16x32xf32>
    %135 = math.exp %134 : vector<16x32xf32>
    %cst_46 = arith.constant 1.000000e+00 : f32
    %136 = vector.broadcast %cst_46 : f32 to vector<16x32xf32>
    %137 = arith.addf %136, %135 : vector<16x32xf32>
    %138 = arith.divf %136, %137 : vector<16x32xf32>
    %139 = vector.extract_strided_slice %114 {offsets = [0, 128], sizes = [16, 32], strides = [1, 1]} : vector<16x256xf32> to vector<16x32xf32>
    %140 = vector.extract_strided_slice %114 {offsets = [0, 192], sizes = [16, 32], strides = [1, 1]} : vector<16x256xf32> to vector<16x32xf32>
    %141 = arith.mulf %120, %140 : vector<16x32xf32>
    %142 = arith.addf %139, %141 : vector<16x32xf32>
    %143 = math.tanh %142 : vector<16x32xf32>
    %144 = vector.extract_strided_slice %114 {offsets = [0, 160], sizes = [16, 32], strides = [1, 1]} : vector<16x256xf32> to vector<16x32xf32>
    %145 = vector.extract_strided_slice %114 {offsets = [0, 224], sizes = [16, 32], strides = [1, 1]} : vector<16x256xf32> to vector<16x32xf32>
    %146 = arith.mulf %132, %145 : vector<16x32xf32>
    %147 = arith.addf %144, %146 : vector<16x32xf32>
    %148 = math.tanh %147 : vector<16x32xf32>
    %cst_47 = arith.constant 1.000000e+00 : f32
    %149 = vector.broadcast %cst_47 : f32 to vector<16x32xf32>
    %150 = arith.subf %149, %126 : vector<16x32xf32>
    %151 = arith.mulf %150, %143 : vector<16x32xf32>
    %152 = arith.mulf %126, %97 : vector<16x32xf32>
    %153 = arith.addf %151, %152 : vector<16x32xf32>
    %cst_48 = arith.constant 1.000000e+00 : f32
    %154 = vector.broadcast %cst_48 : f32 to vector<16x32xf32>
    %155 = arith.subf %154, %138 : vector<16x32xf32>
    %156 = arith.mulf %155, %148 : vector<16x32xf32>
    %157 = arith.mulf %138, %97 : vector<16x32xf32>
    %158 = arith.addf %156, %157 : vector<16x32xf32>
    %159 = arith.mulf %42, %153 : vector<16x32xf32>
    %160 = arith.mulf %44, %158 : vector<16x32xf32>
    %161 = arith.addf %159, %160 : vector<16x32xf32>
    %cst_49 = arith.constant dense<0.000000e+00> : vector<32x32xf32>
    %162 = tpu.matmul %9, %161, %cst_49 {dimension_numbers = #tpu.dot_dimension_numbers<[1], [0], [0], [1], [0, 0, 1, 1], [], []>} : vector<32x16xf32>, vector<16x32xf32>, vector<32x32xf32> -> vector<32x32xf32>
    %cst_50 = arith.constant dense<0.000000e+00> : vector<32x32xf32>
    %163 = tpu.matmul %14, %161, %cst_50 {dimension_numbers = #tpu.dot_dimension_numbers<[1], [0], [0], [1], [0, 0, 1, 1], [], []>} : vector<32x16xf32>, vector<16x32xf32>, vector<32x32xf32> -> vector<32x32xf32>
    %cst_51 = arith.constant dense<0.000000e+00> : vector<32x64xf32>
    %164 = tpu.matmul %162, %23, %cst_51 {dimension_numbers = #tpu.dot_dimension_numbers<[1], [0], [0], [1], [0, 0, 1, 1], [], []>} : vector<32x32xf32>, vector<32x64xf32>, vector<32x64xf32> -> vector<32x64xf32>
    %165 = arith.addf %45, %164 : vector<32x64xf32>
    %cst_52 = arith.constant dense<0.000000e+00> : vector<32x64xf32>
    %166 = tpu.matmul %163, %24, %cst_52 {dimension_numbers = #tpu.dot_dimension_numbers<[1], [0], [0], [1], [0, 0, 1, 1], [], []>} : vector<32x32xf32>, vector<32x64xf32>, vector<32x64xf32> -> vector<32x64xf32>
    %167 = arith.addf %165, %166 : vector<32x64xf32>
    %cst_53 = arith.constant 0.000000e+00 : f32
    %168 = vector.broadcast %cst_53 : f32 to vector<32x64xf32>
    %169 = arith.maximumf %167, %168 : vector<32x64xf32>
    %cst_54 = arith.constant dense<0.000000e+00> : vector<32x64xf32>
    %170 = tpu.matmul %169, %27, %cst_54 {dimension_numbers = #tpu.dot_dimension_numbers<[1], [0], [0], [1], [0, 0, 1, 1], [], []>} : vector<32x64xf32>, vector<64x64xf32>, vector<32x64xf32> -> vector<32x64xf32>
    %cst_55 = arith.constant 0.000000e+00 : f32
    %171 = vector.broadcast %cst_55 : f32 to vector<32x64xf32>
    %172 = arith.maximumf %170, %171 : vector<32x64xf32>
    %cst_56 = arith.constant dense<0.000000e+00> : vector<32x32xf32>
    %173 = tpu.matmul %172, %28, %cst_56 {dimension_numbers = #tpu.dot_dimension_numbers<[1], [0], [0], [1], [0, 0, 1, 1], [], []>} : vector<32x64xf32>, vector<64x32xf32>, vector<32x32xf32> -> vector<32x32xf32>
    %cst_57 = arith.constant dense<0.000000e+00> : vector<16x32xf32>
    %174 = tpu.matmul %20, %173, %cst_57 {dimension_numbers = #tpu.dot_dimension_numbers<[1], [0], [0], [1], [0, 0, 1, 1], [], []>} : vector<16x32xf32>, vector<32x32xf32>, vector<16x32xf32> -> vector<16x32xf32>
    %cst_58 = arith.constant dense<0.000000e+00> : vector<16x256xf32>
    %175 = tpu.matmul %174, %30, %cst_58 {dimension_numbers = #tpu.dot_dimension_numbers<[1], [0], [0], [1], [0, 0, 1, 1], [], []>} : vector<16x32xf32>, vector<32x256xf32>, vector<16x256xf32> -> vector<16x256xf32>
    %cst_59 = arith.constant dense<0.000000e+00> : vector<16x256xf32>
    %176 = tpu.matmul %161, %31, %cst_59 {dimension_numbers = #tpu.dot_dimension_numbers<[1], [0], [0], [1], [0, 0, 1, 1], [], []>} : vector<16x32xf32>, vector<32x256xf32>, vector<16x256xf32> -> vector<16x256xf32>
    %177 = arith.addf %175, %176 : vector<16x256xf32>
    %178 = arith.addf %177, %34 : vector<16x256xf32>
    %179 = vector.extract_strided_slice %178 {offsets = [0, 0], sizes = [16, 32], strides = [1, 1]} : vector<16x256xf32> to vector<16x32xf32>
    %180 = arith.negf %179 : vector<16x32xf32>
    %181 = math.exp %180 : vector<16x32xf32>
    %cst_60 = arith.constant 1.000000e+00 : f32
    %182 = vector.broadcast %cst_60 : f32 to vector<16x32xf32>
    %183 = arith.addf %182, %181 : vector<16x32xf32>
    %184 = arith.divf %182, %183 : vector<16x32xf32>
    %185 = vector.extract_strided_slice %178 {offsets = [0, 32], sizes = [16, 32], strides = [1, 1]} : vector<16x256xf32> to vector<16x32xf32>
    %186 = arith.negf %185 : vector<16x32xf32>
    %187 = math.exp %186 : vector<16x32xf32>
    %cst_61 = arith.constant 1.000000e+00 : f32
    %188 = vector.broadcast %cst_61 : f32 to vector<16x32xf32>
    %189 = arith.addf %188, %187 : vector<16x32xf32>
    %190 = arith.divf %188, %189 : vector<16x32xf32>
    %191 = vector.extract_strided_slice %178 {offsets = [0, 64], sizes = [16, 32], strides = [1, 1]} : vector<16x256xf32> to vector<16x32xf32>
    %192 = arith.negf %191 : vector<16x32xf32>
    %193 = math.exp %192 : vector<16x32xf32>
    %cst_62 = arith.constant 1.000000e+00 : f32
    %194 = vector.broadcast %cst_62 : f32 to vector<16x32xf32>
    %195 = arith.addf %194, %193 : vector<16x32xf32>
    %196 = arith.divf %194, %195 : vector<16x32xf32>
    %197 = vector.extract_strided_slice %178 {offsets = [0, 96], sizes = [16, 32], strides = [1, 1]} : vector<16x256xf32> to vector<16x32xf32>
    %198 = arith.negf %197 : vector<16x32xf32>
    %199 = math.exp %198 : vector<16x32xf32>
    %cst_63 = arith.constant 1.000000e+00 : f32
    %200 = vector.broadcast %cst_63 : f32 to vector<16x32xf32>
    %201 = arith.addf %200, %199 : vector<16x32xf32>
    %202 = arith.divf %200, %201 : vector<16x32xf32>
    %203 = vector.extract_strided_slice %178 {offsets = [0, 128], sizes = [16, 32], strides = [1, 1]} : vector<16x256xf32> to vector<16x32xf32>
    %204 = vector.extract_strided_slice %178 {offsets = [0, 192], sizes = [16, 32], strides = [1, 1]} : vector<16x256xf32> to vector<16x32xf32>
    %205 = arith.mulf %184, %204 : vector<16x32xf32>
    %206 = arith.addf %203, %205 : vector<16x32xf32>
    %207 = math.tanh %206 : vector<16x32xf32>
    %208 = vector.extract_strided_slice %178 {offsets = [0, 160], sizes = [16, 32], strides = [1, 1]} : vector<16x256xf32> to vector<16x32xf32>
    %209 = vector.extract_strided_slice %178 {offsets = [0, 224], sizes = [16, 32], strides = [1, 1]} : vector<16x256xf32> to vector<16x32xf32>
    %210 = arith.mulf %196, %209 : vector<16x32xf32>
    %211 = arith.addf %208, %210 : vector<16x32xf32>
    %212 = math.tanh %211 : vector<16x32xf32>
    %cst_64 = arith.constant 1.000000e+00 : f32
    %213 = vector.broadcast %cst_64 : f32 to vector<16x32xf32>
    %214 = arith.subf %213, %190 : vector<16x32xf32>
    %215 = arith.mulf %214, %207 : vector<16x32xf32>
    %216 = arith.mulf %190, %161 : vector<16x32xf32>
    %217 = arith.addf %215, %216 : vector<16x32xf32>
    %cst_65 = arith.constant 1.000000e+00 : f32
    %218 = vector.broadcast %cst_65 : f32 to vector<16x32xf32>
    %219 = arith.subf %218, %202 : vector<16x32xf32>
    %220 = arith.mulf %219, %212 : vector<16x32xf32>
    %221 = arith.mulf %202, %161 : vector<16x32xf32>
    %222 = arith.addf %220, %221 : vector<16x32xf32>
    %223 = arith.mulf %42, %217 : vector<16x32xf32>
    %224 = arith.mulf %44, %222 : vector<16x32xf32>
    %225 = arith.addf %223, %224 : vector<16x32xf32>
    %cst_66 = arith.constant dense<0.000000e+00> : vector<16x64xf32>
    %226 = tpu.matmul %225, %36, %cst_66 {dimension_numbers = #tpu.dot_dimension_numbers<[1], [0], [0], [1], [0, 0, 1, 1], [], []>} : vector<16x32xf32>, vector<32x64xf32>, vector<16x64xf32> -> vector<16x64xf32>
    %227 = vector.broadcast %2 : vector<16x1xf32> to vector<16x64xf32>
    %228 = vector.broadcast %37 : vector<1x64xf32> to vector<16x64xf32>
    %229 = arith.mulf %227, %228 : vector<16x64xf32>
    %230 = arith.addf %226, %229 : vector<16x64xf32>
    %cst_67 = arith.constant 0.000000e+00 : f32
    %231 = vector.broadcast %cst_67 : f32 to vector<16x64xf32>
    %232 = arith.maximumf %230, %231 : vector<16x64xf32>
    %cst_68 = arith.constant dense<0.000000e+00> : vector<16x64xf32>
    %233 = tpu.matmul %232, %39, %cst_68 {dimension_numbers = #tpu.dot_dimension_numbers<[1], [0], [0], [1], [0, 0, 1, 1], [], []>} : vector<16x64xf32>, vector<64x64xf32>, vector<16x64xf32> -> vector<16x64xf32>
    %cst_69 = arith.constant 0.000000e+00 : f32
    %234 = vector.broadcast %cst_69 : f32 to vector<16x64xf32>
    %235 = arith.maximumf %233, %234 : vector<16x64xf32>
    %cst_70 = arith.constant dense<0.000000e+00> : vector<16x2xf32>
    %236 = tpu.matmul %235, %40, %cst_70 {dimension_numbers = #tpu.dot_dimension_numbers<[1], [0], [0], [1], [0, 0, 1, 1], [], []>} : vector<16x64xf32>, vector<64x2xf32>, vector<16x2xf32> -> vector<16x2xf32>
    %cst_71 = arith.constant dense<0xFF800000> : vector<16xf32>
    %237 = vector.multi_reduction <maximumf>, %236, %cst_71 [1] : vector<16x2xf32> to vector<16xf32>
    %238 = vector.shape_cast %237 : vector<16xf32> to vector<16x1xf32>
    %239 = vector.broadcast %238 : vector<16x1xf32> to vector<16x2xf32>
    %240 = arith.subf %236, %239 : vector<16x2xf32>
    %241 = math.exp %240 : vector<16x2xf32>
    %cst_72 = arith.constant dense<0.000000e+00> : vector<16xf32>
    %242 = vector.multi_reduction <add>, %241, %cst_72 [1] : vector<16x2xf32> to vector<16xf32>
    %243 = vector.shape_cast %242 : vector<16xf32> to vector<16x1xf32>
    %244 = math.log %243 : vector<16x1xf32>
    %245 = arith.addf %244, %238 : vector<16x1xf32>
    %246 = vector.broadcast %245 : vector<16x1xf32> to vector<16x2xf32>
    %247 = arith.subf %236, %246 : vector<16x2xf32>
    %c0_73 = arith.constant 0 : index
    %c0_74 = arith.constant 0 : index
    %248 = vector.load %arg10[%c0_73, %c0_74] : memref<16x2xf32, #tpu.memory_space<vmem>>, vector<16x2xf32>
    tpu.vector_store %arg10[%c0_73, %c0_74], %247 {strides = array<i32>} : memref<16x2xf32, #tpu.memory_space<vmem>>, vector<16x2xf32>,
    return
  }
}

</mosaic_0001>

<llo_original>
// kernel: tpu_custom_call.1
$region0: #{tpu_custom_call.1}
  #allocation0 [shape = 'u32[]', space=smem, size = 0x4, offset = 0x4, fixed_abs, tag = 'smem constant byte address 0x4 - core index']
  #allocation1 [shape = 'u32[144,128]{1,0:T(1,128)}', space=vmem, size = 0x12000, scoped, tag = 'internal scratch']
  %s0 = inlined_call_operand.vmem [shape: s32[32,2], index: 0, kind: input, shape index: {}]
  %s1 = inlined_call_operand.vmem [shape: s32[1,32], index: 1, kind: input, shape index: {}]
  %s2 = inlined_call_operand.vmem [shape: f32[32,8], index: 2, kind: input, shape index: {}]
  %s3 = inlined_call_operand.vmem [shape: f32[16,2], index: 3, kind: input, shape index: {}]
  %s4 = inlined_call_operand.vmem [shape: f32[72,64], index: 4, kind: input, shape index: {}]
  %s5 = inlined_call_operand.vmem [shape: f32[64,96], index: 5, kind: input, shape index: {}]
  %s6 = inlined_call_operand.vmem [shape: f32[64,256], index: 6, kind: input, shape index: {}]
  %s7 = inlined_call_operand.vmem [shape: f32[1,256], index: 7, kind: input, shape index: {}]
  %s8 = inlined_call_operand.vmem [shape: f32[33,64], index: 8, kind: input, shape index: {}]
  %s9 = inlined_call_operand.hbm [shape: f32[64,66], index: 9, kind: input, shape index: {}]
  %s10 = inlined_call_operand.vmem [shape: f32[16,2], index: 10, kind: output, shape index: {}]
  %s11 = sld [smem:[#allocation0]]
  $region54: #{tpu_custom_call.1} parent=0
    _
  %s13 = ssub.s32 1, %s11
  %s14 = scalar_select 0, %s13, %s11
  $region1: #{tpu_custom_call.1} parent=0
    #allocation2 [shape = 'u8[32768]{0}', space=vmem, size = 0x8000, scoped, tag = 'input window, operand 9, single buffered']
    #allocation3 [shape = 's32[1]{0}', space=sflag, size = 0x4, scoped, tag = 'scoped memory for tpu_custom_call.1']
    %15 = vsyncpa [#allocation3], 0
    // Predicated region
    $region2: #{tpu_custom_call.1} parent=1 // pred_check
      _
    $region3: #{tpu_custom_call.1} parent=1 // pred_check_branch
      %17 = sbr.rel (0) target = $region5
    $region4: #{tpu_custom_call.1} parent=1 // pred_region
      _
    $region5: #{tpu_custom_call.1} parent=1 // pred_fallthru
      _
    // Predicated region
    $region6: #{tpu_custom_call.1} parent=1 // pred_check
      _
    $region7: #{tpu_custom_call.1} parent=1 // pred_check_branch
      %19 = sbr.rel (0) target = $region9
    $region8: #{tpu_custom_call.1} parent=1 // pred_region
      _
    $region9: #{tpu_custom_call.1} parent=1 // pred_fallthru
      _
    // Predicated region
    $region10: #{tpu_custom_call.1} parent=1 // pred_check
      _
    $region11: #{tpu_custom_call.1} parent=1 // pred_check_branch
      %21 = sbr.rel (0) target = $region13
    $region12: #{tpu_custom_call.1} parent=1 // pred_region
      _
    $region13: #{tpu_custom_call.1} parent=1 // pred_fallthru
      _
    // Predicated region
    $region14: #{tpu_custom_call.1} parent=1 // pred_check
      _
    $region15: #{tpu_custom_call.1} parent=1 // pred_check_branch
      %23 = sbr.rel (0) target = $region17
    $region16: #{tpu_custom_call.1} parent=1 // pred_region
      _
    $region17: #{tpu_custom_call.1} parent=1 // pred_fallthru
      _
    // Predicated region
    $region18: #{tpu_custom_call.1} parent=1 // pred_check
      _
    $region19: #{tpu_custom_call.1} parent=1 // pred_check_branch
      %25 = sbr.rel (0) target = $region21
    $region20: #{tpu_custom_call.1} parent=1 // pred_region
      _
    $region21: #{tpu_custom_call.1} parent=1 // pred_fallthru
      _
    // Predicated region
    $region22: #{tpu_custom_call.1} parent=1 // pred_check
      _
    $region23: #{tpu_custom_call.1} parent=1 // pred_check_branch
      %27 = sbr.rel (0) target = $region25
    $region24: #{tpu_custom_call.1} parent=1 // pred_region
      _
    $region25: #{tpu_custom_call.1} parent=1 // pred_fallthru
      _
    // Predicated region
    $region26: #{tpu_custom_call.1} parent=1 // pred_check
      _
    $region27: #{tpu_custom_call.1} parent=1 // pred_check_branch
      %29 = sbr.rel (0) target = $region29
    $region28: #{tpu_custom_call.1} parent=1 // pred_region
      _
    $region29: #{tpu_custom_call.1} parent=1 // pred_fallthru
      _
    // Predicated region
    $region30: #{tpu_custom_call.1} parent=1 // pred_check
      _
    $region31: #{tpu_custom_call.1} parent=1 // pred_check_branch
      %31 = sbr.rel (0) target = $region33
    $region32: #{tpu_custom_call.1} parent=1 // pred_region
      _
    $region33: #{tpu_custom_call.1} parent=1 // pred_fallthru
      _
    // Predicated region
    $region34: #{tpu_custom_call.1} parent=1 // pred_check
      _
    $region35: #{tpu_custom_call.1} parent=1 // pred_check_branch
      %33 = sbr.rel (0) target = $region37
    $region36: #{tpu_custom_call.1} parent=1 // pred_region
      _
    $region37: #{tpu_custom_call.1} parent=1 // pred_fallthru
      _
    // Predicated region
    $region38: #{tpu_custom_call.1} parent=1 // pred_check
      _
    $region39: #{tpu_custom_call.1} parent=1 // pred_check_branch
      %35 = sbr.rel (0) target = $region41
    $region40: #{tpu_custom_call.1} parent=1 // pred_region
      %s37 = ssub.s32 1024, 1024
      %38 = vsyncadd [#allocation3], %s37
      %s39 = sshll.u32 [#allocation2], 4
      %s40 = int_to_ptr.vmem [resolvable:$true] %s39
      %45 = dma.hbm_to_vmem [thread:$0]  %s9, 1024, %s40, [#allocation3], 128, 128, 8
    $region41: #{tpu_custom_call.1} parent=1 // pred_fallthru
      _
    // Predicated region
    $region42: #{tpu_custom_call.1} parent=1 // pred_check
      _
    $region43: #{tpu_custom_call.1} parent=1 // pred_check_branch
      %47 = sbr.rel (0) target = $region45
    $region44: #{tpu_custom_call.1} parent=1 // pred_region
      %48 = dma.done [#allocation3], 1024
    $region45: #{tpu_custom_call.1} parent=1 // pred_fallthru
      _
    %v49 = vld [vmem:[%s0] sm:$0xff]
    %v50 = vld [vmem:[%s0 + $0x8] sm:$0xff]
    %v51 = vld [vmem:[%s0 + $0x10] sm:$0xff]
    %v52 = vld [vmem:[%s0 + $0x18] sm:$0xff]
    %v53 = vld [vmem:[%s3] sm:$0xff]
    %v54 = vld [vmem:[%s3 + $0x8] sm:$0xff]
    %v55 = vlaneseq
    %v56 = vand.u32 %v55, 127
    %57 = vset.pattern.permute.xlu0 0
    %58 = vperm.xlu0 %57, %v49
    %v59 = vpop.permute.xlu0 %58
    %60 = vset.pattern.permute.xlu0 0
    %61 = vperm.xlu0 %60, %v50
    %v62 = vpop.permute.xlu0 %61
    %63 = vset.pattern.permute.xlu0 0
    %64 = vperm.xlu0 %63, %v51
    %v65 = vpop.permute.xlu0 %64
    %66 = vset.pattern.permute.xlu0 0
    %67 = vperm.xlu0 %66, %v52
    %v68 = vpop.permute.xlu0 %67
    %vm69 = vcmp.eq.s32.totalorder %v56, %v59
    %vm70 = vcmp.eq.s32.totalorder %v56, %v62
    %vm71 = vcmp.eq.s32.totalorder %v56, %v65
    %vm72 = vcmp.eq.s32.totalorder %v56, %v68
    %v73 = vsel %vm69, 1, 0
    %v74 = vsel %vm70, 1, 0
    %v75 = vsel %vm71, 1, 0
    %v76 = vsel %vm72, 1, 0
    %v77 = vcvt.s32.f32 %v73
    %v78 = vcvt.s32.f32 %v74
    %v79 = vcvt.s32.f32 %v75
    %v80 = vcvt.s32.f32 %v76
    %81 = vset.pattern.permute.xlu0 1
    %82 = vperm.xlu0 %81, %v49
    %v83 = vpop.permute.xlu0 %82
    %84 = vset.pattern.permute.xlu0 1
    %85 = vperm.xlu0 %84, %v50
    %v86 = vpop.permute.xlu0 %85
    %87 = vset.pattern.permute.xlu0 1
    %88 = vperm.xlu0 %87, %v51
    %v89 = vpop.permute.xlu0 %88
    %90 = vset.pattern.permute.xlu0 1
    %91 = vperm.xlu0 %90, %v52
    %v92 = vpop.permute.xlu0 %91
    %vm93 = vcmp.eq.s32.totalorder %v56, %v83
    %vm94 = vcmp.eq.s32.totalorder %v56, %v86
    %vm95 = vcmp.eq.s32.totalorder %v56, %v89
    %vm96 = vcmp.eq.s32.totalorder %v56, %v92
    %v97 = vsel %vm93, 1, 0
    %v98 = vsel %vm94, 1, 0
    %v99 = vsel %vm95, 1, 0
    %v100 = vsel %vm96, 1, 0
    %v101 = vcvt.s32.f32 %v97
    %v102 = vcvt.s32.f32 %v98
    %v103 = vcvt.s32.f32 %v99
    %v104 = vcvt.s32.f32 %v100
    %v105 = vlaneseq
    %v106 = vshrl.u32 %v105, 7
    %v107 = vadd.s32 %v106, 8
    %v108 = vld [vmem:[%s1] sm:$0x1]
    %v109 = vlaneseq
    %v110 = vshrl.u32 %v109, 7
    %v111 = vsub.s32 0, %v110
    %v112 = vrot.slane %v108, %v111
    %vm113 = vcmp.eq.s32.totalorder %v106, %v112
    %vm114 = vcmp.eq.s32.totalorder %v107, %v112
    %v115 = vsel %vm113, 1, 0
    %v116 = vsel %vm114, 1, 0
    %v117 = vcvt.s32.f32 %v115
    %v118 = vcvt.s32.f32 %v116
    %v119 = vld [vmem:[%s2] sm:$0xff]
    %v120 = vld [vmem:[%s2 + $0x8] sm:$0xff]
    %v121 = vld [vmem:[%s2 + $0x10] sm:$0xff]
    %v122 = vld [vmem:[%s2 + $0x18] sm:$0xff]
    %v123 = vld [vmem:[%s4] sm:$0xff]
    %v124 = vld [vmem:[%s4 + $0x8] sm:$0xff]
    %v125 = vld [vmem:[%s4 + $0x10] sm:$0xff]
    %v126 = vld [vmem:[%s4 + $0x18] sm:$0xff]
    %v127 = vld [vmem:[%s4 + $0x20] sm:$0xff]
    %v128 = vld [vmem:[%s4 + $0x28] sm:$0xff]
    %v129 = vld [vmem:[%s4 + $0x30] sm:$0xff]
    %v130 = vld [vmem:[%s4 + $0x38] sm:$0xff]
    %v131 = vld [vmem:[%s4 + $0x40] sm:$0xff]
    %v132 = vld [vmem:[%s5] sm:$0xff]
    %v133 = vld [vmem:[%s5 + $0x8] sm:$0xff]
    %v134 = vld [vmem:[%s5 + $0x10] sm:$0xff]
    %v135 = vld [vmem:[%s5 + $0x18] sm:$0xff]
    %v136 = vld [vmem:[%s5 + $0x20] sm:$0xff]
    %v137 = vld [vmem:[%s5 + $0x28] sm:$0xff]
    %v138 = vld [vmem:[%s5 + $0x30] sm:$0xff]
    %v139 = vld [vmem:[%s5 + $0x38] sm:$0xff]
    %v140 = vld [vmem:[%s6] sm:$0xff]
    %v141 = vld [vmem:[%s6 + $0x8] sm:$0xff]
    %v142 = vld [vmem:[%s6 + $0x10] sm:$0xff]
    %v143 = vld [vmem:[%s6 + $0x18] sm:$0xff]
    %v144 = vld [vmem:[%s6 + $0x20] sm:$0xff]
    %v145 = vld [vmem:[%s6 + $0x28] sm:$0xff]
    %v146 = vld [vmem:[%s6 + $0x30] sm:$0xff]
    %v147 = vld [vmem:[%s6 + $0x38] sm:$0xff]
    %v148 = vld [vmem:[%s6 + $0x40] sm:$0xff]
    %v149 = vld [vmem:[%s6 + $0x48] sm:$0xff]
    %v150 = vld [vmem:[%s6 + $0x50] sm:$0xff]
    %v151 = vld [vmem:[%s6 + $0x58] sm:$0xff]
    %v152 = vld [vmem:[%s6 + $0x60] sm:$0xff]
    %v153 = vld [vmem:[%s6 + $0x68] sm:$0xff]
    %v154 = vld [vmem:[%s6 + $0x70] sm:$0xff]
    %v155 = vld [vmem:[%s6 + $0x78] sm:$0xff]
    %v156 = vld [vmem:[%s7] sm:$0x3]
    %v158 = vlaneseq
    %v159 = vshrl.u32 %v158, 7
    %v160 = vsub.s32 0, %v159
    %v161 = vrot.slane %v156, %v160
    %v162 = vlaneseq
    %v163 = vshrl.u32 %v162, 7
    %v164 = vsub.s32 1, %v163
    %v165 = vrot.slane %v156, %v164
    %v168 = vld [vmem:[%s8] sm:$0xff]
    %v169 = vld [vmem:[%s8 + $0x8] sm:$0xff]
    %v170 = vld [vmem:[%s8 + $0x10] sm:$0xff]
    %v171 = vld [vmem:[%s8 + $0x18] sm:$0xff]
    %v172 = vld [vmem:[%s8 + $0x20] sm:$0x1]
    %v173 = vld [vmem:[#allocation2] sm:$0xff]
    %v174 = vld [vmem:[#allocation2 + $0x8] sm:$0xff]
    %v175 = vld [vmem:[#allocation2 + $0x10] sm:$0xff]
    %v176 = vld [vmem:[#allocation2 + $0x18] sm:$0xff]
    %v177 = vld [vmem:[#allocation2 + $0x20] sm:$0xff]
    %v178 = vld [vmem:[#allocation2 + $0x28] sm:$0xff]
    %v179 = vld [vmem:[#allocation2 + $0x30] sm:$0xff]
    %v180 = vld [vmem:[#allocation2 + $0x38] sm:$0xff]
    %182 = vset.pattern.permute.xlu0 1
    %183 = vperm.xlu0 %182, %v53
    %v184 = vpop.permute.xlu0 %183
    %187 = vset.pattern.permute.xlu0 1
    %188 = vperm.xlu0 %187, %v54
    %v189 = vpop.permute.xlu0 %188
    %v191 = vsub.f32 1.0, %v184
    %v192 = vsub.f32 1.0, %v189
    %vm193 = vcmask 64512
    %v195 = vsel %vm193, %v119, 0
    %v198 = vsel %vm193, %v120, 0
    %v201 = vsel %vm193, %v121, 0
    %v204 = vsel %vm193, %v122, 0
    %206 = vmatprep.subr.mxu0 0.0
    %207 = vmatpush1.msra.mxu0 0.0
    %208 = vmatprep.subr.mxu0 0.0
    %209 = vmatpush1.msra.mxu0 0.0
    %210 = vmatprep.subr.mxu0 0.0
    %211 = vmatpush1.msra.mxu0 0.0
    %212 = vmatprep.subr.mxu0 0.0
    %213 = vmatpush1.msra.mxu0 0.0
    %214 = vmatprep.subr.mxu0 0.0
    %215 = vmatpush1.msra.mxu0 0.0
    %216 = vmatprep.subr.mxu0 0.0
    %217 = vmatpush1.msra.mxu0 0.0
    %218 = vmatprep.subr.mxu0 0.0
    %219 = vmatpush1.msra.mxu0 0.0
    %220 = vmatprep.subr.mxu0 0.0
    %221 = vmatpush1.msra.mxu0 0.0
    %222 = vmatprep.subr.mxu0 0.0
    %223 = vmatpush1.msra.mxu0 0.0
    %224 = vmatprep.subr.mxu0 0.0
    %225 = vmatpush1.msra.mxu0 0.0
    %226 = vmatprep.subr.mxu0 0.0
    %227 = vmatpush1.msra.mxu0 0.0
    %228 = vmatprep.subr.mxu0 0.0
    %229 = vmatpush1.msra.mxu0 0.0
    %230 = vmatprep.subr.mxu0 0.0
    %231 = vmatpush1.msra.mxu0 0.0
    %232 = vmatprep.subr.mxu0 0.0
    %233 = vmatpush1.msra.mxu0 0.0
    %234 = vmatprep.subr.mxu0 0.0
    %235 = vmatpush1.msra.mxu0 0.0
    %236 = vmatprep.subr.mxu0 0.0
    %237 = vmatpush1.msra.mxu0 %v131
    %238 = vmatprep.subr.mxu0 0.0
    %239 = vmatpush2.msra.mxu0 0.0
    %240 = vmatprep.subr.mxu0 0.0
    %241 = vmatpush2.msra.mxu0 0.0
    %242 = vmatprep.subr.mxu0 0.0
    %243 = vmatpush2.msra.mxu0 0.0
    %244 = vmatprep.subr.mxu0 0.0
    %245 = vmatpush2.msra.mxu0 0.0
    %246 = vmatprep.subr.mxu0 0.0
    %247 = vmatpush2.msra.mxu0 0.0
    %248 = vmatprep.subr.mxu0 0.0
    %249 = vmatpush2.msra.mxu0 0.0
    %250 = vmatprep.subr.mxu0 0.0
    %251 = vmatpush2.msra.mxu0 0.0
    %252 = vmatprep.subr.mxu0 0.0
    %253 = vmatpush2.msra.mxu0 0.0
    %254 = vmatprep.subr.mxu0 0.0
    %255 = vmatpush2.msra.mxu0 0.0
    %256 = vmatprep.subr.mxu0 0.0
    %257 = vmatpush2.msra.mxu0 0.0
    %258 = vmatprep.subr.mxu0 0.0
    %259 = vmatpush2.msra.mxu0 0.0
    %260 = vmatprep.subr.mxu0 0.0
    %261 = vmatpush2.msra.mxu0 0.0
    %262 = vmatprep.subr.mxu0 0.0
    %263 = vmatpush2.msra.mxu0 0.0
    %264 = vmatprep.subr.mxu0 0.0
    %265 = vmatpush2.msra.mxu0 0.0
    %266 = vmatprep.subr.mxu0 0.0
    %267 = vmatpush2.msra.mxu0 0.0
    %268 = vmatprep.subr.mxu0 0.0
    %269 = vmatpush2.msra.mxu0 0.0
    %270 = vmatprep.mubr.f32.mxu0 0.0
    %271 = vmatmul.mubr.f32.gmra.mxu0 %v195
    %v272 = vpop.f32.mrf.mxu0
    %v273 = vadd.f32 0.0, %v272
    %v274 = vpop.f32.mrf.mxu0
    %275 = vmatprep.mubr.f32.mxu0 0.0
    %276 = vmatmul.mubr.f32.gmra.mxu0 %v198
    %v277 = vpop.f32.mrf.mxu0
    %v278 = vadd.f32 0.0, %v277
    %v279 = vpop.f32.mrf.mxu0
    %280 = vmatprep.mubr.f32.mxu0 0.0
    %281 = vmatmul.mubr.f32.gmra.mxu0 %v201
    %v282 = vpop.f32.mrf.mxu0
    %v283 = vadd.f32 0.0, %v282
    %v284 = vpop.f32.mrf.mxu0
    %285 = vmatprep.mubr.f32.mxu0 0.0
    %286 = vmatmul.mubr.f32.gmra.mxu0 %v204
    %v287 = vpop.f32.mrf.mxu0
    %v288 = vadd.f32 0.0, %v287
    %v289 = vpop.f32.mrf.mxu0
    %290 = vdwg.mxu0
    %v291 = vmax.f32 %v273, 0.0
    %v292 = vmax.f32 %v278, 0.0
    %v293 = vmax.f32 %v283, 0.0
    %v294 = vmax.f32 %v288, 0.0
    %vm295 = vcmask 523264
    %v297 = vsel %vm295, %v291, 0
    %v300 = vsel %vm295, %v292, 0
    %v303 = vsel %vm295, %v293, 0
    %v306 = vsel %vm295, %v294, 0
    %308 = vmatprep.subr.mxu0 0.0
    %309 = vmatpush1.msra.mxu0 0.0
    %310 = vmatprep.subr.mxu0 0.0
    %311 = vmatpush1.msra.mxu0 0.0
    %312 = vmatprep.subr.mxu0 0.0
    %313 = vmatpush1.msra.mxu0 0.0
    %314 = vmatprep.subr.mxu0 0.0
    %315 = vmatpush1.msra.mxu0 0.0
    %316 = vmatprep.subr.mxu0 0.0
    %317 = vmatpush1.msra.mxu0 0.0
    %318 = vmatprep.subr.mxu0 0.0
    %319 = vmatpush1.msra.mxu0 0.0
    %320 = vmatprep.subr.mxu0 0.0
    %321 = vmatpush1.msra.mxu0 0.0
    %322 = vmatprep.subr.mxu0 0.0
    %323 = vmatpush1.msra.mxu0 0.0
    %324 = vmatprep.subr.mxu0 0.0
    %325 = vmatpush1.msra.mxu0 %v139
    %326 = vmatprep.subr.mxu0 0.0
    %327 = vmatpush1.msra.mxu0 %v138
    %328 = vmatprep.subr.mxu0 0.0
    %329 = vmatpush1.msra.mxu0 %v137
    %330 = vmatprep.subr.mxu0 0.0
    %331 = vmatpush1.msra.mxu0 %v136
    %332 = vmatprep.subr.mxu0 0.0
    %333 = vmatpush1.msra.mxu0 %v135
    %334 = vmatprep.subr.mxu0 0.0
    %335 = vmatpush1.msra.mxu0 %v134
    %336 = vmatprep.subr.mxu0 0.0
    %337 = vmatpush1.msra.mxu0 %v133
    %338 = vmatprep.subr.mxu0 0.0
    %339 = vmatpush1.msra.mxu0 %v132
    %340 = vmatprep.subr.mxu0 0.0
    %341 = vmatpush2.msra.mxu0 0.0
    %342 = vmatprep.subr.mxu0 0.0
    %343 = vmatpush2.msra.mxu0 0.0
    %344 = vmatprep.subr.mxu0 0.0
    %345 = vmatpush2.msra.mxu0 0.0
    %346 = vmatprep.subr.mxu0 0.0
    %347 = vmatpush2.msra.mxu0 0.0
    %348 = vmatprep.subr.mxu0 0.0
    %349 = vmatpush2.msra.mxu0 0.0
    %350 = vmatprep.subr.mxu0 0.0
    %351 = vmatpush2.msra.mxu0 0.0
    %352 = vmatprep.subr.mxu0 0.0
    %353 = vmatpush2.msra.mxu0 0.0
    %354 = vmatprep.subr.mxu0 0.0
    %355 = vmatpush2.msra.mxu0 0.0
    %356 = vmatprep.subr.mxu0 0.0
    %357 = vmatpush2.msra.mxu0 0.0
    %358 = vmatprep.subr.mxu0 0.0
    %359 = vmatpush2.msra.mxu0 0.0
    %360 = vmatprep.subr.mxu0 0.0
    %361 = vmatpush2.msra.mxu0 0.0
    %362 = vmatprep.subr.mxu0 0.0
    %363 = vmatpush2.msra.mxu0 0.0
    %364 = vmatprep.subr.mxu0 0.0
    %365 = vmatpush2.msra.mxu0 0.0
    %366 = vmatprep.subr.mxu0 0.0
    %367 = vmatpush2.msra.mxu0 0.0
    %368 = vmatprep.subr.mxu0 0.0
    %369 = vmatpush2.msra.mxu0 0.0
    %370 = vmatprep.subr.mxu0 0.0
    %371 = vmatpush2.msra.mxu0 0.0
    %372 = vmatprep.mubr.f32.mxu0 0.0
    %373 = vmatmul.mubr.f32.gmra.mxu0 %v297
    %v374 = vpop.f32.mrf.mxu0
    %v375 = vadd.f32 0.0, %v374
    %v376 = vpop.f32.mrf.mxu0
    %377 = vmatprep.mubr.f32.mxu0 0.0
    %378 = vmatmul.mubr.f32.gmra.mxu0 %v300
    %v379 = vpop.f32.mrf.mxu0
    %v380 = vadd.f32 0.0, %v379
    %v381 = vpop.f32.mrf.mxu0
    %382 = vmatprep.mubr.f32.mxu0 0.0
    %383 = vmatmul.mubr.f32.gmra.mxu0 %v303
    %v384 = vpop.f32.mrf.mxu0
    %v385 = vadd.f32 0.0, %v384
    %v386 = vpop.f32.mrf.mxu0
    %387 = vmatprep.mubr.f32.mxu0 0.0
    %388 = vmatmul.mubr.f32.gmra.mxu0 %v306
    %v389 = vpop.f32.mrf.mxu0
    %v390 = vadd.f32 0.0, %v389
    %v391 = vpop.f32.mrf.mxu0
    %392 = vdwg.mxu0
    %v393 = vmax.f32 %v375, 0.0
    %v394 = vmax.f32 %v380, 0.0
    %v395 = vmax.f32 %v385, 0.0
    %v396 = vmax.f32 %v390, 0.0
    %405 = vrot.lane.b32.xlu0 %v132, 64
    %v406 = vpop.permute.xlu0 %405
    %407 = vrot.lane.b32.xlu0 %v133, 64
    %v408 = vpop.permute.xlu0 %407
    %409 = vrot.lane.b32.xlu0 %v134, 64
    %v410 = vpop.permute.xlu0 %409
    %411 = vrot.lane.b32.xlu0 %v135, 64
    %v412 = vpop.permute.xlu0 %411
    %413 = vrot.lane.b32.xlu0 %v136, 64
    %v414 = vpop.permute.xlu0 %413
    %415 = vrot.lane.b32.xlu0 %v137, 64
    %v416 = vpop.permute.xlu0 %415
    %417 = vrot.lane.b32.xlu0 %v138, 64
    %v418 = vpop.permute.xlu0 %417
    %419 = vrot.lane.b32.xlu0 %v139, 64
    %v420 = vpop.permute.xlu0 %419
    %v430 = vsel %vm295, %v393, 0
    %v433 = vsel %vm295, %v394, 0
    %v436 = vsel %vm295, %v395, 0
    %v439 = vsel %vm295, %v396, 0
    %441 = vmatprep.subr.mxu0 0.0
    %442 = vmatpush1.msra.mxu0 0.0
    %443 = vmatprep.subr.mxu0 0.0
    %444 = vmatpush1.msra.mxu0 0.0
    %445 = vmatprep.subr.mxu0 0.0
    %446 = vmatpush1.msra.mxu0 0.0
    %447 = vmatprep.subr.mxu0 0.0
    %448 = vmatpush1.msra.mxu0 0.0
    %449 = vmatprep.subr.mxu0 0.0
    %450 = vmatpush1.msra.mxu0 0.0
    %451 = vmatprep.subr.mxu0 0.0
    %452 = vmatpush1.msra.mxu0 0.0
    %453 = vmatprep.subr.mxu0 0.0
    %454 = vmatpush1.msra.mxu0 0.0
    %455 = vmatprep.subr.mxu0 0.0
    %456 = vmatpush1.msra.mxu0 0.0
    %457 = vmatprep.subr.mxu0 0.0
    %458 = vmatpush1.msra.mxu0 %v420
    %459 = vmatprep.subr.mxu0 0.0
    %460 = vmatpush1.msra.mxu0 %v418
    %461 = vmatprep.subr.mxu0 0.0
    %462 = vmatpush1.msra.mxu0 %v416
    %463 = vmatprep.subr.mxu0 0.0
    %464 = vmatpush1.msra.mxu0 %v414
    %465 = vmatprep.subr.mxu0 0.0
    %466 = vmatpush1.msra.mxu0 %v412
    %467 = vmatprep.subr.mxu0 0.0
    %468 = vmatpush1.msra.mxu0 %v410
    %469 = vmatprep.subr.mxu0 0.0
    %470 = vmatpush1.msra.mxu0 %v408
    %471 = vmatprep.subr.mxu0 0.0
    %472 = vmatpush1.msra.mxu0 %v406
    %473 = vmatprep.subr.mxu0 0.0
    %474 = vmatpush2.msra.mxu0 0.0
    %475 = vmatprep.subr.mxu0 0.0
    %476 = vmatpush2.msra.mxu0 0.0
    %477 = vmatprep.subr.mxu0 0.0
    %478 = vmatpush2.msra.mxu0 0.0
    %479 = vmatprep.subr.mxu0 0.0
    %480 = vmatpush2.msra.mxu0 0.0
    %481 = vmatprep.subr.mxu0 0.0
    %482 = vmatpush2.msra.mxu0 0.0
    %483 = vmatprep.subr.mxu0 0.0
    %484 = vmatpush2.msra.mxu0 0.0
    %485 = vmatprep.subr.mxu0 0.0
    %486 = vmatpush2.msra.mxu0 0.0
    %487 = vmatprep.subr.mxu0 0.0
    %488 = vmatpush2.msra.mxu0 0.0
    %489 = vmatprep.subr.mxu0 0.0
    %490 = vmatpush2.msra.mxu0 0.0
    %491 = vmatprep.subr.mxu0 0.0
    %492 = vmatpush2.msra.mxu0 0.0
    %493 = vmatprep.subr.mxu0 0.0
    %494 = vmatpush2.msra.mxu0 0.0
    %495 = vmatprep.subr.mxu0 0.0
    %496 = vmatpush2.msra.mxu0 0.0
    %497 = vmatprep.subr.mxu0 0.0
    %498 = vmatpush2.msra.mxu0 0.0
    %499 = vmatprep.subr.mxu0 0.0
    %500 = vmatpush2.msra.mxu0 0.0
    %501 = vmatprep.subr.mxu0 0.0
    %502 = vmatpush2.msra.mxu0 0.0
    %503 = vmatprep.subr.mxu0 0.0
    %504 = vmatpush2.msra.mxu0 0.0
    %505 = vmatprep.mubr.f32.mxu0 0.0
    %506 = vmatmul.mubr.f32.gmra.mxu0 %v430
    %v507 = vpop.f32.mrf.mxu0
    %v508 = vadd.f32 0.0, %v507
    %v509 = vpop.f32.mrf.mxu0
    %510 = vmatprep.mubr.f32.mxu0 0.0
    %511 = vmatmul.mubr.f32.gmra.mxu0 %v433
    %v512 = vpop.f32.mrf.mxu0
    %v513 = vadd.f32 0.0, %v512
    %v514 = vpop.f32.mrf.mxu0
    %515 = vmatprep.mubr.f32.mxu0 0.0
    %516 = vmatmul.mubr.f32.gmra.mxu0 %v436
    %v517 = vpop.f32.mrf.mxu0
    %v518 = vadd.f32 0.0, %v517
    %v519 = vpop.f32.mrf.mxu0
    %520 = vmatprep.mubr.f32.mxu0 0.0
    %521 = vmatmul.mubr.f32.gmra.mxu0 %v439
    %v522 = vpop.f32.mrf.mxu0
    %v523 = vadd.f32 0.0, %v522
    %v524 = vpop.f32.mrf.mxu0
    %525 = vdwg.mxu0
    %vm526 = vcmask 261120
    %v528 = vsel %vm526, %v117, 0
    %v531 = vsel %vm526, %v118, 0
    %533 = vmatprep.subr.mxu0 0.0
    %534 = vmatpush1.msra.mxu0 0.0
    %535 = vmatprep.subr.mxu0 0.0
    %536 = vmatpush1.msra.mxu0 0.0
    %537 = vmatprep.subr.mxu0 0.0
    %538 = vmatpush1.msra.mxu0 0.0
    %539 = vmatprep.subr.mxu0 0.0
    %540 = vmatpush1.msra.mxu0 0.0
    %541 = vmatprep.subr.mxu0 0.0
    %542 = vmatpush1.msra.mxu0 0.0
    %543 = vmatprep.subr.mxu0 0.0
    %544 = vmatpush1.msra.mxu0 0.0
    %545 = vmatprep.subr.mxu0 0.0
    %546 = vmatpush1.msra.mxu0 0.0
    %547 = vmatprep.subr.mxu0 0.0
    %548 = vmatpush1.msra.mxu0 0.0
    %549 = vmatprep.subr.mxu0 0.0
    %550 = vmatpush1.msra.mxu0 0.0
    %551 = vmatprep.subr.mxu0 0.0
    %552 = vmatpush1.msra.mxu0 0.0
    %553 = vmatprep.subr.mxu0 0.0
    %554 = vmatpush1.msra.mxu0 0.0
    %555 = vmatprep.subr.mxu0 0.0
    %556 = vmatpush1.msra.mxu0 0.0
    %557 = vmatprep.subr.mxu0 0.0
    %558 = vmatpush1.msra.mxu0 %v523
    %559 = vmatprep.subr.mxu0 0.0
    %560 = vmatpush1.msra.mxu0 %v518
    %561 = vmatprep.subr.mxu0 0.0
    %562 = vmatpush1.msra.mxu0 %v513
    %563 = vmatprep.subr.mxu0 0.0
    %564 = vmatpush1.msra.mxu0 %v508
    %565 = vmatprep.subr.mxu0 0.0
    %566 = vmatpush2.msra.mxu0 0.0
    %567 = vmatprep.subr.mxu0 0.0
    %568 = vmatpush2.msra.mxu0 0.0
    %569 = vmatprep.subr.mxu0 0.0
    %570 = vmatpush2.msra.mxu0 0.0
    %571 = vmatprep.subr.mxu0 0.0
    %572 = vmatpush2.msra.mxu0 0.0
    %573 = vmatprep.subr.mxu0 0.0
    %574 = vmatpush2.msra.mxu0 0.0
    %575 = vmatprep.subr.mxu0 0.0
    %576 = vmatpush2.msra.mxu0 0.0
    %577 = vmatprep.subr.mxu0 0.0
    %578 = vmatpush2.msra.mxu0 0.0
    %579 = vmatprep.subr.mxu0 0.0
    %580 = vmatpush2.msra.mxu0 0.0
    %581 = vmatprep.subr.mxu0 0.0
    %582 = vmatpush2.msra.mxu0 0.0
    %583 = vmatprep.subr.mxu0 0.0
    %584 = vmatpush2.msra.mxu0 0.0
    %585 = vmatprep.subr.mxu0 0.0
    %586 = vmatpush2.msra.mxu0 0.0
    %587 = vmatprep.subr.mxu0 0.0
    %588 = vmatpush2.msra.mxu0 0.0
    %589 = vmatprep.subr.mxu0 0.0
    %590 = vmatpush2.msra.mxu0 0.0
    %591 = vmatprep.subr.mxu0 0.0
    %592 = vmatpush2.msra.mxu0 0.0
    %593 = vmatprep.subr.mxu0 0.0
    %594 = vmatpush2.msra.mxu0 0.0
    %595 = vmatprep.subr.mxu0 0.0
    %596 = vmatpush2.msra.mxu0 0.0
    %597 = vmatprep.mubr.f32.mxu0 0.0
    %598 = vmatmul.mubr.f32.gmra.mxu0 %v528
    %v599 = vpop.f32.mrf.mxu0
    %v600 = vadd.f32 0.0, %v599
    %v601 = vpop.f32.mrf.mxu0
    %602 = vmatprep.mubr.f32.mxu0 0.0
    %603 = vmatmul.mubr.f32.gmra.mxu0 %v531
    %v604 = vpop.f32.mrf.mxu0
    %v605 = vadd.f32 0.0, %v604
    %v606 = vpop.f32.mrf.mxu0
    %607 = vdwg.mxu0
    %v609 = vsel %vm526, %v600, 0
    %v612 = vsel %vm526, %v605, 0
    %614 = vmatprep.subr.mxu0 0.0
    %615 = vmatpush1.msra.mxu0 0.0
    %616 = vmatprep.subr.mxu0 0.0
    %617 = vmatpush1.msra.mxu0 0.0
    %618 = vmatprep.subr.mxu0 0.0
    %619 = vmatpush1.msra.mxu0 0.0
    %620 = vmatprep.subr.mxu0 0.0
    %621 = vmatpush1.msra.mxu0 0.0
    %622 = vmatprep.subr.mxu0 0.0
    %623 = vmatpush1.msra.mxu0 0.0
    %624 = vmatprep.subr.mxu0 0.0
    %625 = vmatpush1.msra.mxu0 0.0
    %626 = vmatprep.subr.mxu0 0.0
    %627 = vmatpush1.msra.mxu0 0.0
    %628 = vmatprep.subr.mxu0 0.0
    %629 = vmatpush1.msra.mxu0 0.0
    %630 = vmatprep.subr.mxu0 0.0
    %631 = vmatpush1.msra.mxu0 0.0
    %632 = vmatprep.subr.mxu0 0.0
    %633 = vmatpush1.msra.mxu0 0.0
    %634 = vmatprep.subr.mxu0 0.0
    %635 = vmatpush1.msra.mxu0 0.0
    %636 = vmatprep.subr.mxu0 0.0
    %637 = vmatpush1.msra.mxu0 0.0
    %638 = vmatprep.subr.mxu0 %v147
    %639 = vmatpush1.msra.mxu0 %v146
    %640 = vmatprep.subr.mxu0 %v145
    %641 = vmatpush1.msra.mxu0 %v144
    %642 = vmatprep.subr.mxu0 %v143
    %643 = vmatpush1.msra.mxu0 %v142
    %644 = vmatprep.subr.mxu0 %v141
    %645 = vmatpush1.msra.mxu0 %v140
    %646 = vmatprep.subr.mxu0 0.0
    %647 = vmatpush2.msra.mxu0 0.0
    %648 = vmatprep.subr.mxu0 0.0
    %649 = vmatpush2.msra.mxu0 0.0
    %650 = vmatprep.subr.mxu0 0.0
    %651 = vmatpush2.msra.mxu0 0.0
    %652 = vmatprep.subr.mxu0 0.0
    %653 = vmatpush2.msra.mxu0 0.0
    %654 = vmatprep.subr.mxu0 0.0
    %655 = vmatpush2.msra.mxu0 0.0
    %656 = vmatprep.subr.mxu0 0.0
    %657 = vmatpush2.msra.mxu0 0.0
    %658 = vmatprep.subr.mxu0 0.0
    %659 = vmatpush2.msra.mxu0 0.0
    %660 = vmatprep.subr.mxu0 0.0
    %661 = vmatpush2.msra.mxu0 0.0
    %662 = vmatprep.subr.mxu0 0.0
    %663 = vmatpush2.msra.mxu0 0.0
    %664 = vmatprep.subr.mxu0 0.0
    %665 = vmatpush2.msra.mxu0 0.0
    %666 = vmatprep.subr.mxu0 0.0
    %667 = vmatpush2.msra.mxu0 0.0
    %668 = vmatprep.subr.mxu0 0.0
    %669 = vmatpush2.msra.mxu0 0.0
    %670 = vmatprep.subr.mxu0 0.0
    %671 = vmatpush2.msra.mxu0 0.0
    %672 = vmatprep.subr.mxu0 0.0
    %673 = vmatpush2.msra.mxu0 0.0
    %674 = vmatprep.subr.mxu0 0.0
    %675 = vmatpush2.msra.mxu0 0.0
    %676 = vmatprep.subr.mxu0 0.0
    %677 = vmatpush2.msra.mxu0 0.0
    %678 = vmatprep.mubr.f32.mxu0 0.0
    %679 = vmatmul.mubr.f32.gmra.mxu0 %v609
    %v680 = vpop.f32.mrf.mxu0
    %v681 = vadd.f32 %v161, %v680
    %v682 = vpop.f32.mrf.mxu0
    %v683 = vadd.f32 %v165, %v682
    %684 = vmatprep.mubr.f32.mxu0 0.0
    %685 = vmatmul.mubr.f32.gmra.mxu0 %v612
    %v686 = vpop.f32.mrf.mxu0
    %v687 = vadd.f32 %v161, %v686
    %v688 = vpop.f32.mrf.mxu0
    %v689 = vadd.f32 %v165, %v688
    %690 = vdwg.mxu0
    %v691 = vxor.u32 %v681, 2147483648
    %v692 = vxor.u32 %v687, 2147483648
    %v693 = vmul.f32 %v691, 1.442695
    %v694 = vpow.pop %v693
    %v695 = vmul.f32 %v692, 1.442695
    %v696 = vpow.pop %v695
    %v697 = vadd.f32 %v694, 1.0
    %v698 = vadd.f32 %v696, 1.0
    %v699 = vrcp.pop %v697
    %v700 = vmul.f32 1.0, %v699
    %v701 = vrcp.pop %v698
    %v702 = vmul.f32 1.0, %v701
    %705 = vrot.lane.b32.xlu0 %v683, 64
    %v706 = vpop.permute.xlu0 %705
    %707 = vrot.lane.b32.xlu0 %v689, 64
    %v708 = vpop.permute.xlu0 %707
    %v711 = vmul.f32 %v700, %v706
    %v712 = vmul.f32 %v702, %v708
    %v713 = vadd.f32 %v683, %v711
    %v714 = vadd.f32 %v689, %v712
    %v715 = vtanh.pop %v713
    %v716 = vtanh.pop %v714
    %717 = vrot.lane.b32.xlu0 %v683, 96
    %v718 = vpop.permute.xlu0 %717
    %719 = vrot.lane.b32.xlu0 %v689, 96
    %v720 = vpop.permute.xlu0 %719
    %v723 = vmul.f32 %v700, %v718
    %v724 = vmul.f32 %v702, %v720
    %727 = vrot.lane.b32.xlu0 %v723, 96
    %v728 = vpop.permute.xlu0 %727
    %729 = vrot.lane.b32.xlu0 %v724, 96
    %v730 = vpop.permute.xlu0 %729
    %v733 = vadd.f32 %v683, %v728
    %v734 = vadd.f32 %v689, %v730
    %v735 = vtanh.pop %v733
    %v736 = vtanh.pop %v734
    %v737 = vsub.f32 1.0, %v700
    %v738 = vsub.f32 1.0, %v702
    %741 = vrot.lane.b32.xlu0 %v715, 32
    %v742 = vpop.permute.xlu0 %741
    %743 = vrot.lane.b32.xlu0 %v716, 32
    %v744 = vpop.permute.xlu0 %743
    %v747 = vmul.f32 %v737, %v742
    %v748 = vmul.f32 %v738, %v744
    %751 = vrot.lane.b32.xlu0 %v735, 64
    %v752 = vpop.permute.xlu0 %751
    %753 = vrot.lane.b32.xlu0 %v736, 64
    %v754 = vpop.permute.xlu0 %753
    %v757 = vmul.f32 %v737, %v752
    %v758 = vmul.f32 %v738, %v754
    %v759 = vmul.f32 %v184, %v747
    %v760 = vmul.f32 %v189, %v748
    %v761 = vmul.f32 %v191, %v757
    %v762 = vmul.f32 %v192, %v758
    %765 = vrot.lane.b32.xlu0 %v761, 64
    %v766 = vpop.permute.xlu0 %765
    %767 = vrot.lane.b32.xlu0 %v762, 64
    %v768 = vpop.permute.xlu0 %767
    %v771 = vadd.f32 %v759, %v766
    %v772 = vadd.f32 %v760, %v768
    %775 = vrot.lane.b32.xlu0 %v771, 96
    %v776 = vpop.permute.xlu0 %775
    %777 = vrot.lane.b32.xlu0 %v772, 96
    %v778 = vpop.permute.xlu0 %777
    %vm781 = vcmask 130048
    %v783 = vsel %vm781, %v77, 0
    %v786 = vsel %vm781, %v78, 0
    %v789 = vsel %vm781, %v79, 0
    %v792 = vsel %vm781, %v80, 0
    %794 = vmatprep.subr.mxu0 0.0
    %795 = vmatpush1.msra.mxu0 0.0
    %796 = vmatprep.subr.mxu0 0.0
    %797 = vmatpush1.msra.mxu0 0.0
    %798 = vmatprep.subr.mxu0 0.0
    %799 = vmatpush1.msra.mxu0 0.0
    %800 = vmatprep.subr.mxu0 0.0
    %801 = vmatpush1.msra.mxu0 0.0
    %802 = vmatprep.subr.mxu0 0.0
    %803 = vmatpush1.msra.mxu0 0.0
    %804 = vmatprep.subr.mxu0 0.0
    %805 = vmatpush1.msra.mxu0 0.0
    %806 = vmatprep.subr.mxu0 0.0
    %807 = vmatpush1.msra.mxu0 0.0
    %808 = vmatprep.subr.mxu0 0.0
    %809 = vmatpush1.msra.mxu0 0.0
    %810 = vmatprep.subr.mxu0 0.0
    %811 = vmatpush1.msra.mxu0 0.0
    %812 = vmatprep.subr.mxu0 0.0
    %813 = vmatpush1.msra.mxu0 0.0
    %814 = vmatprep.subr.mxu0 0.0
    %815 = vmatpush1.msra.mxu0 0.0
    %816 = vmatprep.subr.mxu0 0.0
    %817 = vmatpush1.msra.mxu0 0.0
    %818 = vmatprep.subr.mxu0 0.0
    %819 = vmatpush1.msra.mxu0 0.0
    %820 = vmatprep.subr.mxu0 0.0
    %821 = vmatpush1.msra.mxu0 0.0
    %822 = vmatprep.subr.mxu0 0.0
    %823 = vmatpush1.msra.mxu0 %v778
    %824 = vmatprep.subr.mxu0 0.0
    %825 = vmatpush1.msra.mxu0 %v776
    %826 = vmatprep.subr.mxu0 0.0
    %827 = vmatpush2.msra.mxu0 0.0
    %828 = vmatprep.subr.mxu0 0.0
    %829 = vmatpush2.msra.mxu0 0.0
    %830 = vmatprep.subr.mxu0 0.0
    %831 = vmatpush2.msra.mxu0 0.0
    %832 = vmatprep.subr.mxu0 0.0
    %833 = vmatpush2.msra.mxu0 0.0
    %834 = vmatprep.subr.mxu0 0.0
    %835 = vmatpush2.msra.mxu0 0.0
    %836 = vmatprep.subr.mxu0 0.0
    %837 = vmatpush2.msra.mxu0 0.0
    %838 = vmatprep.subr.mxu0 0.0
    %839 = vmatpush2.msra.mxu0 0.0
    %840 = vmatprep.subr.mxu0 0.0
    %841 = vmatpush2.msra.mxu0 0.0
    %842 = vmatprep.subr.mxu0 0.0
    %843 = vmatpush2.msra.mxu0 0.0
    %844 = vmatprep.subr.mxu0 0.0
    %845 = vmatpush2.msra.mxu0 0.0
    %846 = vmatprep.subr.mxu0 0.0
    %847 = vmatpush2.msra.mxu0 0.0
    %848 = vmatprep.subr.mxu0 0.0
    %849 = vmatpush2.msra.mxu0 0.0
    %850 = vmatprep.subr.mxu0 0.0
    %851 = vmatpush2.msra.mxu0 0.0
    %852 = vmatprep.subr.mxu0 0.0
    %853 = vmatpush2.msra.mxu0 0.0
    %854 = vmatprep.subr.mxu0 0.0
    %855 = vmatpush2.msra.mxu0 0.0
    %856 = vmatprep.subr.mxu0 0.0
    %857 = vmatpush2.msra.mxu0 0.0
    %858 = vmatprep.mubr.f32.mxu0 0.0
    %859 = vmatmul.mubr.f32.gmra.mxu0 %v783
    %v860 = vpop.f32.mrf.mxu0
    %v861 = vadd.f32 0.0, %v860
    %v862 = vpop.f32.mrf.mxu0
    %863 = vmatprep.mubr.f32.mxu0 0.0
    %864 = vmatmul.mubr.f32.gmra.mxu0 %v786
    %v865 = vpop.f32.mrf.mxu0
    %v866 = vadd.f32 0.0, %v865
    %v867 = vpop.f32.mrf.mxu0
    %868 = vmatprep.mubr.f32.mxu0 0.0
    %869 = vmatmul.mubr.f32.gmra.mxu0 %v789
    %v870 = vpop.f32.mrf.mxu0
    %v871 = vadd.f32 0.0, %v870
    %v872 = vpop.f32.mrf.mxu0
    %873 = vmatprep.mubr.f32.mxu0 0.0
    %874 = vmatmul.mubr.f32.gmra.mxu0 %v792
    %v875 = vpop.f32.mrf.mxu0
    %v876 = vadd.f32 0.0, %v875
    %v877 = vpop.f32.mrf.mxu0
    %878 = vdwg.mxu0
    %v880 = vsel %vm781, %v101, 0
    %v883 = vsel %vm781, %v102, 0
    %v886 = vsel %vm781, %v103, 0
    %v889 = vsel %vm781, %v104, 0
    %891 = vmatprep.subr.mxu0 0.0
    %892 = vmatpush1.msra.mxu0 0.0
    %893 = vmatprep.subr.mxu0 0.0
    %894 = vmatpush1.msra.mxu0 0.0
    %895 = vmatprep.subr.mxu0 0.0
    %896 = vmatpush1.msra.mxu0 0.0
    %897 = vmatprep.subr.mxu0 0.0
    %898 = vmatpush1.msra.mxu0 0.0
    %899 = vmatprep.subr.mxu0 0.0
    %900 = vmatpush1.msra.mxu0 0.0
    %901 = vmatprep.subr.mxu0 0.0
    %902 = vmatpush1.msra.mxu0 0.0
    %903 = vmatprep.subr.mxu0 0.0
    %904 = vmatpush1.msra.mxu0 0.0
    %905 = vmatprep.subr.mxu0 0.0
    %906 = vmatpush1.msra.mxu0 0.0
    %907 = vmatprep.subr.mxu0 0.0
    %908 = vmatpush1.msra.mxu0 0.0
    %909 = vmatprep.subr.mxu0 0.0
    %910 = vmatpush1.msra.mxu0 0.0
    %911 = vmatprep.subr.mxu0 0.0
    %912 = vmatpush1.msra.mxu0 0.0
    %913 = vmatprep.subr.mxu0 0.0
    %914 = vmatpush1.msra.mxu0 0.0
    %915 = vmatprep.subr.mxu0 0.0
    %916 = vmatpush1.msra.mxu0 0.0
    %917 = vmatprep.subr.mxu0 0.0
    %918 = vmatpush1.msra.mxu0 0.0
    %919 = vmatprep.subr.mxu0 0.0
    %920 = vmatpush1.msra.mxu0 %v778
    %921 = vmatprep.subr.mxu0 0.0
    %922 = vmatpush1.msra.mxu0 %v776
    %923 = vmatprep.subr.mxu0 0.0
    %924 = vmatpush2.msra.mxu0 0.0
    %925 = vmatprep.subr.mxu0 0.0
    %926 = vmatpush2.msra.mxu0 0.0
    %927 = vmatprep.subr.mxu0 0.0
    %928 = vmatpush2.msra.mxu0 0.0
    %929 = vmatprep.subr.mxu0 0.0
    %930 = vmatpush2.msra.mxu0 0.0
    %931 = vmatprep.subr.mxu0 0.0
    %932 = vmatpush2.msra.mxu0 0.0
    %933 = vmatprep.subr.mxu0 0.0
    %934 = vmatpush2.msra.mxu0 0.0
    %935 = vmatprep.subr.mxu0 0.0
    %936 = vmatpush2.msra.mxu0 0.0
    %937 = vmatprep.subr.mxu0 0.0
    %938 = vmatpush2.msra.mxu0 0.0
    %939 = vmatprep.subr.mxu0 0.0
    %940 = vmatpush2.msra.mxu0 0.0
    %941 = vmatprep.subr.mxu0 0.0
    %942 = vmatpush2.msra.mxu0 0.0
    %943 = vmatprep.subr.mxu0 0.0
    %944 = vmatpush2.msra.mxu0 0.0
    %945 = vmatprep.subr.mxu0 0.0
    %946 = vmatpush2.msra.mxu0 0.0
    %947 = vmatprep.subr.mxu0 0.0
    %948 = vmatpush2.msra.mxu0 0.0
    %949 = vmatprep.subr.mxu0 0.0
    %950 = vmatpush2.msra.mxu0 0.0
    %951 = vmatprep.subr.mxu0 0.0
    %952 = vmatpush2.msra.mxu0 0.0
    %953 = vmatprep.subr.mxu0 0.0
    %954 = vmatpush2.msra.mxu0 0.0
    %955 = vmatprep.mubr.f32.mxu0 0.0
    %956 = vmatmul.mubr.f32.gmra.mxu0 %v880
    %v957 = vpop.f32.mrf.mxu0
    %v958 = vadd.f32 0.0, %v957
    %v959 = vpop.f32.mrf.mxu0
    %960 = vmatprep.mubr.f32.mxu0 0.0
    %961 = vmatmul.mubr.f32.gmra.mxu0 %v883
    %v962 = vpop.f32.mrf.mxu0
    %v963 = vadd.f32 0.0, %v962
    %v964 = vpop.f32.mrf.mxu0
    %965 = vmatprep.mubr.f32.mxu0 0.0
    %966 = vmatmul.mubr.f32.gmra.mxu0 %v886
    %v967 = vpop.f32.mrf.mxu0
    %v968 = vadd.f32 0.0, %v967
    %v969 = vpop.f32.mrf.mxu0
    %970 = vmatprep.mubr.f32.mxu0 0.0
    %971 = vmatmul.mubr.f32.gmra.mxu0 %v889
    %v972 = vpop.f32.mrf.mxu0
    %v973 = vadd.f32 0.0, %v972
    %v974 = vpop.f32.mrf.mxu0
    %975 = vdwg.mxu0
    %v977 = vsel %vm526, %v861, 0
    %v980 = vsel %vm526, %v866, 0
    %v983 = vsel %vm526, %v871, 0
    %v986 = vsel %vm526, %v876, 0
    %988 = vmatprep.subr.mxu0 0.0
    %989 = vmatpush1.msra.mxu0 0.0
    %990 = vmatprep.subr.mxu0 0.0
    %991 = vmatpush1.msra.mxu0 0.0
    %992 = vmatprep.subr.mxu0 0.0
    %993 = vmatpush1.msra.mxu0 0.0
    %994 = vmatprep.subr.mxu0 0.0
    %995 = vmatpush1.msra.mxu0 0.0
    %996 = vmatprep.subr.mxu0 0.0
    %997 = vmatpush1.msra.mxu0 0.0
    %998 = vmatprep.subr.mxu0 0.0
    %999 = vmatpush1.msra.mxu0 0.0
    %1000 = vmatprep.subr.mxu0 0.0
    %1001 = vmatpush1.msra.mxu0 0.0
    %1002 = vmatprep.subr.mxu0 0.0
    %1003 = vmatpush1.msra.mxu0 0.0
    %1004 = vmatprep.subr.mxu0 0.0
    %1005 = vmatpush1.msra.mxu0 0.0
    %1006 = vmatprep.subr.mxu0 0.0
    %1007 = vmatpush1.msra.mxu0 0.0
    %1008 = vmatprep.subr.mxu0 0.0
    %1009 = vmatpush1.msra.mxu0 0.0
    %1010 = vmatprep.subr.mxu0 0.0
    %1011 = vmatpush1.msra.mxu0 0.0
    %1012 = vmatprep.subr.mxu0 0.0
    %1013 = vmatpush1.msra.mxu0 %v126
    %1014 = vmatprep.subr.mxu0 0.0
    %1015 = vmatpush1.msra.mxu0 %v125
    %1016 = vmatprep.subr.mxu0 0.0
    %1017 = vmatpush1.msra.mxu0 %v124
    %1018 = vmatprep.subr.mxu0 0.0
    %1019 = vmatpush1.msra.mxu0 %v123
    %1020 = vmatprep.subr.mxu0 0.0
    %1021 = vmatpush2.msra.mxu0 0.0
    %1022 = vmatprep.subr.mxu0 0.0
    %1023 = vmatpush2.msra.mxu0 0.0
    %1024 = vmatprep.subr.mxu0 0.0
    %1025 = vmatpush2.msra.mxu0 0.0
    %1026 = vmatprep.subr.mxu0 0.0
    %1027 = vmatpush2.msra.mxu0 0.0
    %1028 = vmatprep.subr.mxu0 0.0
    %1029 = vmatpush2.msra.mxu0 0.0
    %1030 = vmatprep.subr.mxu0 0.0
    %1031 = vmatpush2.msra.mxu0 0.0
    %1032 = vmatprep.subr.mxu0 0.0
    %1033 = vmatpush2.msra.mxu0 0.0
    %1034 = vmatprep.subr.mxu0 0.0
    %1035 = vmatpush2.msra.mxu0 0.0
    %1036 = vmatprep.subr.mxu0 0.0
    %1037 = vmatpush2.msra.mxu0 0.0
    %1038 = vmatprep.subr.mxu0 0.0
    %1039 = vmatpush2.msra.mxu0 0.0
    %1040 = vmatprep.subr.mxu0 0.0
    %1041 = vmatpush2.msra.mxu0 0.0
    %1042 = vmatprep.subr.mxu0 0.0
    %1043 = vmatpush2.msra.mxu0 0.0
    %1044 = vmatprep.subr.mxu0 0.0
    %1045 = vmatpush2.msra.mxu0 0.0
    %1046 = vmatprep.subr.mxu0 0.0
    %1047 = vmatpush2.msra.mxu0 0.0
    %1048 = vmatprep.subr.mxu0 0.0
    %1049 = vmatpush2.msra.mxu0 0.0
    %1050 = vmatprep.subr.mxu0 0.0
    %1051 = vmatpush2.msra.mxu0 0.0
    %1052 = vmatprep.mubr.f32.mxu0 0.0
    %1053 = vmatmul.mubr.f32.gmra.mxu0 %v977
    %v1054 = vpop.f32.mrf.mxu0
    %v1055 = vadd.f32 0.0, %v1054
    %v1056 = vpop.f32.mrf.mxu0
    %1057 = vmatprep.mubr.f32.mxu0 0.0
    %1058 = vmatmul.mubr.f32.gmra.mxu0 %v980
    %v1059 = vpop.f32.mrf.mxu0
    %v1060 = vadd.f32 0.0, %v1059
    %v1061 = vpop.f32.mrf.mxu0
    %1062 = vmatprep.mubr.f32.mxu0 0.0
    %1063 = vmatmul.mubr.f32.gmra.mxu0 %v983
    %v1064 = vpop.f32.mrf.mxu0
    %v1065 = vadd.f32 0.0, %v1064
    %v1066 = vpop.f32.mrf.mxu0
    %1067 = vmatprep.mubr.f32.mxu0 0.0
    %1068 = vmatmul.mubr.f32.gmra.mxu0 %v986
    %v1069 = vpop.f32.mrf.mxu0
    %v1070 = vadd.f32 0.0, %v1069
    %v1071 = vpop.f32.mrf.mxu0
    %1072 = vdwg.mxu0
    %v1073 = vadd.f32 %v273, %v1055
    %v1074 = vadd.f32 %v278, %v1060
    %v1075 = vadd.f32 %v283, %v1065
    %v1076 = vadd.f32 %v288, %v1070
    %v1078 = vsel %vm526, %v958, 0
    %v1081 = vsel %vm526, %v963, 0
    %v1084 = vsel %vm526, %v968, 0
    %v1087 = vsel %vm526, %v973, 0
    %1089 = vmatprep.subr.mxu0 0.0
    %1090 = vmatpush1.msra.mxu0 0.0
    %1091 = vmatprep.subr.mxu0 0.0
    %1092 = vmatpush1.msra.mxu0 0.0
    %1093 = vmatprep.subr.mxu0 0.0
    %1094 = vmatpush1.msra.mxu0 0.0
    %1095 = vmatprep.subr.mxu0 0.0
    %1096 = vmatpush1.msra.mxu0 0.0
    %1097 = vmatprep.subr.mxu0 0.0
    %1098 = vmatpush1.msra.mxu0 0.0
    %1099 = vmatprep.subr.mxu0 0.0
    %1100 = vmatpush1.msra.mxu0 0.0
    %1101 = vmatprep.subr.mxu0 0.0
    %1102 = vmatpush1.msra.mxu0 0.0
    %1103 = vmatprep.subr.mxu0 0.0
    %1104 = vmatpush1.msra.mxu0 0.0
    %1105 = vmatprep.subr.mxu0 0.0
    %1106 = vmatpush1.msra.mxu0 0.0
    %1107 = vmatprep.subr.mxu0 0.0
    %1108 = vmatpush1.msra.mxu0 0.0
    %1109 = vmatprep.subr.mxu0 0.0
    %1110 = vmatpush1.msra.mxu0 0.0
    %1111 = vmatprep.subr.mxu0 0.0
    %1112 = vmatpush1.msra.mxu0 0.0
    %1113 = vmatprep.subr.mxu0 0.0
    %1114 = vmatpush1.msra.mxu0 %v130
    %1115 = vmatprep.subr.mxu0 0.0
    %1116 = vmatpush1.msra.mxu0 %v129
    %1117 = vmatprep.subr.mxu0 0.0
    %1118 = vmatpush1.msra.mxu0 %v128
    %1119 = vmatprep.subr.mxu0 0.0
    %1120 = vmatpush1.msra.mxu0 %v127
    %1121 = vmatprep.subr.mxu0 0.0
    %1122 = vmatpush2.msra.mxu0 0.0
    %1123 = vmatprep.subr.mxu0 0.0
    %1124 = vmatpush2.msra.mxu0 0.0
    %1125 = vmatprep.subr.mxu0 0.0
    %1126 = vmatpush2.msra.mxu0 0.0
    %1127 = vmatprep.subr.mxu0 0.0
    %1128 = vmatpush2.msra.mxu0 0.0
    %1129 = vmatprep.subr.mxu0 0.0
    %1130 = vmatpush2.msra.mxu0 0.0
    %1131 = vmatprep.subr.mxu0 0.0
    %1132 = vmatpush2.msra.mxu0 0.0
    %1133 = vmatprep.subr.mxu0 0.0
    %1134 = vmatpush2.msra.mxu0 0.0
    %1135 = vmatprep.subr.mxu0 0.0
    %1136 = vmatpush2.msra.mxu0 0.0
    %1137 = vmatprep.subr.mxu0 0.0
    %1138 = vmatpush2.msra.mxu0 0.0
    %1139 = vmatprep.subr.mxu0 0.0
    %1140 = vmatpush2.msra.mxu0 0.0
    %1141 = vmatprep.subr.mxu0 0.0
    %1142 = vmatpush2.msra.mxu0 0.0
    %1143 = vmatprep.subr.mxu0 0.0
    %1144 = vmatpush2.msra.mxu0 0.0
    %1145 = vmatprep.subr.mxu0 0.0
    %1146 = vmatpush2.msra.mxu0 0.0
    %1147 = vmatprep.subr.mxu0 0.0
    %1148 = vmatpush2.msra.mxu0 0.0
    %1149 = vmatprep.subr.mxu0 0.0
    %1150 = vmatpush2.msra.mxu0 0.0
    %1151 = vmatprep.subr.mxu0 0.0
    %1152 = vmatpush2.msra.mxu0 0.0
    %1153 = vmatprep.mubr.f32.mxu0 0.0
    %1154 = vmatmul.mubr.f32.gmra.mxu0 %v1078
    %v1155 = vpop.f32.mrf.mxu0
    %v1156 = vadd.f32 0.0, %v1155
    %v1157 = vpop.f32.mrf.mxu0
    %1158 = vmatprep.mubr.f32.mxu0 0.0
    %1159 = vmatmul.mubr.f32.gmra.mxu0 %v1081
    %v1160 = vpop.f32.mrf.mxu0
    %v1161 = vadd.f32 0.0, %v1160
    %v1162 = vpop.f32.mrf.mxu0
    %1163 = vmatprep.mubr.f32.mxu0 0.0
    %1164 = vmatmul.mubr.f32.gmra.mxu0 %v1084
    %v1165 = vpop.f32.mrf.mxu0
    %v1166 = vadd.f32 0.0, %v1165
    %v1167 = vpop.f32.mrf.mxu0
    %1168 = vmatprep.mubr.f32.mxu0 0.0
    %1169 = vmatmul.mubr.f32.gmra.mxu0 %v1087
    %v1170 = vpop.f32.mrf.mxu0
    %v1171 = vadd.f32 0.0, %v1170
    %v1172 = vpop.f32.mrf.mxu0
    %1173 = vdwg.mxu0
    %v1174 = vadd.f32 %v1073, %v1156
    %v1175 = vadd.f32 %v1074, %v1161
    %v1176 = vadd.f32 %v1075, %v1166
    %v1177 = vadd.f32 %v1076, %v1171
    %v1178 = vmax.f32 %v1174, 0.0
    %v1179 = vmax.f32 %v1175, 0.0
    %v1180 = vmax.f32 %v1176, 0.0
    %v1181 = vmax.f32 %v1177, 0.0
    %v1183 = vsel %vm295, %v1178, 0
    %v1186 = vsel %vm295, %v1179, 0
    %v1189 = vsel %vm295, %v1180, 0
    %v1192 = vsel %vm295, %v1181, 0
    %1194 = vmatprep.subr.mxu0 0.0
    %1195 = vmatpush1.msra.mxu0 0.0
    %1196 = vmatprep.subr.mxu0 0.0
    %1197 = vmatpush1.msra.mxu0 0.0
    %1198 = vmatprep.subr.mxu0 0.0
    %1199 = vmatpush1.msra.mxu0 0.0
    %1200 = vmatprep.subr.mxu0 0.0
    %1201 = vmatpush1.msra.mxu0 0.0
    %1202 = vmatprep.subr.mxu0 0.0
    %1203 = vmatpush1.msra.mxu0 0.0
    %1204 = vmatprep.subr.mxu0 0.0
    %1205 = vmatpush1.msra.mxu0 0.0
    %1206 = vmatprep.subr.mxu0 0.0
    %1207 = vmatpush1.msra.mxu0 0.0
    %1208 = vmatprep.subr.mxu0 0.0
    %1209 = vmatpush1.msra.mxu0 0.0
    %1210 = vmatprep.subr.mxu0 0.0
    %1211 = vmatpush1.msra.mxu0 %v139
    %1212 = vmatprep.subr.mxu0 0.0
    %1213 = vmatpush1.msra.mxu0 %v138
    %1214 = vmatprep.subr.mxu0 0.0
    %1215 = vmatpush1.msra.mxu0 %v137
    %1216 = vmatprep.subr.mxu0 0.0
    %1217 = vmatpush1.msra.mxu0 %v136
    %1218 = vmatprep.subr.mxu0 0.0
    %1219 = vmatpush1.msra.mxu0 %v135
    %1220 = vmatprep.subr.mxu0 0.0
    %1221 = vmatpush1.msra.mxu0 %v134
    %1222 = vmatprep.subr.mxu0 0.0
    %1223 = vmatpush1.msra.mxu0 %v133
    %1224 = vmatprep.subr.mxu0 0.0
    %1225 = vmatpush1.msra.mxu0 %v132
    %1226 = vmatprep.subr.mxu0 0.0
    %1227 = vmatpush2.msra.mxu0 0.0
    %1228 = vmatprep.subr.mxu0 0.0
    %1229 = vmatpush2.msra.mxu0 0.0
    %1230 = vmatprep.subr.mxu0 0.0
    %1231 = vmatpush2.msra.mxu0 0.0
    %1232 = vmatprep.subr.mxu0 0.0
    %1233 = vmatpush2.msra.mxu0 0.0
    %1234 = vmatprep.subr.mxu0 0.0
    %1235 = vmatpush2.msra.mxu0 0.0
    %1236 = vmatprep.subr.mxu0 0.0
    %1237 = vmatpush2.msra.mxu0 0.0
    %1238 = vmatprep.subr.mxu0 0.0
    %1239 = vmatpush2.msra.mxu0 0.0
    %1240 = vmatprep.subr.mxu0 0.0
    %1241 = vmatpush2.msra.mxu0 0.0
    %1242 = vmatprep.subr.mxu0 0.0
    %1243 = vmatpush2.msra.mxu0 0.0
    %1244 = vmatprep.subr.mxu0 0.0
    %1245 = vmatpush2.msra.mxu0 0.0
    %1246 = vmatprep.subr.mxu0 0.0
    %1247 = vmatpush2.msra.mxu0 0.0
    %1248 = vmatprep.subr.mxu0 0.0
    %1249 = vmatpush2.msra.mxu0 0.0
    %1250 = vmatprep.subr.mxu0 0.0
    %1251 = vmatpush2.msra.mxu0 0.0
    %1252 = vmatprep.subr.mxu0 0.0
    %1253 = vmatpush2.msra.mxu0 0.0
    %1254 = vmatprep.subr.mxu0 0.0
    %1255 = vmatpush2.msra.mxu0 0.0
    %1256 = vmatprep.subr.mxu0 0.0
    %1257 = vmatpush2.msra.mxu0 0.0
    %1258 = vmatprep.mubr.f32.mxu0 0.0
    %1259 = vmatmul.mubr.f32.gmra.mxu0 %v1183
    %v1260 = vpop.f32.mrf.mxu0
    %v1261 = vadd.f32 0.0, %v1260
    %v1262 = vpop.f32.mrf.mxu0
    %1263 = vmatprep.mubr.f32.mxu0 0.0
    %1264 = vmatmul.mubr.f32.gmra.mxu0 %v1186
    %v1265 = vpop.f32.mrf.mxu0
    %v1266 = vadd.f32 0.0, %v1265
    %v1267 = vpop.f32.mrf.mxu0
    %1268 = vmatprep.mubr.f32.mxu0 0.0
    %1269 = vmatmul.mubr.f32.gmra.mxu0 %v1189
    %v1270 = vpop.f32.mrf.mxu0
    %v1271 = vadd.f32 0.0, %v1270
    %v1272 = vpop.f32.mrf.mxu0
    %1273 = vmatprep.mubr.f32.mxu0 0.0
    %1274 = vmatmul.mubr.f32.gmra.mxu0 %v1192
    %v1275 = vpop.f32.mrf.mxu0
    %v1276 = vadd.f32 0.0, %v1275
    %v1277 = vpop.f32.mrf.mxu0
    %1278 = vdwg.mxu0
    %v1279 = vmax.f32 %v1261, 0.0
    %v1280 = vmax.f32 %v1266, 0.0
    %v1281 = vmax.f32 %v1271, 0.0
    %v1282 = vmax.f32 %v1276, 0.0
    %v1284 = vsel %vm295, %v1279, 0
    %v1287 = vsel %vm295, %v1280, 0
    %v1290 = vsel %vm295, %v1281, 0
    %v1293 = vsel %vm295, %v1282, 0
    %1295 = vmatprep.subr.mxu0 0.0
    %1296 = vmatpush1.msra.mxu0 0.0
    %1297 = vmatprep.subr.mxu0 0.0
    %1298 = vmatpush1.msra.mxu0 0.0
    %1299 = vmatprep.subr.mxu0 0.0
    %1300 = vmatpush1.msra.mxu0 0.0
    %1301 = vmatprep.subr.mxu0 0.0
    %1302 = vmatpush1.msra.mxu0 0.0
    %1303 = vmatprep.subr.mxu0 0.0
    %1304 = vmatpush1.msra.mxu0 0.0
    %1305 = vmatprep.subr.mxu0 0.0
    %1306 = vmatpush1.msra.mxu0 0.0
    %1307 = vmatprep.subr.mxu0 0.0
    %1308 = vmatpush1.msra.mxu0 0.0
    %1309 = vmatprep.subr.mxu0 0.0
    %1310 = vmatpush1.msra.mxu0 0.0
    %1311 = vmatprep.subr.mxu0 0.0
    %1312 = vmatpush1.msra.mxu0 %v420
    %1313 = vmatprep.subr.mxu0 0.0
    %1314 = vmatpush1.msra.mxu0 %v418
    %1315 = vmatprep.subr.mxu0 0.0
    %1316 = vmatpush1.msra.mxu0 %v416
    %1317 = vmatprep.subr.mxu0 0.0
    %1318 = vmatpush1.msra.mxu0 %v414
    %1319 = vmatprep.subr.mxu0 0.0
    %1320 = vmatpush1.msra.mxu0 %v412
    %1321 = vmatprep.subr.mxu0 0.0
    %1322 = vmatpush1.msra.mxu0 %v410
    %1323 = vmatprep.subr.mxu0 0.0
    %1324 = vmatpush1.msra.mxu0 %v408
    %1325 = vmatprep.subr.mxu0 0.0
    %1326 = vmatpush1.msra.mxu0 %v406
    %1327 = vmatprep.subr.mxu0 0.0
    %1328 = vmatpush2.msra.mxu0 0.0
    %1329 = vmatprep.subr.mxu0 0.0
    %1330 = vmatpush2.msra.mxu0 0.0
    %1331 = vmatprep.subr.mxu0 0.0
    %1332 = vmatpush2.msra.mxu0 0.0
    %1333 = vmatprep.subr.mxu0 0.0
    %1334 = vmatpush2.msra.mxu0 0.0
    %1335 = vmatprep.subr.mxu0 0.0
    %1336 = vmatpush2.msra.mxu0 0.0
    %1337 = vmatprep.subr.mxu0 0.0
    %1338 = vmatpush2.msra.mxu0 0.0
    %1339 = vmatprep.subr.mxu0 0.0
    %1340 = vmatpush2.msra.mxu0 0.0
    %1341 = vmatprep.subr.mxu0 0.0
    %1342 = vmatpush2.msra.mxu0 0.0
    %1343 = vmatprep.subr.mxu0 0.0
    %1344 = vmatpush2.msra.mxu0 0.0
    %1345 = vmatprep.subr.mxu0 0.0
    %1346 = vmatpush2.msra.mxu0 0.0
    %1347 = vmatprep.subr.mxu0 0.0
    %1348 = vmatpush2.msra.mxu0 0.0
    %1349 = vmatprep.subr.mxu0 0.0
    %1350 = vmatpush2.msra.mxu0 0.0
    %1351 = vmatprep.subr.mxu0 0.0
    %1352 = vmatpush2.msra.mxu0 0.0
    %1353 = vmatprep.subr.mxu0 0.0
    %1354 = vmatpush2.msra.mxu0 0.0
    %1355 = vmatprep.subr.mxu0 0.0
    %1356 = vmatpush2.msra.mxu0 0.0
    %1357 = vmatprep.subr.mxu0 0.0
    %1358 = vmatpush2.msra.mxu0 0.0
    %1359 = vmatprep.mubr.f32.mxu0 0.0
    %1360 = vmatmul.mubr.f32.gmra.mxu0 %v1284
    %v1361 = vpop.f32.mrf.mxu0
    %v1362 = vadd.f32 0.0, %v1361
    %v1363 = vpop.f32.mrf.mxu0
    %1364 = vmatprep.mubr.f32.mxu0 0.0
    %1365 = vmatmul.mubr.f32.gmra.mxu0 %v1287
    %v1366 = vpop.f32.mrf.mxu0
    %v1367 = vadd.f32 0.0, %v1366
    %v1368 = vpop.f32.mrf.mxu0
    %1369 = vmatprep.mubr.f32.mxu0 0.0
    %1370 = vmatmul.mubr.f32.gmra.mxu0 %v1290
    %v1371 = vpop.f32.mrf.mxu0
    %v1372 = vadd.f32 0.0, %v1371
    %v1373 = vpop.f32.mrf.mxu0
    %1374 = vmatprep.mubr.f32.mxu0 0.0
    %1375 = vmatmul.mubr.f32.gmra.mxu0 %v1293
    %v1376 = vpop.f32.mrf.mxu0
    %v1377 = vadd.f32 0.0, %v1376
    %v1378 = vpop.f32.mrf.mxu0
    %1379 = vdwg.mxu0
    %1380 = vmatprep.subr.mxu0 0.0
    %1381 = vmatpush1.msra.mxu0 0.0
    %1382 = vmatprep.subr.mxu0 0.0
    %1383 = vmatpush1.msra.mxu0 0.0
    %1384 = vmatprep.subr.mxu0 0.0
    %1385 = vmatpush1.msra.mxu0 0.0
    %1386 = vmatprep.subr.mxu0 0.0
    %1387 = vmatpush1.msra.mxu0 0.0
    %1388 = vmatprep.subr.mxu0 0.0
    %1389 = vmatpush1.msra.mxu0 0.0
    %1390 = vmatprep.subr.mxu0 0.0
    %1391 = vmatpush1.msra.mxu0 0.0
    %1392 = vmatprep.subr.mxu0 0.0
    %1393 = vmatpush1.msra.mxu0 0.0
    %1394 = vmatprep.subr.mxu0 0.0
    %1395 = vmatpush1.msra.mxu0 0.0
    %1396 = vmatprep.subr.mxu0 0.0
    %1397 = vmatpush1.msra.mxu0 0.0
    %1398 = vmatprep.subr.mxu0 0.0
    %1399 = vmatpush1.msra.mxu0 0.0
    %1400 = vmatprep.subr.mxu0 0.0
    %1401 = vmatpush1.msra.mxu0 0.0
    %1402 = vmatprep.subr.mxu0 0.0
    %1403 = vmatpush1.msra.mxu0 0.0
    %1404 = vmatprep.subr.mxu0 0.0
    %1405 = vmatpush1.msra.mxu0 %v1377
    %1406 = vmatprep.subr.mxu0 0.0
    %1407 = vmatpush1.msra.mxu0 %v1372
    %1408 = vmatprep.subr.mxu0 0.0
    %1409 = vmatpush1.msra.mxu0 %v1367
    %1410 = vmatprep.subr.mxu0 0.0
    %1411 = vmatpush1.msra.mxu0 %v1362
    %1412 = vmatprep.subr.mxu0 0.0
    %1413 = vmatpush2.msra.mxu0 0.0
    %1414 = vmatprep.subr.mxu0 0.0
    %1415 = vmatpush2.msra.mxu0 0.0
    %1416 = vmatprep.subr.mxu0 0.0
    %1417 = vmatpush2.msra.mxu0 0.0
    %1418 = vmatprep.subr.mxu0 0.0
    %1419 = vmatpush2.msra.mxu0 0.0
    %1420 = vmatprep.subr.mxu0 0.0
    %1421 = vmatpush2.msra.mxu0 0.0
    %1422 = vmatprep.subr.mxu0 0.0
    %1423 = vmatpush2.msra.mxu0 0.0
    %1424 = vmatprep.subr.mxu0 0.0
    %1425 = vmatpush2.msra.mxu0 0.0
    %1426 = vmatprep.subr.mxu0 0.0
    %1427 = vmatpush2.msra.mxu0 0.0
    %1428 = vmatprep.subr.mxu0 0.0
    %1429 = vmatpush2.msra.mxu0 0.0
    %1430 = vmatprep.subr.mxu0 0.0
    %1431 = vmatpush2.msra.mxu0 0.0
    %1432 = vmatprep.subr.mxu0 0.0
    %1433 = vmatpush2.msra.mxu0 0.0
    %1434 = vmatprep.subr.mxu0 0.0
    %1435 = vmatpush2.msra.mxu0 0.0
    %1436 = vmatprep.subr.mxu0 0.0
    %1437 = vmatpush2.msra.mxu0 0.0
    %1438 = vmatprep.subr.mxu0 0.0
    %1439 = vmatpush2.msra.mxu0 0.0
    %1440 = vmatprep.subr.mxu0 0.0
    %1441 = vmatpush2.msra.mxu0 0.0
    %1442 = vmatprep.subr.mxu0 0.0
    %1443 = vmatpush2.msra.mxu0 0.0
    %1444 = vmatprep.mubr.f32.mxu0 0.0
    %1445 = vmatmul.mubr.f32.gmra.mxu0 %v528
    %v1446 = vpop.f32.mrf.mxu0
    %v1447 = vadd.f32 0.0, %v1446
    %v1448 = vpop.f32.mrf.mxu0
    %1449 = vmatprep.mubr.f32.mxu0 0.0
    %1450 = vmatmul.mubr.f32.gmra.mxu0 %v531
    %v1451 = vpop.f32.mrf.mxu0
    %v1452 = vadd.f32 0.0, %v1451
    %v1453 = vpop.f32.mrf.mxu0
    %1454 = vdwg.mxu0
    %v1455 = vsel %vm526, %v776, 0
    %v1457 = vsel %vm526, %v778, 0
    %1459 = vmatprep.subr.mxu0 0.0
    %1460 = vmatpush1.msra.mxu0 0.0
    %1461 = vmatprep.subr.mxu0 0.0
    %1462 = vmatpush1.msra.mxu0 0.0
    %1463 = vmatprep.subr.mxu0 0.0
    %1464 = vmatpush1.msra.mxu0 0.0
    %1465 = vmatprep.subr.mxu0 0.0
    %1466 = vmatpush1.msra.mxu0 0.0
    %1467 = vmatprep.subr.mxu0 0.0
    %1468 = vmatpush1.msra.mxu0 0.0
    %1469 = vmatprep.subr.mxu0 0.0
    %1470 = vmatpush1.msra.mxu0 0.0
    %1471 = vmatprep.subr.mxu0 0.0
    %1472 = vmatpush1.msra.mxu0 0.0
    %1473 = vmatprep.subr.mxu0 0.0
    %1474 = vmatpush1.msra.mxu0 0.0
    %1475 = vmatprep.subr.mxu0 0.0
    %1476 = vmatpush1.msra.mxu0 0.0
    %1477 = vmatprep.subr.mxu0 0.0
    %1478 = vmatpush1.msra.mxu0 0.0
    %1479 = vmatprep.subr.mxu0 0.0
    %1480 = vmatpush1.msra.mxu0 0.0
    %1481 = vmatprep.subr.mxu0 0.0
    %1482 = vmatpush1.msra.mxu0 0.0
    %1483 = vmatprep.subr.mxu0 %v155
    %1484 = vmatpush1.msra.mxu0 %v154
    %1485 = vmatprep.subr.mxu0 %v153
    %1486 = vmatpush1.msra.mxu0 %v152
    %1487 = vmatprep.subr.mxu0 %v151
    %1488 = vmatpush1.msra.mxu0 %v150
    %1489 = vmatprep.subr.mxu0 %v149
    %1490 = vmatpush1.msra.mxu0 %v148
    %1491 = vmatprep.subr.mxu0 0.0
    %1492 = vmatpush2.msra.mxu0 0.0
    %1493 = vmatprep.subr.mxu0 0.0
    %1494 = vmatpush2.msra.mxu0 0.0
    %1495 = vmatprep.subr.mxu0 0.0
    %1496 = vmatpush2.msra.mxu0 0.0
    %1497 = vmatprep.subr.mxu0 0.0
    %1498 = vmatpush2.msra.mxu0 0.0
    %1499 = vmatprep.subr.mxu0 0.0
    %1500 = vmatpush2.msra.mxu0 0.0
    %1501 = vmatprep.subr.mxu0 0.0
    %1502 = vmatpush2.msra.mxu0 0.0
    %1503 = vmatprep.subr.mxu0 0.0
    %1504 = vmatpush2.msra.mxu0 0.0
    %1505 = vmatprep.subr.mxu0 0.0
    %1506 = vmatpush2.msra.mxu0 0.0
    %1507 = vmatprep.subr.mxu0 0.0
    %1508 = vmatpush2.msra.mxu0 0.0
    %1509 = vmatprep.subr.mxu0 0.0
    %1510 = vmatpush2.msra.mxu0 0.0
    %1511 = vmatprep.subr.mxu0 0.0
    %1512 = vmatpush2.msra.mxu0 0.0
    %1513 = vmatprep.subr.mxu0 0.0
    %1514 = vmatpush2.msra.mxu0 0.0
    %1515 = vmatprep.subr.mxu0 0.0
    %1516 = vmatpush2.msra.mxu0 0.0
    %1517 = vmatprep.subr.mxu0 0.0
    %1518 = vmatpush2.msra.mxu0 0.0
    %1519 = vmatprep.subr.mxu0 0.0
    %1520 = vmatpush2.msra.mxu0 0.0
    %1521 = vmatprep.subr.mxu0 0.0
    %1522 = vmatpush2.msra.mxu0 0.0
    %1523 = vmatprep.mubr.f32.mxu0 0.0
    %1524 = vmatmul.mubr.f32.gmra.mxu0 %v1455
    %v1525 = vpop.f32.mrf.mxu0
    %v1526 = vadd.f32 0.0, %v1525
    %v1527 = vpop.f32.mrf.mxu0
    %v1528 = vadd.f32 0.0, %v1527
    %1529 = vmatprep.mubr.f32.mxu0 0.0
    %1530 = vmatmul.mubr.f32.gmra.mxu0 %v1457
    %v1531 = vpop.f32.mrf.mxu0
    %v1532 = vadd.f32 0.0, %v1531
    %v1533 = vpop.f32.mrf.mxu0
    %v1534 = vadd.f32 0.0, %v1533
    %1535 = vdwg.mxu0
    %v1537 = vsel %vm526, %v1447, 0
    %v1540 = vsel %vm526, %v1452, 0
    %1542 = vmatprep.subr.mxu0 0.0
    %1543 = vmatpush1.msra.mxu0 0.0
    %1544 = vmatprep.subr.mxu0 0.0
    %1545 = vmatpush1.msra.mxu0 0.0
    %1546 = vmatprep.subr.mxu0 0.0
    %1547 = vmatpush1.msra.mxu0 0.0
    %1548 = vmatprep.subr.mxu0 0.0
    %1549 = vmatpush1.msra.mxu0 0.0
    %1550 = vmatprep.subr.mxu0 0.0
    %1551 = vmatpush1.msra.mxu0 0.0
    %1552 = vmatprep.subr.mxu0 0.0
    %1553 = vmatpush1.msra.mxu0 0.0
    %1554 = vmatprep.subr.mxu0 0.0
    %1555 = vmatpush1.msra.mxu0 0.0
    %1556 = vmatprep.subr.mxu0 0.0
    %1557 = vmatpush1.msra.mxu0 0.0
    %1558 = vmatprep.subr.mxu0 0.0
    %1559 = vmatpush1.msra.mxu0 0.0
    %1560 = vmatprep.subr.mxu0 0.0
    %1561 = vmatpush1.msra.mxu0 0.0
    %1562 = vmatprep.subr.mxu0 0.0
    %1563 = vmatpush1.msra.mxu0 0.0
    %1564 = vmatprep.subr.mxu0 0.0
    %1565 = vmatpush1.msra.mxu0 0.0
    %1566 = vmatprep.subr.mxu0 %v147
    %1567 = vmatpush1.msra.mxu0 %v146
    %1568 = vmatprep.subr.mxu0 %v145
    %1569 = vmatpush1.msra.mxu0 %v144
    %1570 = vmatprep.subr.mxu0 %v143
    %1571 = vmatpush1.msra.mxu0 %v142
    %1572 = vmatprep.subr.mxu0 %v141
    %1573 = vmatpush1.msra.mxu0 %v140
    %1574 = vmatprep.subr.mxu0 0.0
    %1575 = vmatpush2.msra.mxu0 0.0
    %1576 = vmatprep.subr.mxu0 0.0
    %1577 = vmatpush2.msra.mxu0 0.0
    %1578 = vmatprep.subr.mxu0 0.0
    %1579 = vmatpush2.msra.mxu0 0.0
    %1580 = vmatprep.subr.mxu0 0.0
    %1581 = vmatpush2.msra.mxu0 0.0
    %1582 = vmatprep.subr.mxu0 0.0
    %1583 = vmatpush2.msra.mxu0 0.0
    %1584 = vmatprep.subr.mxu0 0.0
    %1585 = vmatpush2.msra.mxu0 0.0
    %1586 = vmatprep.subr.mxu0 0.0
    %1587 = vmatpush2.msra.mxu0 0.0
    %1588 = vmatprep.subr.mxu0 0.0
    %1589 = vmatpush2.msra.mxu0 0.0
    %1590 = vmatprep.subr.mxu0 0.0
    %1591 = vmatpush2.msra.mxu0 0.0
    %1592 = vmatprep.subr.mxu0 0.0
    %1593 = vmatpush2.msra.mxu0 0.0
    %1594 = vmatprep.subr.mxu0 0.0
    %1595 = vmatpush2.msra.mxu0 0.0
    %1596 = vmatprep.subr.mxu0 0.0
    %1597 = vmatpush2.msra.mxu0 0.0
    %1598 = vmatprep.subr.mxu0 0.0
    %1599 = vmatpush2.msra.mxu0 0.0
    %1600 = vmatprep.subr.mxu0 0.0
    %1601 = vmatpush2.msra.mxu0 0.0
    %1602 = vmatprep.subr.mxu0 0.0
    %1603 = vmatpush2.msra.mxu0 0.0
    %1604 = vmatprep.subr.mxu0 0.0
    %1605 = vmatpush2.msra.mxu0 0.0
    %1606 = vmatprep.mubr.f32.mxu0 0.0
    %1607 = vmatmul.mubr.f32.gmra.mxu0 %v1537
    %v1608 = vpop.f32.mrf.mxu0
    %v1609 = vadd.f32 %v1526, %v1608
    %v1610 = vpop.f32.mrf.mxu0
    %v1611 = vadd.f32 %v1528, %v1610
    %1612 = vmatprep.mubr.f32.mxu0 0.0
    %1613 = vmatmul.mubr.f32.gmra.mxu0 %v1540
    %v1614 = vpop.f32.mrf.mxu0
    %v1615 = vadd.f32 %v1532, %v1614
    %v1616 = vpop.f32.mrf.mxu0
    %v1617 = vadd.f32 %v1534, %v1616
    %1618 = vdwg.mxu0
    %v1619 = vadd.f32 %v1609, %v161
    %v1620 = vadd.f32 %v1611, %v165
    %v1621 = vadd.f32 %v1615, %v161
    %v1622 = vadd.f32 %v1617, %v165
    %v1623 = vxor.u32 %v1619, 2147483648
    %v1624 = vxor.u32 %v1621, 2147483648
    %v1625 = vmul.f32 %v1623, 1.442695
    %v1626 = vpow.pop %v1625
    %v1627 = vmul.f32 %v1624, 1.442695
    %v1628 = vpow.pop %v1627
    %v1629 = vadd.f32 %v1626, 1.0
    %v1630 = vadd.f32 %v1628, 1.0
    %v1631 = vrcp.pop %v1629
    %v1632 = vmul.f32 1.0, %v1631
    %v1633 = vrcp.pop %v1630
    %v1634 = vmul.f32 1.0, %v1633
    %1637 = vrot.lane.b32.xlu0 %v1620, 64
    %v1638 = vpop.permute.xlu0 %1637
    %1639 = vrot.lane.b32.xlu0 %v1622, 64
    %v1640 = vpop.permute.xlu0 %1639
    %v1643 = vmul.f32 %v1632, %v1638
    %v1644 = vmul.f32 %v1634, %v1640
    %v1645 = vadd.f32 %v1620, %v1643
    %v1646 = vadd.f32 %v1622, %v1644
    %v1647 = vtanh.pop %v1645
    %v1648 = vtanh.pop %v1646
    %1649 = vrot.lane.b32.xlu0 %v1620, 96
    %v1650 = vpop.permute.xlu0 %1649
    %1651 = vrot.lane.b32.xlu0 %v1622, 96
    %v1652 = vpop.permute.xlu0 %1651
    %v1655 = vmul.f32 %v1632, %v1650
    %v1656 = vmul.f32 %v1634, %v1652
    %1659 = vrot.lane.b32.xlu0 %v1655, 96
    %v1660 = vpop.permute.xlu0 %1659
    %1661 = vrot.lane.b32.xlu0 %v1656, 96
    %v1662 = vpop.permute.xlu0 %1661
    %v1665 = vadd.f32 %v1620, %v1660
    %v1666 = vadd.f32 %v1622, %v1662
    %v1667 = vtanh.pop %v1665
    %v1668 = vtanh.pop %v1666
    %v1669 = vsub.f32 1.0, %v1632
    %v1670 = vsub.f32 1.0, %v1634
    %1673 = vrot.lane.b32.xlu0 %v1647, 32
    %v1674 = vpop.permute.xlu0 %1673
    %1675 = vrot.lane.b32.xlu0 %v1648, 32
    %v1676 = vpop.permute.xlu0 %1675
    %v1679 = vmul.f32 %v1669, %v1674
    %v1680 = vmul.f32 %v1670, %v1676
    %v1681 = vmul.f32 %v1632, %v771
    %v1682 = vmul.f32 %v1634, %v772
    %v1683 = vadd.f32 %v1679, %v1681
    %v1684 = vadd.f32 %v1680, %v1682
    %1687 = vrot.lane.b32.xlu0 %v1667, 64
    %v1688 = vpop.permute.xlu0 %1687
    %1689 = vrot.lane.b32.xlu0 %v1668, 64
    %v1690 = vpop.permute.xlu0 %1689
    %v1693 = vmul.f32 %v1669, %v1688
    %v1694 = vmul.f32 %v1670, %v1690
    %1695 = vrot.lane.b32.xlu0 %v771, 64
    %v1696 = vpop.permute.xlu0 %1695
    %1697 = vrot.lane.b32.xlu0 %v772, 64
    %v1698 = vpop.permute.xlu0 %1697
    %v1701 = vmul.f32 %v1632, %v1696
    %v1702 = vmul.f32 %v1634, %v1698
    %v1703 = vadd.f32 %v1693, %v1701
    %v1704 = vadd.f32 %v1694, %v1702
    %v1705 = vmul.f32 %v184, %v1683
    %v1706 = vmul.f32 %v189, %v1684
    %v1707 = vmul.f32 %v191, %v1703
    %v1708 = vmul.f32 %v192, %v1704
    %1711 = vrot.lane.b32.xlu0 %v1707, 64
    %v1712 = vpop.permute.xlu0 %1711
    %1713 = vrot.lane.b32.xlu0 %v1708, 64
    %v1714 = vpop.permute.xlu0 %1713
    %v1717 = vadd.f32 %v1705, %v1712
    %v1718 = vadd.f32 %v1706, %v1714
    %1721 = vrot.lane.b32.xlu0 %v1717, 96
    %v1722 = vpop.permute.xlu0 %1721
    %1723 = vrot.lane.b32.xlu0 %v1718, 96
    %v1724 = vpop.permute.xlu0 %1723
    %1727 = vmatprep.subr.mxu0 0.0
    %1728 = vmatpush1.msra.mxu0 0.0
    %1729 = vmatprep.subr.mxu0 0.0
    %1730 = vmatpush1.msra.mxu0 0.0
    %1731 = vmatprep.subr.mxu0 0.0
    %1732 = vmatpush1.msra.mxu0 0.0
    %1733 = vmatprep.subr.mxu0 0.0
    %1734 = vmatpush1.msra.mxu0 0.0
    %1735 = vmatprep.subr.mxu0 0.0
    %1736 = vmatpush1.msra.mxu0 0.0
    %1737 = vmatprep.subr.mxu0 0.0
    %1738 = vmatpush1.msra.mxu0 0.0
    %1739 = vmatprep.subr.mxu0 0.0
    %1740 = vmatpush1.msra.mxu0 0.0
    %1741 = vmatprep.subr.mxu0 0.0
    %1742 = vmatpush1.msra.mxu0 0.0
    %1743 = vmatprep.subr.mxu0 0.0
    %1744 = vmatpush1.msra.mxu0 0.0
    %1745 = vmatprep.subr.mxu0 0.0
    %1746 = vmatpush1.msra.mxu0 0.0
    %1747 = vmatprep.subr.mxu0 0.0
    %1748 = vmatpush1.msra.mxu0 0.0
    %1749 = vmatprep.subr.mxu0 0.0
    %1750 = vmatpush1.msra.mxu0 0.0
    %1751 = vmatprep.subr.mxu0 0.0
    %1752 = vmatpush1.msra.mxu0 0.0
    %1753 = vmatprep.subr.mxu0 0.0
    %1754 = vmatpush1.msra.mxu0 0.0
    %1755 = vmatprep.subr.mxu0 0.0
    %1756 = vmatpush1.msra.mxu0 %v1724
    %1757 = vmatprep.subr.mxu0 0.0
    %1758 = vmatpush1.msra.mxu0 %v1722
    %1759 = vmatprep.subr.mxu0 0.0
    %1760 = vmatpush2.msra.mxu0 0.0
    %1761 = vmatprep.subr.mxu0 0.0
    %1762 = vmatpush2.msra.mxu0 0.0
    %1763 = vmatprep.subr.mxu0 0.0
    %1764 = vmatpush2.msra.mxu0 0.0
    %1765 = vmatprep.subr.mxu0 0.0
    %1766 = vmatpush2.msra.mxu0 0.0
    %1767 = vmatprep.subr.mxu0 0.0
    %1768 = vmatpush2.msra.mxu0 0.0
    %1769 = vmatprep.subr.mxu0 0.0
    %1770 = vmatpush2.msra.mxu0 0.0
    %1771 = vmatprep.subr.mxu0 0.0
    %1772 = vmatpush2.msra.mxu0 0.0
    %1773 = vmatprep.subr.mxu0 0.0
    %1774 = vmatpush2.msra.mxu0 0.0
    %1775 = vmatprep.subr.mxu0 0.0
    %1776 = vmatpush2.msra.mxu0 0.0
    %1777 = vmatprep.subr.mxu0 0.0
    %1778 = vmatpush2.msra.mxu0 0.0
    %1779 = vmatprep.subr.mxu0 0.0
    %1780 = vmatpush2.msra.mxu0 0.0
    %1781 = vmatprep.subr.mxu0 0.0
    %1782 = vmatpush2.msra.mxu0 0.0
    %1783 = vmatprep.subr.mxu0 0.0
    %1784 = vmatpush2.msra.mxu0 0.0
    %1785 = vmatprep.subr.mxu0 0.0
    %1786 = vmatpush2.msra.mxu0 0.0
    %1787 = vmatprep.subr.mxu0 0.0
    %1788 = vmatpush2.msra.mxu0 0.0
    %1789 = vmatprep.subr.mxu0 0.0
    %1790 = vmatpush2.msra.mxu0 0.0
    %1791 = vmatprep.mubr.f32.mxu0 0.0
    %1792 = vmatmul.mubr.f32.gmra.mxu0 %v783
    %v1793 = vpop.f32.mrf.mxu0
    %v1794 = vadd.f32 0.0, %v1793
    %v1795 = vpop.f32.mrf.mxu0
    %1796 = vmatprep.mubr.f32.mxu0 0.0
    %1797 = vmatmul.mubr.f32.gmra.mxu0 %v786
    %v1798 = vpop.f32.mrf.mxu0
    %v1799 = vadd.f32 0.0, %v1798
    %v1800 = vpop.f32.mrf.mxu0
    %1801 = vmatprep.mubr.f32.mxu0 0.0
    %1802 = vmatmul.mubr.f32.gmra.mxu0 %v789
    %v1803 = vpop.f32.mrf.mxu0
    %v1804 = vadd.f32 0.0, %v1803
    %v1805 = vpop.f32.mrf.mxu0
    %1806 = vmatprep.mubr.f32.mxu0 0.0
    %1807 = vmatmul.mubr.f32.gmra.mxu0 %v792
    %v1808 = vpop.f32.mrf.mxu0
    %v1809 = vadd.f32 0.0, %v1808
    %v1810 = vpop.f32.mrf.mxu0
    %1811 = vdwg.mxu0
    %1812 = vmatprep.subr.mxu0 0.0
    %1813 = vmatpush1.msra.mxu0 0.0
    %1814 = vmatprep.subr.mxu0 0.0
    %1815 = vmatpush1.msra.mxu0 0.0
    %1816 = vmatprep.subr.mxu0 0.0
    %1817 = vmatpush1.msra.mxu0 0.0
    %1818 = vmatprep.subr.mxu0 0.0
    %1819 = vmatpush1.msra.mxu0 0.0
    %1820 = vmatprep.subr.mxu0 0.0
    %1821 = vmatpush1.msra.mxu0 0.0
    %1822 = vmatprep.subr.mxu0 0.0
    %1823 = vmatpush1.msra.mxu0 0.0
    %1824 = vmatprep.subr.mxu0 0.0
    %1825 = vmatpush1.msra.mxu0 0.0
    %1826 = vmatprep.subr.mxu0 0.0
    %1827 = vmatpush1.msra.mxu0 0.0
    %1828 = vmatprep.subr.mxu0 0.0
    %1829 = vmatpush1.msra.mxu0 0.0
    %1830 = vmatprep.subr.mxu0 0.0
    %1831 = vmatpush1.msra.mxu0 0.0
    %1832 = vmatprep.subr.mxu0 0.0
    %1833 = vmatpush1.msra.mxu0 0.0
    %1834 = vmatprep.subr.mxu0 0.0
    %1835 = vmatpush1.msra.mxu0 0.0
    %1836 = vmatprep.subr.mxu0 0.0
    %1837 = vmatpush1.msra.mxu0 0.0
    %1838 = vmatprep.subr.mxu0 0.0
    %1839 = vmatpush1.msra.mxu0 0.0
    %1840 = vmatprep.subr.mxu0 0.0
    %1841 = vmatpush1.msra.mxu0 %v1724
    %1842 = vmatprep.subr.mxu0 0.0
    %1843 = vmatpush1.msra.mxu0 %v1722
    %1844 = vmatprep.subr.mxu0 0.0
    %1845 = vmatpush2.msra.mxu0 0.0
    %1846 = vmatprep.subr.mxu0 0.0
    %1847 = vmatpush2.msra.mxu0 0.0
    %1848 = vmatprep.subr.mxu0 0.0
    %1849 = vmatpush2.msra.mxu0 0.0
    %1850 = vmatprep.subr.mxu0 0.0
    %1851 = vmatpush2.msra.mxu0 0.0
    %1852 = vmatprep.subr.mxu0 0.0
    %1853 = vmatpush2.msra.mxu0 0.0
    %1854 = vmatprep.subr.mxu0 0.0
    %1855 = vmatpush2.msra.mxu0 0.0
    %1856 = vmatprep.subr.mxu0 0.0
    %1857 = vmatpush2.msra.mxu0 0.0
    %1858 = vmatprep.subr.mxu0 0.0
    %1859 = vmatpush2.msra.mxu0 0.0
    %1860 = vmatprep.subr.mxu0 0.0
    %1861 = vmatpush2.msra.mxu0 0.0
    %1862 = vmatprep.subr.mxu0 0.0
    %1863 = vmatpush2.msra.mxu0 0.0
    %1864 = vmatprep.subr.mxu0 0.0
    %1865 = vmatpush2.msra.mxu0 0.0
    %1866 = vmatprep.subr.mxu0 0.0
    %1867 = vmatpush2.msra.mxu0 0.0
    %1868 = vmatprep.subr.mxu0 0.0
    %1869 = vmatpush2.msra.mxu0 0.0
    %1870 = vmatprep.subr.mxu0 0.0
    %1871 = vmatpush2.msra.mxu0 0.0
    %1872 = vmatprep.subr.mxu0 0.0
    %1873 = vmatpush2.msra.mxu0 0.0
    %1874 = vmatprep.subr.mxu0 0.0
    %1875 = vmatpush2.msra.mxu0 0.0
    %1876 = vmatprep.mubr.f32.mxu0 0.0
    %1877 = vmatmul.mubr.f32.gmra.mxu0 %v880
    %v1878 = vpop.f32.mrf.mxu0
    %v1879 = vadd.f32 0.0, %v1878
    %v1880 = vpop.f32.mrf.mxu0
    %1881 = vmatprep.mubr.f32.mxu0 0.0
    %1882 = vmatmul.mubr.f32.gmra.mxu0 %v883
    %v1883 = vpop.f32.mrf.mxu0
    %v1884 = vadd.f32 0.0, %v1883
    %v1885 = vpop.f32.mrf.mxu0
    %1886 = vmatprep.mubr.f32.mxu0 0.0
    %1887 = vmatmul.mubr.f32.gmra.mxu0 %v886
    %v1888 = vpop.f32.mrf.mxu0
    %v1889 = vadd.f32 0.0, %v1888
    %v1890 = vpop.f32.mrf.mxu0
    %1891 = vmatprep.mubr.f32.mxu0 0.0
    %1892 = vmatmul.mubr.f32.gmra.mxu0 %v889
    %v1893 = vpop.f32.mrf.mxu0
    %v1894 = vadd.f32 0.0, %v1893
    %v1895 = vpop.f32.mrf.mxu0
    %1896 = vdwg.mxu0
    %v1898 = vsel %vm526, %v1794, 0
    %v1901 = vsel %vm526, %v1799, 0
    %v1904 = vsel %vm526, %v1804, 0
    %v1907 = vsel %vm526, %v1809, 0
    %1909 = vmatprep.subr.mxu0 0.0
    %1910 = vmatpush1.msra.mxu0 0.0
    %1911 = vmatprep.subr.mxu0 0.0
    %1912 = vmatpush1.msra.mxu0 0.0
    %1913 = vmatprep.subr.mxu0 0.0
    %1914 = vmatpush1.msra.mxu0 0.0
    %1915 = vmatprep.subr.mxu0 0.0
    %1916 = vmatpush1.msra.mxu0 0.0
    %1917 = vmatprep.subr.mxu0 0.0
    %1918 = vmatpush1.msra.mxu0 0.0
    %1919 = vmatprep.subr.mxu0 0.0
    %1920 = vmatpush1.msra.mxu0 0.0
    %1921 = vmatprep.subr.mxu0 0.0
    %1922 = vmatpush1.msra.mxu0 0.0
    %1923 = vmatprep.subr.mxu0 0.0
    %1924 = vmatpush1.msra.mxu0 0.0
    %1925 = vmatprep.subr.mxu0 0.0
    %1926 = vmatpush1.msra.mxu0 0.0
    %1927 = vmatprep.subr.mxu0 0.0
    %1928 = vmatpush1.msra.mxu0 0.0
    %1929 = vmatprep.subr.mxu0 0.0
    %1930 = vmatpush1.msra.mxu0 0.0
    %1931 = vmatprep.subr.mxu0 0.0
    %1932 = vmatpush1.msra.mxu0 0.0
    %1933 = vmatprep.subr.mxu0 0.0
    %1934 = vmatpush1.msra.mxu0 %v126
    %1935 = vmatprep.subr.mxu0 0.0
    %1936 = vmatpush1.msra.mxu0 %v125
    %1937 = vmatprep.subr.mxu0 0.0
    %1938 = vmatpush1.msra.mxu0 %v124
    %1939 = vmatprep.subr.mxu0 0.0
    %1940 = vmatpush1.msra.mxu0 %v123
    %1941 = vmatprep.subr.mxu0 0.0
    %1942 = vmatpush2.msra.mxu0 0.0
    %1943 = vmatprep.subr.mxu0 0.0
    %1944 = vmatpush2.msra.mxu0 0.0
    %1945 = vmatprep.subr.mxu0 0.0
    %1946 = vmatpush2.msra.mxu0 0.0
    %1947 = vmatprep.subr.mxu0 0.0
    %1948 = vmatpush2.msra.mxu0 0.0
    %1949 = vmatprep.subr.mxu0 0.0
    %1950 = vmatpush2.msra.mxu0 0.0
    %1951 = vmatprep.subr.mxu0 0.0
    %1952 = vmatpush2.msra.mxu0 0.0
    %1953 = vmatprep.subr.mxu0 0.0
    %1954 = vmatpush2.msra.mxu0 0.0
    %1955 = vmatprep.subr.mxu0 0.0
    %1956 = vmatpush2.msra.mxu0 0.0
    %1957 = vmatprep.subr.mxu0 0.0
    %1958 = vmatpush2.msra.mxu0 0.0
    %1959 = vmatprep.subr.mxu0 0.0
    %1960 = vmatpush2.msra.mxu0 0.0
    %1961 = vmatprep.subr.mxu0 0.0
    %1962 = vmatpush2.msra.mxu0 0.0
    %1963 = vmatprep.subr.mxu0 0.0
    %1964 = vmatpush2.msra.mxu0 0.0
    %1965 = vmatprep.subr.mxu0 0.0
    %1966 = vmatpush2.msra.mxu0 0.0
    %1967 = vmatprep.subr.mxu0 0.0
    %1968 = vmatpush2.msra.mxu0 0.0
    %1969 = vmatprep.subr.mxu0 0.0
    %1970 = vmatpush2.msra.mxu0 0.0
    %1971 = vmatprep.subr.mxu0 0.0
    %1972 = vmatpush2.msra.mxu0 0.0
    %1973 = vmatprep.mubr.f32.mxu0 0.0
    %1974 = vmatmul.mubr.f32.gmra.mxu0 %v1898
    %v1975 = vpop.f32.mrf.mxu0
    %v1976 = vadd.f32 0.0, %v1975
    %v1977 = vpop.f32.mrf.mxu0
    %1978 = vmatprep.mubr.f32.mxu0 0.0
    %1979 = vmatmul.mubr.f32.gmra.mxu0 %v1901
    %v1980 = vpop.f32.mrf.mxu0
    %v1981 = vadd.f32 0.0, %v1980
    %v1982 = vpop.f32.mrf.mxu0
    %1983 = vmatprep.mubr.f32.mxu0 0.0
    %1984 = vmatmul.mubr.f32.gmra.mxu0 %v1904
    %v1985 = vpop.f32.mrf.mxu0
    %v1986 = vadd.f32 0.0, %v1985
    %v1987 = vpop.f32.mrf.mxu0
    %1988 = vmatprep.mubr.f32.mxu0 0.0
    %1989 = vmatmul.mubr.f32.gmra.mxu0 %v1907
    %v1990 = vpop.f32.mrf.mxu0
    %v1991 = vadd.f32 0.0, %v1990
    %v1992 = vpop.f32.mrf.mxu0
    %1993 = vdwg.mxu0
    %v1994 = vadd.f32 %v273, %v1976
    %v1995 = vadd.f32 %v278, %v1981
    %v1996 = vadd.f32 %v283, %v1986
    %v1997 = vadd.f32 %v288, %v1991
    %v1999 = vsel %vm526, %v1879, 0
    %v2002 = vsel %vm526, %v1884, 0
    %v2005 = vsel %vm526, %v1889, 0
    %v2008 = vsel %vm526, %v1894, 0
    %2010 = vmatprep.subr.mxu0 0.0
    %2011 = vmatpush1.msra.mxu0 0.0
    %2012 = vmatprep.subr.mxu0 0.0
    %2013 = vmatpush1.msra.mxu0 0.0
    %2014 = vmatprep.subr.mxu0 0.0
    %2015 = vmatpush1.msra.mxu0 0.0
    %2016 = vmatprep.subr.mxu0 0.0
    %2017 = vmatpush1.msra.mxu0 0.0
    %2018 = vmatprep.subr.mxu0 0.0
    %2019 = vmatpush1.msra.mxu0 0.0
    %2020 = vmatprep.subr.mxu0 0.0
    %2021 = vmatpush1.msra.mxu0 0.0
    %2022 = vmatprep.subr.mxu0 0.0
    %2023 = vmatpush1.msra.mxu0 0.0
    %2024 = vmatprep.subr.mxu0 0.0
    %2025 = vmatpush1.msra.mxu0 0.0
    %2026 = vmatprep.subr.mxu0 0.0
    %2027 = vmatpush1.msra.mxu0 0.0
    %2028 = vmatprep.subr.mxu0 0.0
    %2029 = vmatpush1.msra.mxu0 0.0
    %2030 = vmatprep.subr.mxu0 0.0
    %2031 = vmatpush1.msra.mxu0 0.0
    %2032 = vmatprep.subr.mxu0 0.0
    %2033 = vmatpush1.msra.mxu0 0.0
    %2034 = vmatprep.subr.mxu0 0.0
    %2035 = vmatpush1.msra.mxu0 %v130
    %2036 = vmatprep.subr.mxu0 0.0
    %2037 = vmatpush1.msra.mxu0 %v129
    %2038 = vmatprep.subr.mxu0 0.0
    %2039 = vmatpush1.msra.mxu0 %v128
    %2040 = vmatprep.subr.mxu0 0.0
    %2041 = vmatpush1.msra.mxu0 %v127
    %2042 = vmatprep.subr.mxu0 0.0
    %2043 = vmatpush2.msra.mxu0 0.0
    %2044 = vmatprep.subr.mxu0 0.0
    %2045 = vmatpush2.msra.mxu0 0.0
    %2046 = vmatprep.subr.mxu0 0.0
    %2047 = vmatpush2.msra.mxu0 0.0
    %2048 = vmatprep.subr.mxu0 0.0
    %2049 = vmatpush2.msra.mxu0 0.0
    %2050 = vmatprep.subr.mxu0 0.0
    %2051 = vmatpush2.msra.mxu0 0.0
    %2052 = vmatprep.subr.mxu0 0.0
    %2053 = vmatpush2.msra.mxu0 0.0
    %2054 = vmatprep.subr.mxu0 0.0
    %2055 = vmatpush2.msra.mxu0 0.0
    %2056 = vmatprep.subr.mxu0 0.0
    %2057 = vmatpush2.msra.mxu0 0.0
    %2058 = vmatprep.subr.mxu0 0.0
    %2059 = vmatpush2.msra.mxu0 0.0
    %2060 = vmatprep.subr.mxu0 0.0
    %2061 = vmatpush2.msra.mxu0 0.0
    %2062 = vmatprep.subr.mxu0 0.0
    %2063 = vmatpush2.msra.mxu0 0.0
    %2064 = vmatprep.subr.mxu0 0.0
    %2065 = vmatpush2.msra.mxu0 0.0
    %2066 = vmatprep.subr.mxu0 0.0
    %2067 = vmatpush2.msra.mxu0 0.0
    %2068 = vmatprep.subr.mxu0 0.0
    %2069 = vmatpush2.msra.mxu0 0.0
    %2070 = vmatprep.subr.mxu0 0.0
    %2071 = vmatpush2.msra.mxu0 0.0
    %2072 = vmatprep.subr.mxu0 0.0
    %2073 = vmatpush2.msra.mxu0 0.0
    %2074 = vmatprep.mubr.f32.mxu0 0.0
    %2075 = vmatmul.mubr.f32.gmra.mxu0 %v1999
    %v2076 = vpop.f32.mrf.mxu0
    %v2077 = vadd.f32 0.0, %v2076
    %v2078 = vpop.f32.mrf.mxu0
    %2079 = vmatprep.mubr.f32.mxu0 0.0
    %2080 = vmatmul.mubr.f32.gmra.mxu0 %v2002
    %v2081 = vpop.f32.mrf.mxu0
    %v2082 = vadd.f32 0.0, %v2081
    %v2083 = vpop.f32.mrf.mxu0
    %2084 = vmatprep.mubr.f32.mxu0 0.0
    %2085 = vmatmul.mubr.f32.gmra.mxu0 %v2005
    %v2086 = vpop.f32.mrf.mxu0
    %v2087 = vadd.f32 0.0, %v2086
    %v2088 = vpop.f32.mrf.mxu0
    %2089 = vmatprep.mubr.f32.mxu0 0.0
    %2090 = vmatmul.mubr.f32.gmra.mxu0 %v2008
    %v2091 = vpop.f32.mrf.mxu0
    %v2092 = vadd.f32 0.0, %v2091
    %v2093 = vpop.f32.mrf.mxu0
    %2094 = vdwg.mxu0
    %v2095 = vadd.f32 %v1994, %v2077
    %v2096 = vadd.f32 %v1995, %v2082
    %v2097 = vadd.f32 %v1996, %v2087
    %v2098 = vadd.f32 %v1997, %v2092
    %v2099 = vmax.f32 %v2095, 0.0
    %v2100 = vmax.f32 %v2096, 0.0
    %v2101 = vmax.f32 %v2097, 0.0
    %v2102 = vmax.f32 %v2098, 0.0
    %v2104 = vsel %vm295, %v2099, 0
    %v2107 = vsel %vm295, %v2100, 0
    %v2110 = vsel %vm295, %v2101, 0
    %v2113 = vsel %vm295, %v2102, 0
    %2115 = vmatprep.subr.mxu0 0.0
    %2116 = vmatpush1.msra.mxu0 0.0
    %2117 = vmatprep.subr.mxu0 0.0
    %2118 = vmatpush1.msra.mxu0 0.0
    %2119 = vmatprep.subr.mxu0 0.0
    %2120 = vmatpush1.msra.mxu0 0.0
    %2121 = vmatprep.subr.mxu0 0.0
    %2122 = vmatpush1.msra.mxu0 0.0
    %2123 = vmatprep.subr.mxu0 0.0
    %2124 = vmatpush1.msra.mxu0 0.0
    %2125 = vmatprep.subr.mxu0 0.0
    %2126 = vmatpush1.msra.mxu0 0.0
    %2127 = vmatprep.subr.mxu0 0.0
    %2128 = vmatpush1.msra.mxu0 0.0
    %2129 = vmatprep.subr.mxu0 0.0
    %2130 = vmatpush1.msra.mxu0 0.0
    %2131 = vmatprep.subr.mxu0 0.0
    %2132 = vmatpush1.msra.mxu0 %v139
    %2133 = vmatprep.subr.mxu0 0.0
    %2134 = vmatpush1.msra.mxu0 %v138
    %2135 = vmatprep.subr.mxu0 0.0
    %2136 = vmatpush1.msra.mxu0 %v137
    %2137 = vmatprep.subr.mxu0 0.0
    %2138 = vmatpush1.msra.mxu0 %v136
    %2139 = vmatprep.subr.mxu0 0.0
    %2140 = vmatpush1.msra.mxu0 %v135
    %2141 = vmatprep.subr.mxu0 0.0
    %2142 = vmatpush1.msra.mxu0 %v134
    %2143 = vmatprep.subr.mxu0 0.0
    %2144 = vmatpush1.msra.mxu0 %v133
    %2145 = vmatprep.subr.mxu0 0.0
    %2146 = vmatpush1.msra.mxu0 %v132
    %2147 = vmatprep.subr.mxu0 0.0
    %2148 = vmatpush2.msra.mxu0 0.0
    %2149 = vmatprep.subr.mxu0 0.0
    %2150 = vmatpush2.msra.mxu0 0.0
    %2151 = vmatprep.subr.mxu0 0.0
    %2152 = vmatpush2.msra.mxu0 0.0
    %2153 = vmatprep.subr.mxu0 0.0
    %2154 = vmatpush2.msra.mxu0 0.0
    %2155 = vmatprep.subr.mxu0 0.0
    %2156 = vmatpush2.msra.mxu0 0.0
    %2157 = vmatprep.subr.mxu0 0.0
    %2158 = vmatpush2.msra.mxu0 0.0
    %2159 = vmatprep.subr.mxu0 0.0
    %2160 = vmatpush2.msra.mxu0 0.0
    %2161 = vmatprep.subr.mxu0 0.0
    %2162 = vmatpush2.msra.mxu0 0.0
    %2163 = vmatprep.subr.mxu0 0.0
    %2164 = vmatpush2.msra.mxu0 0.0
    %2165 = vmatprep.subr.mxu0 0.0
    %2166 = vmatpush2.msra.mxu0 0.0
    %2167 = vmatprep.subr.mxu0 0.0
    %2168 = vmatpush2.msra.mxu0 0.0
    %2169 = vmatprep.subr.mxu0 0.0
    %2170 = vmatpush2.msra.mxu0 0.0
    %2171 = vmatprep.subr.mxu0 0.0
    %2172 = vmatpush2.msra.mxu0 0.0
    %2173 = vmatprep.subr.mxu0 0.0
    %2174 = vmatpush2.msra.mxu0 0.0
    %2175 = vmatprep.subr.mxu0 0.0
    %2176 = vmatpush2.msra.mxu0 0.0
    %2177 = vmatprep.subr.mxu0 0.0
    %2178 = vmatpush2.msra.mxu0 0.0
    %2179 = vmatprep.mubr.f32.mxu0 0.0
    %2180 = vmatmul.mubr.f32.gmra.mxu0 %v2104
    %v2181 = vpop.f32.mrf.mxu0
    %v2182 = vadd.f32 0.0, %v2181
    %v2183 = vpop.f32.mrf.mxu0
    %2184 = vmatprep.mubr.f32.mxu0 0.0
    %2185 = vmatmul.mubr.f32.gmra.mxu0 %v2107
    %v2186 = vpop.f32.mrf.mxu0
    %v2187 = vadd.f32 0.0, %v2186
    %v2188 = vpop.f32.mrf.mxu0
    %2189 = vmatprep.mubr.f32.mxu0 0.0
    %2190 = vmatmul.mubr.f32.gmra.mxu0 %v2110
    %v2191 = vpop.f32.mrf.mxu0
    %v2192 = vadd.f32 0.0, %v2191
    %v2193 = vpop.f32.mrf.mxu0
    %2194 = vmatprep.mubr.f32.mxu0 0.0
    %2195 = vmatmul.mubr.f32.gmra.mxu0 %v2113
    %v2196 = vpop.f32.mrf.mxu0
    %v2197 = vadd.f32 0.0, %v2196
    %v2198 = vpop.f32.mrf.mxu0
    %2199 = vdwg.mxu0
    %v2200 = vmax.f32 %v2182, 0.0
    %v2201 = vmax.f32 %v2187, 0.0
    %v2202 = vmax.f32 %v2192, 0.0
    %v2203 = vmax.f32 %v2197, 0.0
    %v2205 = vsel %vm295, %v2200, 0
    %v2208 = vsel %vm295, %v2201, 0
    %v2211 = vsel %vm295, %v2202, 0
    %v2214 = vsel %vm295, %v2203, 0
    %2216 = vmatprep.subr.mxu0 0.0
    %2217 = vmatpush1.msra.mxu0 0.0
    %2218 = vmatprep.subr.mxu0 0.0
    %2219 = vmatpush1.msra.mxu0 0.0
    %2220 = vmatprep.subr.mxu0 0.0
    %2221 = vmatpush1.msra.mxu0 0.0
    %2222 = vmatprep.subr.mxu0 0.0
    %2223 = vmatpush1.msra.mxu0 0.0
    %2224 = vmatprep.subr.mxu0 0.0
    %2225 = vmatpush1.msra.mxu0 0.0
    %2226 = vmatprep.subr.mxu0 0.0
    %2227 = vmatpush1.msra.mxu0 0.0
    %2228 = vmatprep.subr.mxu0 0.0
    %2229 = vmatpush1.msra.mxu0 0.0
    %2230 = vmatprep.subr.mxu0 0.0
    %2231 = vmatpush1.msra.mxu0 0.0
    %2232 = vmatprep.subr.mxu0 0.0
    %2233 = vmatpush1.msra.mxu0 %v420
    %2234 = vmatprep.subr.mxu0 0.0
    %2235 = vmatpush1.msra.mxu0 %v418
    %2236 = vmatprep.subr.mxu0 0.0
    %2237 = vmatpush1.msra.mxu0 %v416
    %2238 = vmatprep.subr.mxu0 0.0
    %2239 = vmatpush1.msra.mxu0 %v414
    %2240 = vmatprep.subr.mxu0 0.0
    %2241 = vmatpush1.msra.mxu0 %v412
    %2242 = vmatprep.subr.mxu0 0.0
    %2243 = vmatpush1.msra.mxu0 %v410
    %2244 = vmatprep.subr.mxu0 0.0
    %2245 = vmatpush1.msra.mxu0 %v408
    %2246 = vmatprep.subr.mxu0 0.0
    %2247 = vmatpush1.msra.mxu0 %v406
    %2248 = vmatprep.subr.mxu0 0.0
    %2249 = vmatpush2.msra.mxu0 0.0
    %2250 = vmatprep.subr.mxu0 0.0
    %2251 = vmatpush2.msra.mxu0 0.0
    %2252 = vmatprep.subr.mxu0 0.0
    %2253 = vmatpush2.msra.mxu0 0.0
    %2254 = vmatprep.subr.mxu0 0.0
    %2255 = vmatpush2.msra.mxu0 0.0
    %2256 = vmatprep.subr.mxu0 0.0
    %2257 = vmatpush2.msra.mxu0 0.0
    %2258 = vmatprep.subr.mxu0 0.0
    %2259 = vmatpush2.msra.mxu0 0.0
    %2260 = vmatprep.subr.mxu0 0.0
    %2261 = vmatpush2.msra.mxu0 0.0
    %2262 = vmatprep.subr.mxu0 0.0
    %2263 = vmatpush2.msra.mxu0 0.0
    %2264 = vmatprep.subr.mxu0 0.0
    %2265 = vmatpush2.msra.mxu0 0.0
    %2266 = vmatprep.subr.mxu0 0.0
    %2267 = vmatpush2.msra.mxu0 0.0
    %2268 = vmatprep.subr.mxu0 0.0
    %2269 = vmatpush2.msra.mxu0 0.0
    %2270 = vmatprep.subr.mxu0 0.0
    %2271 = vmatpush2.msra.mxu0 0.0
    %2272 = vmatprep.subr.mxu0 0.0
    %2273 = vmatpush2.msra.mxu0 0.0
    %2274 = vmatprep.subr.mxu0 0.0
    %2275 = vmatpush2.msra.mxu0 0.0
    %2276 = vmatprep.subr.mxu0 0.0
    %2277 = vmatpush2.msra.mxu0 0.0
    %2278 = vmatprep.subr.mxu0 0.0
    %2279 = vmatpush2.msra.mxu0 0.0
    %2280 = vmatprep.mubr.f32.mxu0 0.0
    %2281 = vmatmul.mubr.f32.gmra.mxu0 %v2205
    %v2282 = vpop.f32.mrf.mxu0
    %v2283 = vadd.f32 0.0, %v2282
    %v2284 = vpop.f32.mrf.mxu0
    %2285 = vmatprep.mubr.f32.mxu0 0.0
    %2286 = vmatmul.mubr.f32.gmra.mxu0 %v2208
    %v2287 = vpop.f32.mrf.mxu0
    %v2288 = vadd.f32 0.0, %v2287
    %v2289 = vpop.f32.mrf.mxu0
    %2290 = vmatprep.mubr.f32.mxu0 0.0
    %2291 = vmatmul.mubr.f32.gmra.mxu0 %v2211
    %v2292 = vpop.f32.mrf.mxu0
    %v2293 = vadd.f32 0.0, %v2292
    %v2294 = vpop.f32.mrf.mxu0
    %2295 = vmatprep.mubr.f32.mxu0 0.0
    %2296 = vmatmul.mubr.f32.gmra.mxu0 %v2214
    %v2297 = vpop.f32.mrf.mxu0
    %v2298 = vadd.f32 0.0, %v2297
    %v2299 = vpop.f32.mrf.mxu0
    %2300 = vdwg.mxu0
    %2301 = vmatprep.subr.mxu0 0.0
    %2302 = vmatpush1.msra.mxu0 0.0
    %2303 = vmatprep.subr.mxu0 0.0
    %2304 = vmatpush1.msra.mxu0 0.0
    %2305 = vmatprep.subr.mxu0 0.0
    %2306 = vmatpush1.msra.mxu0 0.0
    %2307 = vmatprep.subr.mxu0 0.0
    %2308 = vmatpush1.msra.mxu0 0.0
    %2309 = vmatprep.subr.mxu0 0.0
    %2310 = vmatpush1.msra.mxu0 0.0
    %2311 = vmatprep.subr.mxu0 0.0
    %2312 = vmatpush1.msra.mxu0 0.0
    %2313 = vmatprep.subr.mxu0 0.0
    %2314 = vmatpush1.msra.mxu0 0.0
    %2315 = vmatprep.subr.mxu0 0.0
    %2316 = vmatpush1.msra.mxu0 0.0
    %2317 = vmatprep.subr.mxu0 0.0
    %2318 = vmatpush1.msra.mxu0 0.0
    %2319 = vmatprep.subr.mxu0 0.0
    %2320 = vmatpush1.msra.mxu0 0.0
    %2321 = vmatprep.subr.mxu0 0.0
    %2322 = vmatpush1.msra.mxu0 0.0
    %2323 = vmatprep.subr.mxu0 0.0
    %2324 = vmatpush1.msra.mxu0 0.0
    %2325 = vmatprep.subr.mxu0 0.0
    %2326 = vmatpush1.msra.mxu0 %v2298
    %2327 = vmatprep.subr.mxu0 0.0
    %2328 = vmatpush1.msra.mxu0 %v2293
    %2329 = vmatprep.subr.mxu0 0.0
    %2330 = vmatpush1.msra.mxu0 %v2288
    %2331 = vmatprep.subr.mxu0 0.0
    %2332 = vmatpush1.msra.mxu0 %v2283
    %2333 = vmatprep.subr.mxu0 0.0
    %2334 = vmatpush2.msra.mxu0 0.0
    %2335 = vmatprep.subr.mxu0 0.0
    %2336 = vmatpush2.msra.mxu0 0.0
    %2337 = vmatprep.subr.mxu0 0.0
    %2338 = vmatpush2.msra.mxu0 0.0
    %2339 = vmatprep.subr.mxu0 0.0
    %2340 = vmatpush2.msra.mxu0 0.0
    %2341 = vmatprep.subr.mxu0 0.0
    %2342 = vmatpush2.msra.mxu0 0.0
    %2343 = vmatprep.subr.mxu0 0.0
    %2344 = vmatpush2.msra.mxu0 0.0
    %2345 = vmatprep.subr.mxu0 0.0
    %2346 = vmatpush2.msra.mxu0 0.0
    %2347 = vmatprep.subr.mxu0 0.0
    %2348 = vmatpush2.msra.mxu0 0.0
    %2349 = vmatprep.subr.mxu0 0.0
    %2350 = vmatpush2.msra.mxu0 0.0
    %2351 = vmatprep.subr.mxu0 0.0
    %2352 = vmatpush2.msra.mxu0 0.0
    %2353 = vmatprep.subr.mxu0 0.0
    %2354 = vmatpush2.msra.mxu0 0.0
    %2355 = vmatprep.subr.mxu0 0.0
    %2356 = vmatpush2.msra.mxu0 0.0
    %2357 = vmatprep.subr.mxu0 0.0
    %2358 = vmatpush2.msra.mxu0 0.0
    %2359 = vmatprep.subr.mxu0 0.0
    %2360 = vmatpush2.msra.mxu0 0.0
    %2361 = vmatprep.subr.mxu0 0.0
    %2362 = vmatpush2.msra.mxu0 0.0
    %2363 = vmatprep.subr.mxu0 0.0
    %2364 = vmatpush2.msra.mxu0 0.0
    %2365 = vmatprep.mubr.f32.mxu0 0.0
    %2366 = vmatmul.mubr.f32.gmra.mxu0 %v528
    %v2367 = vpop.f32.mrf.mxu0
    %v2368 = vadd.f32 0.0, %v2367
    %v2369 = vpop.f32.mrf.mxu0
    %2370 = vmatprep.mubr.f32.mxu0 0.0
    %2371 = vmatmul.mubr.f32.gmra.mxu0 %v531
    %v2372 = vpop.f32.mrf.mxu0
    %v2373 = vadd.f32 0.0, %v2372
    %v2374 = vpop.f32.mrf.mxu0
    %2375 = vdwg.mxu0
    %v2376 = vsel %vm526, %v1722, 0
    %v2378 = vsel %vm526, %v1724, 0
    %2380 = vmatprep.subr.mxu0 0.0
    %2381 = vmatpush1.msra.mxu0 0.0
    %2382 = vmatprep.subr.mxu0 0.0
    %2383 = vmatpush1.msra.mxu0 0.0
    %2384 = vmatprep.subr.mxu0 0.0
    %2385 = vmatpush1.msra.mxu0 0.0
    %2386 = vmatprep.subr.mxu0 0.0
    %2387 = vmatpush1.msra.mxu0 0.0
    %2388 = vmatprep.subr.mxu0 0.0
    %2389 = vmatpush1.msra.mxu0 0.0
    %2390 = vmatprep.subr.mxu0 0.0
    %2391 = vmatpush1.msra.mxu0 0.0
    %2392 = vmatprep.subr.mxu0 0.0
    %2393 = vmatpush1.msra.mxu0 0.0
    %2394 = vmatprep.subr.mxu0 0.0
    %2395 = vmatpush1.msra.mxu0 0.0
    %2396 = vmatprep.subr.mxu0 0.0
    %2397 = vmatpush1.msra.mxu0 0.0
    %2398 = vmatprep.subr.mxu0 0.0
    %2399 = vmatpush1.msra.mxu0 0.0
    %2400 = vmatprep.subr.mxu0 0.0
    %2401 = vmatpush1.msra.mxu0 0.0
    %2402 = vmatprep.subr.mxu0 0.0
    %2403 = vmatpush1.msra.mxu0 0.0
    %2404 = vmatprep.subr.mxu0 %v155
    %2405 = vmatpush1.msra.mxu0 %v154
    %2406 = vmatprep.subr.mxu0 %v153
    %2407 = vmatpush1.msra.mxu0 %v152
    %2408 = vmatprep.subr.mxu0 %v151
    %2409 = vmatpush1.msra.mxu0 %v150
    %2410 = vmatprep.subr.mxu0 %v149
    %2411 = vmatpush1.msra.mxu0 %v148
    %2412 = vmatprep.subr.mxu0 0.0
    %2413 = vmatpush2.msra.mxu0 0.0
    %2414 = vmatprep.subr.mxu0 0.0
    %2415 = vmatpush2.msra.mxu0 0.0
    %2416 = vmatprep.subr.mxu0 0.0
    %2417 = vmatpush2.msra.mxu0 0.0
    %2418 = vmatprep.subr.mxu0 0.0
    %2419 = vmatpush2.msra.mxu0 0.0
    %2420 = vmatprep.subr.mxu0 0.0
    %2421 = vmatpush2.msra.mxu0 0.0
    %2422 = vmatprep.subr.mxu0 0.0
    %2423 = vmatpush2.msra.mxu0 0.0
    %2424 = vmatprep.subr.mxu0 0.0
    %2425 = vmatpush2.msra.mxu0 0.0
    %2426 = vmatprep.subr.mxu0 0.0
    %2427 = vmatpush2.msra.mxu0 0.0
    %2428 = vmatprep.subr.mxu0 0.0
    %2429 = vmatpush2.msra.mxu0 0.0
    %2430 = vmatprep.subr.mxu0 0.0
    %2431 = vmatpush2.msra.mxu0 0.0
    %2432 = vmatprep.subr.mxu0 0.0
    %2433 = vmatpush2.msra.mxu0 0.0
    %2434 = vmatprep.subr.mxu0 0.0
    %2435 = vmatpush2.msra.mxu0 0.0
    %2436 = vmatprep.subr.mxu0 0.0
    %2437 = vmatpush2.msra.mxu0 0.0
    %2438 = vmatprep.subr.mxu0 0.0
    %2439 = vmatpush2.msra.mxu0 0.0
    %2440 = vmatprep.subr.mxu0 0.0
    %2441 = vmatpush2.msra.mxu0 0.0
    %2442 = vmatprep.subr.mxu0 0.0
    %2443 = vmatpush2.msra.mxu0 0.0
    %2444 = vmatprep.mubr.f32.mxu0 0.0
    %2445 = vmatmul.mubr.f32.gmra.mxu0 %v2376
    %v2446 = vpop.f32.mrf.mxu0
    %v2447 = vadd.f32 0.0, %v2446
    %v2448 = vpop.f32.mrf.mxu0
    %v2449 = vadd.f32 0.0, %v2448
    %2450 = vmatprep.mubr.f32.mxu0 0.0
    %2451 = vmatmul.mubr.f32.gmra.mxu0 %v2378
    %v2452 = vpop.f32.mrf.mxu0
    %v2453 = vadd.f32 0.0, %v2452
    %v2454 = vpop.f32.mrf.mxu0
    %v2455 = vadd.f32 0.0, %v2454
    %2456 = vdwg.mxu0
    %v2458 = vsel %vm526, %v2368, 0
    %v2461 = vsel %vm526, %v2373, 0
    %2463 = vmatprep.subr.mxu0 0.0
    %2464 = vmatpush1.msra.mxu0 0.0
    %2465 = vmatprep.subr.mxu0 0.0
    %2466 = vmatpush1.msra.mxu0 0.0
    %2467 = vmatprep.subr.mxu0 0.0
    %2468 = vmatpush1.msra.mxu0 0.0
    %2469 = vmatprep.subr.mxu0 0.0
    %2470 = vmatpush1.msra.mxu0 0.0
    %2471 = vmatprep.subr.mxu0 0.0
    %2472 = vmatpush1.msra.mxu0 0.0
    %2473 = vmatprep.subr.mxu0 0.0
    %2474 = vmatpush1.msra.mxu0 0.0
    %2475 = vmatprep.subr.mxu0 0.0
    %2476 = vmatpush1.msra.mxu0 0.0
    %2477 = vmatprep.subr.mxu0 0.0
    %2478 = vmatpush1.msra.mxu0 0.0
    %2479 = vmatprep.subr.mxu0 0.0
    %2480 = vmatpush1.msra.mxu0 0.0
    %2481 = vmatprep.subr.mxu0 0.0
    %2482 = vmatpush1.msra.mxu0 0.0
    %2483 = vmatprep.subr.mxu0 0.0
    %2484 = vmatpush1.msra.mxu0 0.0
    %2485 = vmatprep.subr.mxu0 0.0
    %2486 = vmatpush1.msra.mxu0 0.0
    %2487 = vmatprep.subr.mxu0 %v147
    %2488 = vmatpush1.msra.mxu0 %v146
    %2489 = vmatprep.subr.mxu0 %v145
    %2490 = vmatpush1.msra.mxu0 %v144
    %2491 = vmatprep.subr.mxu0 %v143
    %2492 = vmatpush1.msra.mxu0 %v142
    %2493 = vmatprep.subr.mxu0 %v141
    %2494 = vmatpush1.msra.mxu0 %v140
    %2495 = vmatprep.subr.mxu0 0.0
    %2496 = vmatpush2.msra.mxu0 0.0
    %2497 = vmatprep.subr.mxu0 0.0
    %2498 = vmatpush2.msra.mxu0 0.0
    %2499 = vmatprep.subr.mxu0 0.0
    %2500 = vmatpush2.msra.mxu0 0.0
    %2501 = vmatprep.subr.mxu0 0.0
    %2502 = vmatpush2.msra.mxu0 0.0
    %2503 = vmatprep.subr.mxu0 0.0
    %2504 = vmatpush2.msra.mxu0 0.0
    %2505 = vmatprep.subr.mxu0 0.0
    %2506 = vmatpush2.msra.mxu0 0.0
    %2507 = vmatprep.subr.mxu0 0.0
    %2508 = vmatpush2.msra.mxu0 0.0
    %2509 = vmatprep.subr.mxu0 0.0
    %2510 = vmatpush2.msra.mxu0 0.0
    %2511 = vmatprep.subr.mxu0 0.0
    %2512 = vmatpush2.msra.mxu0 0.0
    %2513 = vmatprep.subr.mxu0 0.0
    %2514 = vmatpush2.msra.mxu0 0.0
    %2515 = vmatprep.subr.mxu0 0.0
    %2516 = vmatpush2.msra.mxu0 0.0
    %2517 = vmatprep.subr.mxu0 0.0
    %2518 = vmatpush2.msra.mxu0 0.0
    %2519 = vmatprep.subr.mxu0 0.0
    %2520 = vmatpush2.msra.mxu0 0.0
    %2521 = vmatprep.subr.mxu0 0.0
    %2522 = vmatpush2.msra.mxu0 0.0
    %2523 = vmatprep.subr.mxu0 0.0
    %2524 = vmatpush2.msra.mxu0 0.0
    %2525 = vmatprep.subr.mxu0 0.0
    %2526 = vmatpush2.msra.mxu0 0.0
    %2527 = vmatprep.mubr.f32.mxu0 0.0
    %2528 = vmatmul.mubr.f32.gmra.mxu0 %v2458
    %v2529 = vpop.f32.mrf.mxu0
    %v2530 = vadd.f32 %v2447, %v2529
    %v2531 = vpop.f32.mrf.mxu0
    %v2532 = vadd.f32 %v2449, %v2531
    %2533 = vmatprep.mubr.f32.mxu0 0.0
    %2534 = vmatmul.mubr.f32.gmra.mxu0 %v2461
    %v2535 = vpop.f32.mrf.mxu0
    %v2536 = vadd.f32 %v2453, %v2535
    %v2537 = vpop.f32.mrf.mxu0
    %v2538 = vadd.f32 %v2455, %v2537
    %2539 = vdwg.mxu0
    %v2540 = vadd.f32 %v2530, %v161
    %v2541 = vadd.f32 %v2532, %v165
    %v2542 = vadd.f32 %v2536, %v161
    %v2543 = vadd.f32 %v2538, %v165
    %v2544 = vxor.u32 %v2540, 2147483648
    %v2545 = vxor.u32 %v2542, 2147483648
    %v2546 = vmul.f32 %v2544, 1.442695
    %v2547 = vpow.pop %v2546
    %v2548 = vmul.f32 %v2545, 1.442695
    %v2549 = vpow.pop %v2548
    %v2550 = vadd.f32 %v2547, 1.0
    %v2551 = vadd.f32 %v2549, 1.0
    %v2552 = vrcp.pop %v2550
    %v2553 = vmul.f32 1.0, %v2552
    %v2554 = vrcp.pop %v2551
    %v2555 = vmul.f32 1.0, %v2554
    %2558 = vrot.lane.b32.xlu0 %v2541, 64
    %v2559 = vpop.permute.xlu0 %2558
    %2560 = vrot.lane.b32.xlu0 %v2543, 64
    %v2561 = vpop.permute.xlu0 %2560
    %v2564 = vmul.f32 %v2553, %v2559
    %v2565 = vmul.f32 %v2555, %v2561
    %v2566 = vadd.f32 %v2541, %v2564
    %v2567 = vadd.f32 %v2543, %v2565
    %v2568 = vtanh.pop %v2566
    %v2569 = vtanh.pop %v2567
    %2570 = vrot.lane.b32.xlu0 %v2541, 96
    %v2571 = vpop.permute.xlu0 %2570
    %2572 = vrot.lane.b32.xlu0 %v2543, 96
    %v2573 = vpop.permute.xlu0 %2572
    %v2576 = vmul.f32 %v2553, %v2571
    %v2577 = vmul.f32 %v2555, %v2573
    %2580 = vrot.lane.b32.xlu0 %v2576, 96
    %v2581 = vpop.permute.xlu0 %2580
    %2582 = vrot.lane.b32.xlu0 %v2577, 96
    %v2583 = vpop.permute.xlu0 %2582
    %v2586 = vadd.f32 %v2541, %v2581
    %v2587 = vadd.f32 %v2543, %v2583
    %v2588 = vtanh.pop %v2586
    %v2589 = vtanh.pop %v2587
    %v2590 = vsub.f32 1.0, %v2553
    %v2591 = vsub.f32 1.0, %v2555
    %2594 = vrot.lane.b32.xlu0 %v2568, 32
    %v2595 = vpop.permute.xlu0 %2594
    %2596 = vrot.lane.b32.xlu0 %v2569, 32
    %v2597 = vpop.permute.xlu0 %2596
    %v2600 = vmul.f32 %v2590, %v2595
    %v2601 = vmul.f32 %v2591, %v2597
    %v2602 = vmul.f32 %v2553, %v1717
    %v2603 = vmul.f32 %v2555, %v1718
    %v2604 = vadd.f32 %v2600, %v2602
    %v2605 = vadd.f32 %v2601, %v2603
    %2608 = vrot.lane.b32.xlu0 %v2588, 64
    %v2609 = vpop.permute.xlu0 %2608
    %2610 = vrot.lane.b32.xlu0 %v2589, 64
    %v2611 = vpop.permute.xlu0 %2610
    %v2614 = vmul.f32 %v2590, %v2609
    %v2615 = vmul.f32 %v2591, %v2611
    %2616 = vrot.lane.b32.xlu0 %v1717, 64
    %v2617 = vpop.permute.xlu0 %2616
    %2618 = vrot.lane.b32.xlu0 %v1718, 64
    %v2619 = vpop.permute.xlu0 %2618
    %v2622 = vmul.f32 %v2553, %v2617
    %v2623 = vmul.f32 %v2555, %v2619
    %v2624 = vadd.f32 %v2614, %v2622
    %v2625 = vadd.f32 %v2615, %v2623
    %v2626 = vmul.f32 %v184, %v2604
    %v2627 = vmul.f32 %v189, %v2605
    %v2628 = vmul.f32 %v191, %v2624
    %v2629 = vmul.f32 %v192, %v2625
    %2632 = vrot.lane.b32.xlu0 %v2628, 64
    %v2633 = vpop.permute.xlu0 %2632
    %2634 = vrot.lane.b32.xlu0 %v2629, 64
    %v2635 = vpop.permute.xlu0 %2634
    %v2638 = vadd.f32 %v2626, %v2633
    %v2639 = vadd.f32 %v2627, %v2635
    %2640 = vset.pattern.permute.xlu0 0
    %2641 = vperm.xlu0 %2640, %v53
    %v2642 = vpop.permute.xlu0 %2641
    %2644 = vset.pattern.permute.xlu0 0
    %2645 = vperm.xlu0 %2644, %v54
    %v2646 = vpop.permute.xlu0 %2645
    %v2648 = vlaneseq
    %v2649 = vshrl.u32 %v2648, 7
    %v2650 = vsub.s32 0, %v2649
    %v2651 = vrot.slane %v172, %v2650
    %v2652 = vmul.f32 %v2642, %v2651
    %v2653 = vmul.f32 %v2646, %v2651
    %2656 = vrot.lane.b32.xlu0 %v2638, 96
    %v2657 = vpop.permute.xlu0 %2656
    %2658 = vrot.lane.b32.xlu0 %v2639, 96
    %v2659 = vpop.permute.xlu0 %2658
    %v2660 = vsel %vm526, %v2657, 0
    %v2662 = vsel %vm526, %v2659, 0
    %2664 = vmatprep.subr.mxu0 0.0
    %2665 = vmatpush1.msra.mxu0 0.0
    %2666 = vmatprep.subr.mxu0 0.0
    %2667 = vmatpush1.msra.mxu0 0.0
    %2668 = vmatprep.subr.mxu0 0.0
    %2669 = vmatpush1.msra.mxu0 0.0
    %2670 = vmatprep.subr.mxu0 0.0
    %2671 = vmatpush1.msra.mxu0 0.0
    %2672 = vmatprep.subr.mxu0 0.0
    %2673 = vmatpush1.msra.mxu0 0.0
    %2674 = vmatprep.subr.mxu0 0.0
    %2675 = vmatpush1.msra.mxu0 0.0
    %2676 = vmatprep.subr.mxu0 0.0
    %2677 = vmatpush1.msra.mxu0 0.0
    %2678 = vmatprep.subr.mxu0 0.0
    %2679 = vmatpush1.msra.mxu0 0.0
    %2680 = vmatprep.subr.mxu0 0.0
    %2681 = vmatpush1.msra.mxu0 0.0
    %2682 = vmatprep.subr.mxu0 0.0
    %2683 = vmatpush1.msra.mxu0 0.0
    %2684 = vmatprep.subr.mxu0 0.0
    %2685 = vmatpush1.msra.mxu0 0.0
    %2686 = vmatprep.subr.mxu0 0.0
    %2687 = vmatpush1.msra.mxu0 0.0
    %2688 = vmatprep.subr.mxu0 0.0
    %2689 = vmatpush1.msra.mxu0 %v171
    %2690 = vmatprep.subr.mxu0 0.0
    %2691 = vmatpush1.msra.mxu0 %v170
    %2692 = vmatprep.subr.mxu0 0.0
    %2693 = vmatpush1.msra.mxu0 %v169
    %2694 = vmatprep.subr.mxu0 0.0
    %2695 = vmatpush1.msra.mxu0 %v168
    %2696 = vmatprep.subr.mxu0 0.0
    %2697 = vmatpush2.msra.mxu0 0.0
    %2698 = vmatprep.subr.mxu0 0.0
    %2699 = vmatpush2.msra.mxu0 0.0
    %2700 = vmatprep.subr.mxu0 0.0
    %2701 = vmatpush2.msra.mxu0 0.0
    %2702 = vmatprep.subr.mxu0 0.0
    %2703 = vmatpush2.msra.mxu0 0.0
    %2704 = vmatprep.subr.mxu0 0.0
    %2705 = vmatpush2.msra.mxu0 0.0
    %2706 = vmatprep.subr.mxu0 0.0
    %2707 = vmatpush2.msra.mxu0 0.0
    %2708 = vmatprep.subr.mxu0 0.0
    %2709 = vmatpush2.msra.mxu0 0.0
    %2710 = vmatprep.subr.mxu0 0.0
    %2711 = vmatpush2.msra.mxu0 0.0
    %2712 = vmatprep.subr.mxu0 0.0
    %2713 = vmatpush2.msra.mxu0 0.0
    %2714 = vmatprep.subr.mxu0 0.0
    %2715 = vmatpush2.msra.mxu0 0.0
    %2716 = vmatprep.subr.mxu0 0.0
    %2717 = vmatpush2.msra.mxu0 0.0
    %2718 = vmatprep.subr.mxu0 0.0
    %2719 = vmatpush2.msra.mxu0 0.0
    %2720 = vmatprep.subr.mxu0 0.0
    %2721 = vmatpush2.msra.mxu0 0.0
    %2722 = vmatprep.subr.mxu0 0.0
    %2723 = vmatpush2.msra.mxu0 0.0
    %2724 = vmatprep.subr.mxu0 0.0
    %2725 = vmatpush2.msra.mxu0 0.0
    %2726 = vmatprep.subr.mxu0 0.0
    %2727 = vmatpush2.msra.mxu0 0.0
    %2728 = vmatprep.mubr.f32.mxu0 0.0
    %2729 = vmatmul.mubr.f32.gmra.mxu0 %v2660
    %v2730 = vpop.f32.mrf.mxu0
    %v2731 = vadd.f32 %v2652, %v2730
    %v2732 = vpop.f32.mrf.mxu0
    %2733 = vmatprep.mubr.f32.mxu0 0.0
    %2734 = vmatmul.mubr.f32.gmra.mxu0 %v2662
    %v2735 = vpop.f32.mrf.mxu0
    %v2736 = vadd.f32 %v2653, %v2735
    %v2737 = vpop.f32.mrf.mxu0
    %2738 = vdwg.mxu0
    %v2739 = vmax.f32 %v2731, 0.0
    %v2740 = vmax.f32 %v2736, 0.0
    %v2742 = vsel %vm295, %v2739, 0
    %v2745 = vsel %vm295, %v2740, 0
    %2747 = vmatprep.subr.mxu0 0.0
    %2748 = vmatpush1.msra.mxu0 0.0
    %2749 = vmatprep.subr.mxu0 0.0
    %2750 = vmatpush1.msra.mxu0 0.0
    %2751 = vmatprep.subr.mxu0 0.0
    %2752 = vmatpush1.msra.mxu0 0.0
    %2753 = vmatprep.subr.mxu0 0.0
    %2754 = vmatpush1.msra.mxu0 0.0
    %2755 = vmatprep.subr.mxu0 0.0
    %2756 = vmatpush1.msra.mxu0 0.0
    %2757 = vmatprep.subr.mxu0 0.0
    %2758 = vmatpush1.msra.mxu0 0.0
    %2759 = vmatprep.subr.mxu0 0.0
    %2760 = vmatpush1.msra.mxu0 0.0
    %2761 = vmatprep.subr.mxu0 0.0
    %2762 = vmatpush1.msra.mxu0 0.0
    %2763 = vmatprep.subr.mxu0 0.0
    %2764 = vmatpush1.msra.mxu0 %v180
    %2765 = vmatprep.subr.mxu0 0.0
    %2766 = vmatpush1.msra.mxu0 %v179
    %2767 = vmatprep.subr.mxu0 0.0
    %2768 = vmatpush1.msra.mxu0 %v178
    %2769 = vmatprep.subr.mxu0 0.0
    %2770 = vmatpush1.msra.mxu0 %v177
    %2771 = vmatprep.subr.mxu0 0.0
    %2772 = vmatpush1.msra.mxu0 %v176
    %2773 = vmatprep.subr.mxu0 0.0
    %2774 = vmatpush1.msra.mxu0 %v175
    %2775 = vmatprep.subr.mxu0 0.0
    %2776 = vmatpush1.msra.mxu0 %v174
    %2777 = vmatprep.subr.mxu0 0.0
    %2778 = vmatpush1.msra.mxu0 %v173
    %2779 = vmatprep.subr.mxu0 0.0
    %2780 = vmatpush2.msra.mxu0 0.0
    %2781 = vmatprep.subr.mxu0 0.0
    %2782 = vmatpush2.msra.mxu0 0.0
    %2783 = vmatprep.subr.mxu0 0.0
    %2784 = vmatpush2.msra.mxu0 0.0
    %2785 = vmatprep.subr.mxu0 0.0
    %2786 = vmatpush2.msra.mxu0 0.0
    %2787 = vmatprep.subr.mxu0 0.0
    %2788 = vmatpush2.msra.mxu0 0.0
    %2789 = vmatprep.subr.mxu0 0.0
    %2790 = vmatpush2.msra.mxu0 0.0
    %2791 = vmatprep.subr.mxu0 0.0
    %2792 = vmatpush2.msra.mxu0 0.0
    %2793 = vmatprep.subr.mxu0 0.0
    %2794 = vmatpush2.msra.mxu0 0.0
    %2795 = vmatprep.subr.mxu0 0.0
    %2796 = vmatpush2.msra.mxu0 0.0
    %2797 = vmatprep.subr.mxu0 0.0
    %2798 = vmatpush2.msra.mxu0 0.0
    %2799 = vmatprep.subr.mxu0 0.0
    %2800 = vmatpush2.msra.mxu0 0.0
    %2801 = vmatprep.subr.mxu0 0.0
    %2802 = vmatpush2.msra.mxu0 0.0
    %2803 = vmatprep.subr.mxu0 0.0
    %2804 = vmatpush2.msra.mxu0 0.0
    %2805 = vmatprep.subr.mxu0 0.0
    %2806 = vmatpush2.msra.mxu0 0.0
    %2807 = vmatprep.subr.mxu0 0.0
    %2808 = vmatpush2.msra.mxu0 0.0
    %2809 = vmatprep.subr.mxu0 0.0
    %2810 = vmatpush2.msra.mxu0 0.0
    %2811 = vmatprep.mubr.f32.mxu0 0.0
    %2812 = vmatmul.mubr.f32.gmra.mxu0 %v2742
    %v2813 = vpop.f32.mrf.mxu0
    %v2814 = vadd.f32 0.0, %v2813
    %v2815 = vpop.f32.mrf.mxu0
    %2816 = vmatprep.mubr.f32.mxu0 0.0
    %2817 = vmatmul.mubr.f32.gmra.mxu0 %v2745
    %v2818 = vpop.f32.mrf.mxu0
    %v2819 = vadd.f32 0.0, %v2818
    %v2820 = vpop.f32.mrf.mxu0
    %2821 = vdwg.mxu0
    %v2822 = vmax.f32 %v2814, 0.0
    %v2823 = vmax.f32 %v2819, 0.0
    %2832 = vrot.lane.b32.xlu0 %v173, 64
    %v2833 = vpop.permute.xlu0 %2832
    %2834 = vrot.lane.b32.xlu0 %v174, 64
    %v2835 = vpop.permute.xlu0 %2834
    %2836 = vrot.lane.b32.xlu0 %v175, 64
    %v2837 = vpop.permute.xlu0 %2836
    %2838 = vrot.lane.b32.xlu0 %v176, 64
    %v2839 = vpop.permute.xlu0 %2838
    %2840 = vrot.lane.b32.xlu0 %v177, 64
    %v2841 = vpop.permute.xlu0 %2840
    %2842 = vrot.lane.b32.xlu0 %v178, 64
    %v2843 = vpop.permute.xlu0 %2842
    %2844 = vrot.lane.b32.xlu0 %v179, 64
    %v2845 = vpop.permute.xlu0 %2844
    %2846 = vrot.lane.b32.xlu0 %v180, 64
    %v2847 = vpop.permute.xlu0 %2846
    %v2857 = vsel %vm295, %v2822, 0
    %v2860 = vsel %vm295, %v2823, 0
    %2862 = vmatprep.subr.mxu0 0.0
    %2863 = vmatpush1.msra.mxu0 0.0
    %2864 = vmatprep.subr.mxu0 0.0
    %2865 = vmatpush1.msra.mxu0 0.0
    %2866 = vmatprep.subr.mxu0 0.0
    %2867 = vmatpush1.msra.mxu0 0.0
    %2868 = vmatprep.subr.mxu0 0.0
    %2869 = vmatpush1.msra.mxu0 0.0
    %2870 = vmatprep.subr.mxu0 0.0
    %2871 = vmatpush1.msra.mxu0 0.0
    %2872 = vmatprep.subr.mxu0 0.0
    %2873 = vmatpush1.msra.mxu0 0.0
    %2874 = vmatprep.subr.mxu0 0.0
    %2875 = vmatpush1.msra.mxu0 0.0
    %2876 = vmatprep.subr.mxu0 0.0
    %2877 = vmatpush1.msra.mxu0 0.0
    %2878 = vmatprep.subr.mxu0 0.0
    %2879 = vmatpush1.msra.mxu0 %v2847
    %2880 = vmatprep.subr.mxu0 0.0
    %2881 = vmatpush1.msra.mxu0 %v2845
    %2882 = vmatprep.subr.mxu0 0.0
    %2883 = vmatpush1.msra.mxu0 %v2843
    %2884 = vmatprep.subr.mxu0 0.0
    %2885 = vmatpush1.msra.mxu0 %v2841
    %2886 = vmatprep.subr.mxu0 0.0
    %2887 = vmatpush1.msra.mxu0 %v2839
    %2888 = vmatprep.subr.mxu0 0.0
    %2889 = vmatpush1.msra.mxu0 %v2837
    %2890 = vmatprep.subr.mxu0 0.0
    %2891 = vmatpush1.msra.mxu0 %v2835
    %2892 = vmatprep.subr.mxu0 0.0
    %2893 = vmatpush1.msra.mxu0 %v2833
    %2894 = vmatprep.subr.mxu0 0.0
    %2895 = vmatpush2.msra.mxu0 0.0
    %2896 = vmatprep.subr.mxu0 0.0
    %2897 = vmatpush2.msra.mxu0 0.0
    %2898 = vmatprep.subr.mxu0 0.0
    %2899 = vmatpush2.msra.mxu0 0.0
    %2900 = vmatprep.subr.mxu0 0.0
    %2901 = vmatpush2.msra.mxu0 0.0
    %2902 = vmatprep.subr.mxu0 0.0
    %2903 = vmatpush2.msra.mxu0 0.0
    %2904 = vmatprep.subr.mxu0 0.0
    %2905 = vmatpush2.msra.mxu0 0.0
    %2906 = vmatprep.subr.mxu0 0.0
    %2907 = vmatpush2.msra.mxu0 0.0
    %2908 = vmatprep.subr.mxu0 0.0
    %2909 = vmatpush2.msra.mxu0 0.0
    %2910 = vmatprep.subr.mxu0 0.0
    %2911 = vmatpush2.msra.mxu0 0.0
    %2912 = vmatprep.subr.mxu0 0.0
    %2913 = vmatpush2.msra.mxu0 0.0
    %2914 = vmatprep.subr.mxu0 0.0
    %2915 = vmatpush2.msra.mxu0 0.0
    %2916 = vmatprep.subr.mxu0 0.0
    %2917 = vmatpush2.msra.mxu0 0.0
    %2918 = vmatprep.subr.mxu0 0.0
    %2919 = vmatpush2.msra.mxu0 0.0
    %2920 = vmatprep.subr.mxu0 0.0
    %2921 = vmatpush2.msra.mxu0 0.0
    %2922 = vmatprep.subr.mxu0 0.0
    %2923 = vmatpush2.msra.mxu0 0.0
    %2924 = vmatprep.subr.mxu0 0.0
    %2925 = vmatpush2.msra.mxu0 0.0
    %2926 = vmatprep.mubr.f32.mxu0 0.0
    %2927 = vmatmul.mubr.f32.gmra.mxu0 %v2857
    %v2928 = vpop.f32.mrf.mxu0
    %v2929 = vadd.f32 0.0, %v2928
    %v2930 = vpop.f32.mrf.mxu0
    %2931 = vmatprep.mubr.f32.mxu0 0.0
    %2932 = vmatmul.mubr.f32.gmra.mxu0 %v2860
    %v2933 = vpop.f32.mrf.mxu0
    %v2934 = vadd.f32 0.0, %v2933
    %v2935 = vpop.f32.mrf.mxu0
    %2936 = vdwg.mxu0
    %vm2937 = vcmask 15360
    %v2938 = vsel %vm2937, %v2929, -inf
    %2939 = vmax.xlane.f32.xlu0 %v2938
    %v2940 = vpop.xlane.xlu0 %2939
    %v2941 = vsel %vm2937, %v2934, -inf
    %2942 = vmax.xlane.f32.xlu0 %v2941
    %v2943 = vpop.xlane.xlu0 %2942
    %v2944 = vsub.f32 %v2929, %v2940
    %v2945 = vsub.f32 %v2934, %v2943
    %v2946 = vmul.f32 %v2944, 1.442695
    %v2947 = vpow.pop %v2946
    %v2948 = vmul.f32 %v2945, 1.442695
    %v2949 = vpow.pop %v2948
    %v2950 = vsel %vm2937, %v2947, 0.0
    %2951 = vadd.xlane.f32.xlu0 %v2950
    %v2952 = vpop.xlane.xlu0 %2951
    %v2953 = vsel %vm2937, %v2949, 0.0
    %2954 = vadd.xlane.f32.xlu0 %v2953
    %v2955 = vpop.xlane.xlu0 %2954
    %v2956 = vlog2.pop %v2952
    %v2957 = vmul.f32 %v2956, 0.6931472
    %v2958 = vlog2.pop %v2955
    %v2959 = vmul.f32 %v2958, 0.6931472
    %v2960 = vadd.f32 %v2957, %v2940
    %v2961 = vadd.f32 %v2959, %v2943
    %v2962 = vsub.f32 %v2929, %v2960
    %v2963 = vsub.f32 %v2934, %v2961
    %2964 = vst.msk [vmem:[%s10] sm:$0xff] %vm2937, %v2962
    %2965 = vst.msk [vmem:[%s10 + $0x8] sm:$0xff] %vm2937, %v2963
    // Predicated region
    $region46: #{tpu_custom_call.1} parent=1 // pred_check
      _
    $region47: #{tpu_custom_call.1} parent=1 // pred_check_branch
      %2967 = sbr.rel (0) target = $region49
    $region48: #{tpu_custom_call.1} parent=1 // pred_region
      _
    $region49: #{tpu_custom_call.1} parent=1 // pred_fallthru
      _
    // Predicated region
    $region50: #{tpu_custom_call.1} parent=1 // pred_check
      _
    $region51: #{tpu_custom_call.1} parent=1 // pred_check_branch
      %2969 = sbr.rel (0) target = $region53
    $region52: #{tpu_custom_call.1} parent=1 // pred_region
      _
    $region53: #{tpu_custom_call.1} parent=1 // pred_fallthru
      _
    %2970 = vsyncpa [#allocation3], 1

</llo_original>
